<compile_context>
chip_gen: v7x
topology: tpu7x:2x2x1
jax: 0.10.0
libtpu: 0.0.40
codegen_flags: <defaults>
</compile_context>

<pallas_src>
import functools
import numpy as np
import jax
import jax.numpy as jnp
from jax.experimental import pallas as pl
from jax.experimental.pallas import tpu as pltpu

# ---- FileEncoder(num_layers, num_heads, dim, head_dim, dropout_rate) config ----
NUM_LAYERS = 2
NUM_HEADS = 4
DIM = 32
HEAD_DIM = 8
FFN_DIM = 4 * DIM      # TODO(synk): EncoderLayer source not provided; assumed post-norm MHA + 4*dim ReLU FFN.
DROPOUT_RATE = 0.1     # dropout is a no-op in eval mode; not applied.
VOCAB = 11
NEG_INF = -1e30


# -------------------------- Pallas kernel --------------------------

def _layernorm(z, g, b):
    mu = jnp.mean(z, axis=-1, keepdims=True)
    var = jnp.mean((z - mu) ** 2, axis=-1, keepdims=True)
    return (z - mu) * jax.lax.rsqrt(var + 1e-5) * g + b


def _fused_term_encoder_kernel(slab_ref, rott_ref, bias_ref, projw_ref,
                               wbig_ref, wo_ref, w1_ref, w2_ref, vec_ref,
                               rotq_ref, out_ref, *, num_layers, num_heads,
                               head_dim, dim, ffn_dim):
    hd = head_dim
    nh = num_heads
    hdm = nh * hd
    rw = hd * 2 * hdm                       # width of the "selected" qk block
    scale = 1.0 / (hd ** 0.5)

    slab = slab_ref[0]                      # (S, hd + D + 1)  packed per-position data
    feats = slab[:, :hd]                    # raw token features
    refv = slab[:, hd:hd + dim]             # reference values (0 elsewhere)
    refm = slab[:, hd + dim:hd + dim + 1]   # reference mask (float)
    rott = rott_ref[0]                      # (S, rw)  rotator columns tiled over 2*nh heads
    bias = bias_ref[0]                      # (1, S)   additive key-padding bias
    rotq = rotq_ref[...]                    # (rw, 2*hdm) constant fold-back matrix

    # emb_proj (head_dim -> dim), then dense_features[reference_mask] = storage[ids]
    x = jnp.dot(feats, projw_ref[...], preferred_element_type=jnp.float32)   # (S, D)
    x = x * (1.0 - refm) + refv * refm

    for l in range(num_layers):             # layers fused: unrolled python loop
        wbig = wbig_ref[l]                  # (D, rw + hdm) = [Wqk@P | Wv]
        wo = wo_ref[l]                      # (hdm, D)
        w1 = w1_ref[l]                      # (D, F)
        w2 = w2_ref[l]                      # (F, D)
        vec = vec_ref[l]                    # (8, F) packed small params
        ln1_g, ln1_b = vec[0:1, :dim], vec[1:2, :dim]
        b1 = vec[2:3, :ffn_dim]
        b2 = vec[3:4, :dim]
        ln2_g, ln2_b = vec[4:5, :dim], vec[5:6, :dim]

        # single matmul produces the rotation-ready qk expansion and v
        big = jnp.dot(x, wbig, preferred_element_type=jnp.float32)   # (S, rw + hdm)
        qksel = big[:, :rw]
        v = big[:, rw:]

        # per-position block-diagonal rotation of q and k in one shot:
        #   qkr[s, g*hd+i] = sum_j R[s,i,j] * qk[s, g*hd+j]   for g in [0, 2*nh)
        qkr = jnp.dot(qksel * rott, rotq, preferred_element_type=jnp.float32)  # (S, 2*hdm)
        qr = qkr[:, :hdm]
        kr = qkr[:, hdm:]

        heads = []
        for h in range(nh):
            sl = slice(h * hd, (h + 1) * hd)
            qh, kh, vh = qr[:, sl], kr[:, sl], v[:, sl]
            scores = jax.lax.dot_general(
                qh, kh, (((1,), (1,)), ((), ())),
                preferred_element_type=jnp.float32) * scale + bias   # (S, S)
            m = jnp.max(scores, axis=-1, keepdims=True)
            e = jnp.exp(scores - m)
            p = e * pl.reciprocal(jnp.sum(e, axis=-1, keepdims=True), approx=True)
            heads.append(jnp.dot(p, vh, preferred_element_type=jnp.float32))

        attn = jnp.concatenate(heads, axis=-1)                       # (S, hdm)
        attn_out = jnp.dot(attn, wo, preferred_element_type=jnp.float32)

        x1 = _layernorm(x + attn_out, ln1_g, ln1_b)
        h1 = jnp.maximum(
            jnp.dot(x1, w1, preferred_element_type=jnp.float32) + b1, 0.0)
        h2 = jnp.dot(h1, w2, preferred_element_type=jnp.float32) + b2
        x = _layernorm(x1 + h2, ln2_g, ln2_b)

    # TermEncoder returns dense_features[:, 0] -> only write row 0
    out_ref[0] = x[0:1, :].astype(out_ref.dtype)


def fused_term_encoder(params, slab, rot_tiled, bias):
    B, S, slabw = slab.shape
    D = params["dim"]
    L = params["num_layers"]
    F = params["ffn_dim"]
    nh = params["num_heads"]
    hd = params["head_dim"]
    hdm = nh * hd
    rw = hd * 2 * hdm
    vw = params["vec"].shape[-1]

    kern = functools.partial(_fused_term_encoder_kernel,
                             num_layers=L, num_heads=nh, head_dim=hd,
                             dim=D, ffn_dim=F)

    def rep(shape):
        n = len(shape)
        return pl.BlockSpec(shape, lambda b, _n=n: (0,) * _n)

    out = pl.pallas_call(
        kern,
        out_shape=jax.ShapeDtypeStruct((B, 1, D), jnp.float32),
        grid=(B,),
        in_specs=[pl.BlockSpec((1, S, slabw), lambda b: (b, 0, 0)),
                  pl.BlockSpec((1, S, rw), lambda b: (b, 0, 0)),
                  pl.BlockSpec((1, 1, S), lambda b: (b, 0, 0)),
                  rep((hd, D)),
                  rep((L, D, rw + hdm)),
                  rep((L, hdm, D)),
                  rep((L, D, F)),
                  rep((L, F, D)),
                  rep((L, 8, vw)),
                  rep((rw, 2 * hdm))],
        out_specs=pl.BlockSpec((1, 1, D), lambda b: (b, 0, 0)),
        compiler_params=pltpu.CompilerParams(
            dimension_semantics=("parallel",)),   # v7x: 2 TCs split the batch
    )(slab, rot_tiled, bias,
      params["emb_proj_w"], params["w_big"], params["wo"],
      params["w1"], params["w2"], params["vec"], params["rot_q"])
    return out[:, 0, :]


# -------------------------- TermEncoder forward --------------------------

def _term_encoder_ref(params, feats, padding_mask, reference_mask,
                      reference_ids, reference_storage, rotator):
    """Pure-jnp reference (validation only)."""
    B, S, hd = feats.shape
    D = params["dim"]; nh = params["num_heads"]; F = params["ffn_dim"]
    hdm = nh * hd
    x = jnp.einsum("bse,ed->bsd", feats, params["emb_proj_w"])
    rb, rs = np.nonzero(np.asarray(reference_mask))
    if rb.size:
        x = x.at[rb, rs].set(reference_storage[jnp.asarray(reference_ids)])
    mask = jnp.asarray(padding_mask, jnp.float32)
    bias = (1.0 - mask)[:, None, None, :] * NEG_INF
    scale = 1.0 / (hd ** 0.5)

    def ln(z, g, b):
        mu = z.mean(-1, keepdims=True)
        var = ((z - mu) ** 2).mean(-1, keepdims=True)
        return (z - mu) * jax.lax.rsqrt(var + 1e-5) * g + b

    for l in range(params["num_layers"]):
        wqkv, wo = params["wqkv"][l], params["wo"][l]
        w1, w2, vec = params["w1"][l], params["w2"][l], params["vec"][l]
        ln1_g, ln1_b = vec[0, :D], vec[1, :D]
        b1, b2 = vec[2, :F], vec[3, :D]
        ln2_g, ln2_b = vec[4, :D], vec[5, :D]
        qkv = jnp.einsum("bsd,dk->bsk", x, wqkv)
        q = qkv[..., :hdm].reshape(B, S, nh, hd)
        k = qkv[..., hdm:2 * hdm].reshape(B, S, nh, hd)
        v = qkv[..., 2 * hdm:].reshape(B, S, nh, hd)
        qr = jnp.einsum("bsij,bshj->bshi", rotator, q)
        kr = jnp.einsum("bsij,bshj->bshi", rotator, k)
        sc = jnp.einsum("bqhi,bkhi->bhqk", qr, kr) * scale + bias
        p = jax.nn.softmax(sc, axis=-1)
        oh = jnp.einsum("bhqk,bkhd->bqhd", p, v).reshape(B, S, hdm)
        attn_out = jnp.einsum("bsk,kd->bsd", oh, wo)
        x1 = ln(x + attn_out, ln1_g, ln1_b)
        h1 = jax.nn.relu(jnp.einsum("bsd,df->bsf", x1, w1) + b1)
        h2 = jnp.einsum("bsf,fd->bsd", h1, w2) + b2
        x = ln(x1 + h2, ln2_g, ln2_b)
    return x[:, 0]


def term_encoder_forward(params, dense_feats, padding_mask, reference_mask,
                         reference_ids, reference_storage, rotator,
                         use_pallas=True):
    """dense_feats: (B, S, head_dim) raw token features (emb_proj fused in-kernel)."""
    if not use_pallas:
        return _term_encoder_ref(params, dense_feats, padding_mask, reference_mask,
                                 reference_ids, reference_storage, rotator)

    B, S, hd = dense_feats.shape
    D = params["dim"]
    nh = params["num_heads"]
    pad_np = np.asarray(padding_mask)
    ref_np = np.asarray(reference_mask)

    # reference scatter values: dense_features[reference_mask] = storage[reference_ids]
    ref_vals = jnp.zeros((B, S, D), jnp.float32)
    rb, rs = np.nonzero(ref_np)
    if rb.size:
        ref_vals = ref_vals.at[rb, rs].set(
            reference_storage[jnp.asarray(reference_ids)])

    # bucket shapes to limit recompilation: seq -> multiple of 8, batch -> power of 2
    Sp = max(8, ((S + 7) // 8) * 8)
    Bp = 1 << max(0, (B - 1).bit_length())

    feats_p = jnp.zeros((Bp, Sp, hd), jnp.float32).at[:B, :S].set(dense_feats)
    refv_p = jnp.zeros((Bp, Sp, D), jnp.float32).at[:B, :S].set(ref_vals)
    refm_p = jnp.zeros((Bp, Sp, 1), jnp.float32).at[:B, :S, 0].set(
        jnp.asarray(ref_np, jnp.float32))
    slab = jnp.concatenate([feats_p, refv_p, refm_p], axis=-1)   # (Bp, Sp, hd+D+1)

    mask_p = jnp.zeros((Bp, 1, Sp), jnp.float32).at[:B, 0, :S].set(
        jnp.asarray(pad_np, jnp.float32))
    bias = (1.0 - mask_p) * NEG_INF                              # (Bp, 1, Sp)

    # rot_tiled[b, s, j*2*hdm + g*hd + i] = R[b, s, i, j]   (column j tiled over 2*nh heads)
    rw = hd * 2 * nh * hd
    cols = jnp.transpose(rotator, (0, 1, 3, 2))                  # (B, S, j, i)
    rot_tiled = jnp.tile(cols[:, :, :, None, :],
                         (1, 1, 1, 2 * nh, 1)).reshape(B, S, rw)
    rot_p = jnp.zeros((Bp, Sp, rw), jnp.float32).at[:B, :S].set(rot_tiled)

    out = fused_term_encoder(params, slab, rot_p, bias)
    return out[:B]


# -------------------------- model glue (host side) --------------------------

def token_embedding(params, tokens):
    # TODO(synk): TokenEmbedding (unitary tree positional encodings) source not
    # provided; deterministic stand-in: table lookup + per-position block-diagonal
    # orthogonal rotators. (The permute(2,0,1) in the reference is layout glue.)
    tok = jnp.asarray(tokens)
    feats = params["tok_emb"][tok[:, :, 0] % params["tok_emb"].shape[0]]
    N, S, _ = tok.shape
    hd = params["tok_emb"].shape[1]
    pos = jnp.arange(S, dtype=jnp.float32)
    freqs = 1.0 / (10.0 ** (jnp.arange(hd // 2, dtype=jnp.float32) / (hd // 2)))
    theta = pos[:, None] * freqs[None, :]
    c, s = jnp.cos(theta), jnp.sin(theta)
    rot = jnp.zeros((S, hd, hd), jnp.float32)
    for p in range(hd // 2):
        rot = rot.at[:, 2 * p, 2 * p].set(c[:, p])
        rot = rot.at[:, 2 * p, 2 * p + 1].set(-s[:, p])
        rot = rot.at[:, 2 * p + 1, 2 * p].set(s[:, p])
        rot = rot.at[:, 2 * p + 1, 2 * p + 1].set(c[:, p])
    rotator = jnp.broadcast_to(rot[None], (N, S, hd, hd))
    return feats.astype(jnp.float32), rotator


def encode_scope(params, scope_asts, scope_sort, use_pallas=True):
    feats, rot = token_embedding(params, scope_asts["tokens"])
    num_trees = scope_asts["tokens"].shape[0]
    scope_reprs = jnp.zeros((num_trees, params["dim"]), jnp.float32)

    sort_np = np.asarray(scope_sort)
    tokens_np = np.asarray(scope_asts["tokens"])
    pad_np = np.asarray(scope_asts["padding_mask"])
    ref_np = np.asarray(scope_asts["reference_mask"])

    for rank in np.unique(sort_np):                       # sorted unique ranks
        idx = np.nonzero(sort_np == rank)[0]
        jidx = jnp.asarray(idx)
        pm = pad_np[idx]
        max_seq_len = int(pm.sum(-1).max())
        ref_ids = tokens_np[idx][ref_np[idx]][:, 1]
        reprs = term_encoder_forward(
            params,
            dense_feats=feats[jidx][:, :max_seq_len],
            padding_mask=pm[:, :max_seq_len],
            reference_mask=ref_np[idx][:, :max_seq_len],
            reference_ids=ref_ids,
            reference_storage=scope_reprs,
            rotator=rot[jidx][:, :max_seq_len],
            use_pallas=use_pallas,
        )
        scope_reprs = scope_reprs.at[jidx].set(reprs)
    return scope_reprs


def encode_holes(params, scope_reprs, hole_asts, use_pallas=True):
    feats, rot = token_embedding(params, hole_asts["tokens"])
    tokens_np = np.asarray(hole_asts["tokens"])
    ref_np = np.asarray(hole_asts["reference_mask"])
    ref_ids = tokens_np[ref_np][:, 1]
    return term_encoder_forward(
        params,
        dense_feats=feats,
        padding_mask=np.asarray(hole_asts["padding_mask"]),
        reference_mask=ref_np,
        reference_ids=ref_ids,
        reference_storage=scope_reprs,
        rotator=rot,
        use_pallas=use_pallas,
    )


def file_encoder_forward(params, scope_asts, scope_sort, hole_asts, use_pallas=True):
    scope_reprs = encode_scope(params, scope_asts, scope_sort, use_pallas)
    hole_reprs = encode_holes(params, scope_reprs, hole_asts, use_pallas)
    return scope_reprs, hole_reprs


# -------------------------- parameter init --------------------------

def init_params(key, *, num_layers, num_heads, dim, head_dim, ffn_dim, vocab):
    keys = jax.random.split(key, 3 + num_layers)

    def dense(k, shape, scale=0.05):
        return scale * jax.random.normal(k, shape, jnp.float32)

    hdm = num_heads * head_dim
    two_hdm = 2 * hdm
    vw = max(ffn_dim, dim)
    wqkv, wo, w1, w2, vec = [], [], [], [], []
    for l in range(num_layers):
        lk = jax.random.split(keys[3 + l], 6)
        wqkv.append(jnp.concatenate([dense(lk[0], (dim, hdm)),
                                     dense(lk[1], (dim, hdm)),
                                     dense(lk[2], (dim, hdm))], axis=1))
        wo.append(dense(lk[3], (hdm, dim)))
        w1.append(dense(lk[4], (dim, ffn_dim)))
        w2.append(dense(lk[5], (ffn_dim, dim)))
        # packed small params; rows = [ln1_g, ln1_b, b1, b2, ln2_g, ln2_b, 0, 0]
        v = jnp.zeros((8, vw), jnp.float32)
        v = v.at[0, :dim].set(1.0)   # ln1_g
        v = v.at[4, :dim].set(1.0)   # ln2_g
        vec.append(v)

    # --- constant selection matrices for the fused rotation (folded into weights) ---
    # P[a, j*2hdm + c] = 1 iff a == (c // hd) * hd + j   (a, c in [0, 2*hdm), j in [0, hd))
    P = np.zeros((two_hdm, head_dim * two_hdm), np.float32)
    for j in range(head_dim):
        for c in range(two_hdm):
            P[(c // head_dim) * head_dim + j, j * two_hdm + c] = 1.0
    Pj = jnp.asarray(P)
    # Q[j*2hdm + c, c0] = 1 iff c == c0
    rot_q = jnp.asarray(np.tile(np.eye(two_hdm, dtype=np.float32), (head_dim, 1)))

    # per-layer fused weight: [Wqk @ P | Wv]  (D, hd*2hdm + hdm)
    w_big = []
    for l in range(num_layers):
        wqk = wqkv[l][:, :two_hdm]
        wv = wqkv[l][:, two_hdm:]
        w_big.append(jnp.concatenate([wqk @ Pj, wv], axis=1))

    return {
        "dim": dim,
        "num_heads": num_heads,
        "num_layers": num_layers,
        "ffn_dim": ffn_dim,
        "head_dim": head_dim,
        "tok_emb": dense(keys[0], (vocab, head_dim), 1.0),
        "emb_proj_w": dense(keys[1], (head_dim, dim)),
        "wqkv": jnp.stack(wqkv),       # kept for the pure-jnp reference path
        "wo": jnp.stack(wo),
        "w1": jnp.stack(w1),
        "w2": jnp.stack(w2),
        "vec": jnp.stack(vec),
        "w_big": jnp.stack(w_big),     # kernel path
        "rot_q": rot_q,                # kernel path
    }


# -------------------------- demo --------------------------

if __name__ == "__main__":
    key = jax.random.PRNGKey(0)
    pkey, tkey, hkey = jax.random.split(key, 3)
    params = init_params(pkey, num_layers=NUM_LAYERS, num_heads=NUM_HEADS,
                         dim=DIM, head_dim=HEAD_DIM, ffn_dim=FFN_DIM, vocab=VOCAB)

    S = 8
    num_scope, num_holes = 3, 2

    # np.array(...) makes WRITABLE host copies (np.asarray of a jax array is read-only)
    scope_tokens = np.array(
        jax.random.randint(tkey, (num_scope, S, 2), 1, VOCAB), dtype=np.int32)
    scope_lengths = np.array([8, 6, 7])
    scope_padding = np.arange(S)[None, :] < scope_lengths[:, None]
    scope_refmask = np.zeros((num_scope, S), bool)
    # scope tree 2 (rank 1) references scope trees 0 and 1 (already encoded)
    scope_refmask[2, 2] = True; scope_tokens[2, 2, 1] = 0
    scope_refmask[2, 4] = True; scope_tokens[2, 4, 1] = 1
    scope_sort = np.array([0, 0, 1])
    scope_asts = {"tokens": scope_tokens, "padding_mask": scope_padding,
                  "reference_mask": scope_refmask}

    hole_tokens = np.array(
        jax.random.randint(hkey, (num_holes, S, 2), 1, VOCAB), dtype=np.int32)
    hole_lengths = np.array([8, 5])
    hole_padding = np.arange(S)[None, :] < hole_lengths[:, None]
    hole_refmask = np.zeros((num_holes, S), bool)
    hole_refmask[0, 3] = True; hole_tokens[0, 3, 1] = 2
    hole_refmask[1, 1] = True; hole_tokens[1, 1, 1] = 0
    hole_asts = {"tokens": hole_tokens, "padding_mask": hole_padding,
                 "reference_mask": hole_refmask}

    scope_reprs, hole_reprs = file_encoder_forward(
        params, scope_asts, scope_sort, hole_asts, use_pallas=True)
    jax.block_until_ready((scope_reprs, hole_reprs))

    # validate against a pure-jnp reference of the same forward pass
    scope_ref, hole_ref = file_encoder_forward(
        params, scope_asts, scope_sort, hole_asts, use_pallas=False)
    jax.block_until_ready((scope_ref, hole_ref))

    assert scope_reprs.shape == (num_scope, DIM)
    assert hole_reprs.shape == (num_holes, DIM)
    assert np.all(np.isfinite(np.asarray(scope_reprs)))
    assert np.all(np.isfinite(np.asarray(hole_reprs)))
    np.testing.assert_allclose(np.asarray(scope_reprs), np.asarray(scope_ref),
                               rtol=5e-2, atol=5e-2)
    np.testing.assert_allclose(np.asarray(hole_reprs), np.asarray(hole_ref),
                               rtol=5e-2, atol=5e-2)
    print("KERNEL_OK")
</pallas_src>

<mosaic_0001>
module attributes {stable_mosaic.version = 11 : i64} {
  func.func @_fused_term_encoder_kernel(%arg0: i32, %arg1: memref<1x8x41xf32, #tpu.memory_space<vmem>>, %arg2: memref<1x8x512xf32, #tpu.memory_space<vmem>>, %arg3: memref<1x1x8xf32, #tpu.memory_space<vmem>>, %arg4: memref<8x32xf32, #tpu.memory_space<vmem>>, %arg5: memref<2x32x544xf32, #tpu.memory_space<vmem>>, %arg6: memref<2x32x32xf32, #tpu.memory_space<vmem>>, %arg7: memref<2x32x128xf32, #tpu.memory_space<vmem>>, %arg8: memref<2x128x32xf32, #tpu.memory_space<vmem>>, %arg9: memref<2x8x128xf32, #tpu.memory_space<vmem>>, %arg10: memref<512x64xf32, #tpu.memory_space<vmem>>, %arg11: memref<1x1x32xf32, #tpu.memory_space<vmem>>) attributes {dimension_semantics = [#tpu.dimension_semantics<parallel>], iteration_bounds = array<i64: 2>, scalar_prefetch = 0 : i64, scratch_operands = 0 : i64, tpu.core_type = #tpu.core_type<tc>, window_params = [{transform_indices = @transform_0, window_bounds = array<i64: 1, 8, 41>}, {transform_indices = @transform_1, window_bounds = array<i64: 1, 8, 512>}, {transform_indices = @transform_2, window_bounds = array<i64: 1, 1, 8>}, {pipeline_mode = #tpu.pipeline_mode<synchronous>, transform_indices = @transform_3, window_bounds = array<i64: 8, 32>}, {pipeline_mode = #tpu.pipeline_mode<synchronous>, transform_indices = @transform_4, window_bounds = array<i64: 2, 32, 544>}, {pipeline_mode = #tpu.pipeline_mode<synchronous>, transform_indices = @transform_5, window_bounds = array<i64: 2, 32, 32>}, {pipeline_mode = #tpu.pipeline_mode<synchronous>, transform_indices = @transform_6, window_bounds = array<i64: 2, 32, 128>}, {pipeline_mode = #tpu.pipeline_mode<synchronous>, transform_indices = @transform_7, window_bounds = array<i64: 2, 128, 32>}, {pipeline_mode = #tpu.pipeline_mode<synchronous>, transform_indices = @transform_8, window_bounds = array<i64: 2, 8, 128>}, {pipeline_mode = #tpu.pipeline_mode<synchronous>, transform_indices = @transform_9, window_bounds = array<i64: 512, 64>}, {transform_indices = @transform_10, window_bounds = array<i64: 1, 1, 32>}]} {
    %c0 = arith.constant 0 : index
    %c0_0 = arith.constant 0 : index
    %c0_1 = arith.constant 0 : index
    %0 = vector.load %arg1[%c0, %c0_0, %c0_1] : memref<1x8x41xf32, #tpu.memory_space<vmem>>, vector<1x8x41xf32>
    %1 = vector.shape_cast %0 : vector<1x8x41xf32> to vector<8x41xf32>
    %2 = vector.extract_strided_slice %1 {offsets = [0, 0], sizes = [8, 8], strides = [1, 1]} : vector<8x41xf32> to vector<8x8xf32>
    %3 = vector.extract_strided_slice %1 {offsets = [0, 8], sizes = [8, 32], strides = [1, 1]} : vector<8x41xf32> to vector<8x32xf32>
    %4 = vector.extract_strided_slice %1 {offsets = [0, 40], sizes = [8, 1], strides = [1, 1]} : vector<8x41xf32> to vector<8x1xf32>
    %c0_2 = arith.constant 0 : index
    %c0_3 = arith.constant 0 : index
    %c0_4 = arith.constant 0 : index
    %5 = vector.load %arg2[%c0_2, %c0_3, %c0_4] : memref<1x8x512xf32, #tpu.memory_space<vmem>>, vector<1x8x512xf32>
    %6 = vector.shape_cast %5 : vector<1x8x512xf32> to vector<8x512xf32>
    %c0_5 = arith.constant 0 : index
    %c0_6 = arith.constant 0 : index
    %c0_7 = arith.constant 0 : index
    %7 = vector.load %arg3[%c0_5, %c0_6, %c0_7] : memref<1x1x8xf32, #tpu.memory_space<vmem>>, vector<1x1x8xf32>
    %8 = vector.shape_cast %7 : vector<1x1x8xf32> to vector<1x8xf32>
    %c0_8 = arith.constant 0 : index
    %c0_9 = arith.constant 0 : index
    %9 = vector.load %arg10[%c0_8, %c0_9] : memref<512x64xf32, #tpu.memory_space<vmem>>, vector<512x64xf32>
    %c0_10 = arith.constant 0 : index
    %c0_11 = arith.constant 0 : index
    %10 = vector.load %arg4[%c0_10, %c0_11] : memref<8x32xf32, #tpu.memory_space<vmem>>, vector<8x32xf32>
    %cst = arith.constant dense<0.000000e+00> : vector<8x32xf32>
    %11 = tpu.matmul %2, %10, %cst {dimension_numbers = #tpu.dot_dimension_numbers<[1], [0], [0], [1], [0, 0, 1, 1], [], []>} : vector<8x8xf32>, vector<8x32xf32>, vector<8x32xf32> -> vector<8x32xf32>
    %cst_12 = arith.constant 1.000000e+00 : f32
    %12 = vector.broadcast %cst_12 : f32 to vector<8x1xf32>
    %13 = arith.subf %12, %4 : vector<8x1xf32>
    %14 = vector.broadcast %13 : vector<8x1xf32> to vector<8x32xf32>
    %15 = arith.mulf %11, %14 : vector<8x32xf32>
    %16 = vector.broadcast %4 : vector<8x1xf32> to vector<8x32xf32>
    %17 = arith.mulf %3, %16 : vector<8x32xf32>
    %18 = arith.addf %15, %17 : vector<8x32xf32>
    %c0_13 = arith.constant 0 : index
    %c0_14 = arith.constant 0 : index
    %c0_15 = arith.constant 0 : index
    %19 = vector.load %arg5[%c0_13, %c0_14, %c0_15] : memref<2x32x544xf32, #tpu.memory_space<vmem>>, vector<1x32x544xf32>
    %20 = vector.shape_cast %19 : vector<1x32x544xf32> to vector<32x544xf32>
    %c0_16 = arith.constant 0 : index
    %c0_17 = arith.constant 0 : index
    %c0_18 = arith.constant 0 : index
    %21 = vector.load %arg6[%c0_16, %c0_17, %c0_18] : memref<2x32x32xf32, #tpu.memory_space<vmem>>, vector<1x32x32xf32>
    %22 = vector.shape_cast %21 : vector<1x32x32xf32> to vector<32x32xf32>
    %c0_19 = arith.constant 0 : index
    %c0_20 = arith.constant 0 : index
    %c0_21 = arith.constant 0 : index
    %23 = vector.load %arg7[%c0_19, %c0_20, %c0_21] : memref<2x32x128xf32, #tpu.memory_space<vmem>>, vector<1x32x128xf32>
    %24 = vector.shape_cast %23 : vector<1x32x128xf32> to vector<32x128xf32>
    %c0_22 = arith.constant 0 : index
    %c0_23 = arith.constant 0 : index
    %c0_24 = arith.constant 0 : index
    %25 = vector.load %arg8[%c0_22, %c0_23, %c0_24] : memref<2x128x32xf32, #tpu.memory_space<vmem>>, vector<1x128x32xf32>
    %26 = vector.shape_cast %25 : vector<1x128x32xf32> to vector<128x32xf32>
    %c0_25 = arith.constant 0 : index
    %c0_26 = arith.constant 0 : index
    %c0_27 = arith.constant 0 : index
    %27 = vector.load %arg9[%c0_25, %c0_26, %c0_27] : memref<2x8x128xf32, #tpu.memory_space<vmem>>, vector<1x8x128xf32>
    %28 = vector.shape_cast %27 : vector<1x8x128xf32> to vector<8x128xf32>
    %29 = vector.extract_strided_slice %28 {offsets = [0, 0], sizes = [1, 32], strides = [1, 1]} : vector<8x128xf32> to vector<1x32xf32>
    %30 = vector.extract_strided_slice %28 {offsets = [1, 0], sizes = [1, 32], strides = [1, 1]} : vector<8x128xf32> to vector<1x32xf32>
    %31 = vector.extract_strided_slice %28 {offsets = [2, 0], sizes = [1, 128], strides = [1, 1]} : vector<8x128xf32> to vector<1x128xf32>
    %32 = vector.extract_strided_slice %28 {offsets = [3, 0], sizes = [1, 32], strides = [1, 1]} : vector<8x128xf32> to vector<1x32xf32>
    %33 = vector.extract_strided_slice %28 {offsets = [4, 0], sizes = [1, 32], strides = [1, 1]} : vector<8x128xf32> to vector<1x32xf32>
    %34 = vector.extract_strided_slice %28 {offsets = [5, 0], sizes = [1, 32], strides = [1, 1]} : vector<8x128xf32> to vector<1x32xf32>
    %cst_28 = arith.constant dense<0.000000e+00> : vector<8x544xf32>
    %35 = tpu.matmul %18, %20, %cst_28 {dimension_numbers = #tpu.dot_dimension_numbers<[1], [0], [0], [1], [0, 0, 1, 1], [], []>} : vector<8x32xf32>, vector<32x544xf32>, vector<8x544xf32> -> vector<8x544xf32>
    %36 = vector.extract_strided_slice %35 {offsets = [0, 0], sizes = [8, 512], strides = [1, 1]} : vector<8x544xf32> to vector<8x512xf32>
    %37 = vector.extract_strided_slice %35 {offsets = [0, 512], sizes = [8, 32], strides = [1, 1]} : vector<8x544xf32> to vector<8x32xf32>
    %38 = arith.mulf %36, %6 : vector<8x512xf32>
    %cst_29 = arith.constant dense<0.000000e+00> : vector<8x64xf32>
    %39 = tpu.matmul %38, %9, %cst_29 {dimension_numbers = #tpu.dot_dimension_numbers<[1], [0], [0], [1], [0, 0, 1, 1], [], []>} : vector<8x512xf32>, vector<512x64xf32>, vector<8x64xf32> -> vector<8x64xf32>
    %40 = vector.extract_strided_slice %39 {offsets = [0, 0], sizes = [8, 32], strides = [1, 1]} : vector<8x64xf32> to vector<8x32xf32>
    %41 = vector.extract_strided_slice %39 {offsets = [0, 32], sizes = [8, 32], strides = [1, 1]} : vector<8x64xf32> to vector<8x32xf32>
    %42 = vector.extract_strided_slice %40 {offsets = [0, 0], sizes = [8, 8], strides = [1, 1]} : vector<8x32xf32> to vector<8x8xf32>
    %43 = vector.extract_strided_slice %41 {offsets = [0, 0], sizes = [8, 8], strides = [1, 1]} : vector<8x32xf32> to vector<8x8xf32>
    %44 = vector.extract_strided_slice %37 {offsets = [0, 0], sizes = [8, 8], strides = [1, 1]} : vector<8x32xf32> to vector<8x8xf32>
    %cst_30 = arith.constant dense<0.000000e+00> : vector<8x8xf32>
    %45 = tpu.matmul %42, %43, %cst_30 {dimension_numbers = #tpu.dot_dimension_numbers<[1], [1], [0], [0], [0, 0, 1, 0], [], []>} : vector<8x8xf32>, vector<8x8xf32>, vector<8x8xf32> -> vector<8x8xf32>
    %cst_31 = arith.constant 0.353553385 : f32
    %46 = vector.broadcast %cst_31 : f32 to vector<8x8xf32>
    %47 = arith.mulf %45, %46 : vector<8x8xf32>
    %48 = vector.broadcast %8 : vector<1x8xf32> to vector<8x8xf32>
    %49 = arith.addf %47, %48 : vector<8x8xf32>
    %cst_32 = arith.constant dense<0xFF800000> : vector<8xf32>
    %50 = vector.multi_reduction <maximumf>, %49, %cst_32 [1] : vector<8x8xf32> to vector<8xf32>
    %51 = vector.shape_cast %50 : vector<8xf32> to vector<8x1xf32>
    %52 = vector.broadcast %51 : vector<8x1xf32> to vector<8x8xf32>
    %53 = arith.subf %49, %52 : vector<8x8xf32>
    %54 = math.exp %53 : vector<8x8xf32>
    %cst_33 = arith.constant dense<0.000000e+00> : vector<8xf32>
    %55 = vector.multi_reduction <add>, %54, %cst_33 [1] : vector<8x8xf32> to vector<8xf32>
    %56 = vector.shape_cast %55 : vector<8xf32> to vector<8x1xf32>
    %57 = tpu.reciprocal %56 {approx = true} : vector<8x1xf32> -> vector<8x1xf32>
    %58 = vector.broadcast %57 : vector<8x1xf32> to vector<8x8xf32>
    %59 = arith.mulf %54, %58 : vector<8x8xf32>
    %cst_34 = arith.constant dense<0.000000e+00> : vector<8x8xf32>
    %60 = tpu.matmul %59, %44, %cst_34 {dimension_numbers = #tpu.dot_dimension_numbers<[1], [0], [0], [1], [0, 0, 1, 1], [], []>} : vector<8x8xf32>, vector<8x8xf32>, vector<8x8xf32> -> vector<8x8xf32>
    %61 = vector.extract_strided_slice %40 {offsets = [0, 8], sizes = [8, 8], strides = [1, 1]} : vector<8x32xf32> to vector<8x8xf32>
    %62 = vector.extract_strided_slice %41 {offsets = [0, 8], sizes = [8, 8], strides = [1, 1]} : vector<8x32xf32> to vector<8x8xf32>
    %63 = vector.extract_strided_slice %37 {offsets = [0, 8], sizes = [8, 8], strides = [1, 1]} : vector<8x32xf32> to vector<8x8xf32>
    %cst_35 = arith.constant dense<0.000000e+00> : vector<8x8xf32>
    %64 = tpu.matmul %61, %62, %cst_35 {dimension_numbers = #tpu.dot_dimension_numbers<[1], [1], [0], [0], [0, 0, 1, 0], [], []>} : vector<8x8xf32>, vector<8x8xf32>, vector<8x8xf32> -> vector<8x8xf32>
    %cst_36 = arith.constant 0.353553385 : f32
    %65 = vector.broadcast %cst_36 : f32 to vector<8x8xf32>
    %66 = arith.mulf %64, %65 : vector<8x8xf32>
    %67 = vector.broadcast %8 : vector<1x8xf32> to vector<8x8xf32>
    %68 = arith.addf %66, %67 : vector<8x8xf32>
    %cst_37 = arith.constant dense<0xFF800000> : vector<8xf32>
    %69 = vector.multi_reduction <maximumf>, %68, %cst_37 [1] : vector<8x8xf32> to vector<8xf32>
    %70 = vector.shape_cast %69 : vector<8xf32> to vector<8x1xf32>
    %71 = vector.broadcast %70 : vector<8x1xf32> to vector<8x8xf32>
    %72 = arith.subf %68, %71 : vector<8x8xf32>
    %73 = math.exp %72 : vector<8x8xf32>
    %cst_38 = arith.constant dense<0.000000e+00> : vector<8xf32>
    %74 = vector.multi_reduction <add>, %73, %cst_38 [1] : vector<8x8xf32> to vector<8xf32>
    %75 = vector.shape_cast %74 : vector<8xf32> to vector<8x1xf32>
    %76 = tpu.reciprocal %75 {approx = true} : vector<8x1xf32> -> vector<8x1xf32>
    %77 = vector.broadcast %76 : vector<8x1xf32> to vector<8x8xf32>
    %78 = arith.mulf %73, %77 : vector<8x8xf32>
    %cst_39 = arith.constant dense<0.000000e+00> : vector<8x8xf32>
    %79 = tpu.matmul %78, %63, %cst_39 {dimension_numbers = #tpu.dot_dimension_numbers<[1], [0], [0], [1], [0, 0, 1, 1], [], []>} : vector<8x8xf32>, vector<8x8xf32>, vector<8x8xf32> -> vector<8x8xf32>
    %80 = vector.extract_strided_slice %40 {offsets = [0, 16], sizes = [8, 8], strides = [1, 1]} : vector<8x32xf32> to vector<8x8xf32>
    %81 = vector.extract_strided_slice %41 {offsets = [0, 16], sizes = [8, 8], strides = [1, 1]} : vector<8x32xf32> to vector<8x8xf32>
    %82 = vector.extract_strided_slice %37 {offsets = [0, 16], sizes = [8, 8], strides = [1, 1]} : vector<8x32xf32> to vector<8x8xf32>
    %cst_40 = arith.constant dense<0.000000e+00> : vector<8x8xf32>
    %83 = tpu.matmul %80, %81, %cst_40 {dimension_numbers = #tpu.dot_dimension_numbers<[1], [1], [0], [0], [0, 0, 1, 0], [], []>} : vector<8x8xf32>, vector<8x8xf32>, vector<8x8xf32> -> vector<8x8xf32>
    %cst_41 = arith.constant 0.353553385 : f32
    %84 = vector.broadcast %cst_41 : f32 to vector<8x8xf32>
    %85 = arith.mulf %83, %84 : vector<8x8xf32>
    %86 = vector.broadcast %8 : vector<1x8xf32> to vector<8x8xf32>
    %87 = arith.addf %85, %86 : vector<8x8xf32>
    %cst_42 = arith.constant dense<0xFF800000> : vector<8xf32>
    %88 = vector.multi_reduction <maximumf>, %87, %cst_42 [1] : vector<8x8xf32> to vector<8xf32>
    %89 = vector.shape_cast %88 : vector<8xf32> to vector<8x1xf32>
    %90 = vector.broadcast %89 : vector<8x1xf32> to vector<8x8xf32>
    %91 = arith.subf %87, %90 : vector<8x8xf32>
    %92 = math.exp %91 : vector<8x8xf32>
    %cst_43 = arith.constant dense<0.000000e+00> : vector<8xf32>
    %93 = vector.multi_reduction <add>, %92, %cst_43 [1] : vector<8x8xf32> to vector<8xf32>
    %94 = vector.shape_cast %93 : vector<8xf32> to vector<8x1xf32>
    %95 = tpu.reciprocal %94 {approx = true} : vector<8x1xf32> -> vector<8x1xf32>
    %96 = vector.broadcast %95 : vector<8x1xf32> to vector<8x8xf32>
    %97 = arith.mulf %92, %96 : vector<8x8xf32>
    %cst_44 = arith.constant dense<0.000000e+00> : vector<8x8xf32>
    %98 = tpu.matmul %97, %82, %cst_44 {dimension_numbers = #tpu.dot_dimension_numbers<[1], [0], [0], [1], [0, 0, 1, 1], [], []>} : vector<8x8xf32>, vector<8x8xf32>, vector<8x8xf32> -> vector<8x8xf32>
    %99 = vector.extract_strided_slice %40 {offsets = [0, 24], sizes = [8, 8], strides = [1, 1]} : vector<8x32xf32> to vector<8x8xf32>
    %100 = vector.extract_strided_slice %41 {offsets = [0, 24], sizes = [8, 8], strides = [1, 1]} : vector<8x32xf32> to vector<8x8xf32>
    %101 = vector.extract_strided_slice %37 {offsets = [0, 24], sizes = [8, 8], strides = [1, 1]} : vector<8x32xf32> to vector<8x8xf32>
    %cst_45 = arith.constant dense<0.000000e+00> : vector<8x8xf32>
    %102 = tpu.matmul %99, %100, %cst_45 {dimension_numbers = #tpu.dot_dimension_numbers<[1], [1], [0], [0], [0, 0, 1, 0], [], []>} : vector<8x8xf32>, vector<8x8xf32>, vector<8x8xf32> -> vector<8x8xf32>
    %cst_46 = arith.constant 0.353553385 : f32
    %103 = vector.broadcast %cst_46 : f32 to vector<8x8xf32>
    %104 = arith.mulf %102, %103 : vector<8x8xf32>
    %105 = vector.broadcast %8 : vector<1x8xf32> to vector<8x8xf32>
    %106 = arith.addf %104, %105 : vector<8x8xf32>
    %cst_47 = arith.constant dense<0xFF800000> : vector<8xf32>
    %107 = vector.multi_reduction <maximumf>, %106, %cst_47 [1] : vector<8x8xf32> to vector<8xf32>
    %108 = vector.shape_cast %107 : vector<8xf32> to vector<8x1xf32>
    %109 = vector.broadcast %108 : vector<8x1xf32> to vector<8x8xf32>
    %110 = arith.subf %106, %109 : vector<8x8xf32>
    %111 = math.exp %110 : vector<8x8xf32>
    %cst_48 = arith.constant dense<0.000000e+00> : vector<8xf32>
    %112 = vector.multi_reduction <add>, %111, %cst_48 [1] : vector<8x8xf32> to vector<8xf32>
    %113 = vector.shape_cast %112 : vector<8xf32> to vector<8x1xf32>
    %114 = tpu.reciprocal %113 {approx = true} : vector<8x1xf32> -> vector<8x1xf32>
    %115 = vector.broadcast %114 : vector<8x1xf32> to vector<8x8xf32>
    %116 = arith.mulf %111, %115 : vector<8x8xf32>
    %cst_49 = arith.constant dense<0.000000e+00> : vector<8x8xf32>
    %117 = tpu.matmul %116, %101, %cst_49 {dimension_numbers = #tpu.dot_dimension_numbers<[1], [0], [0], [1], [0, 0, 1, 1], [], []>} : vector<8x8xf32>, vector<8x8xf32>, vector<8x8xf32> -> vector<8x8xf32>
    %118 = tpu.concatenate %60, %79, %98, %117 in 1 : vector<8x8xf32>, vector<8x8xf32>, vector<8x8xf32>, vector<8x8xf32> -> vector<8x32xf32>
    %cst_50 = arith.constant dense<0.000000e+00> : vector<8x32xf32>
    %119 = tpu.matmul %118, %22, %cst_50 {dimension_numbers = #tpu.dot_dimension_numbers<[1], [0], [0], [1], [0, 0, 1, 1], [], []>} : vector<8x32xf32>, vector<32x32xf32>, vector<8x32xf32> -> vector<8x32xf32>
    %120 = arith.addf %18, %119 : vector<8x32xf32>
    %cst_51 = arith.constant dense<0.000000e+00> : vector<8xf32>
    %121 = vector.multi_reduction <add>, %120, %cst_51 [1] : vector<8x32xf32> to vector<8xf32>
    %122 = vector.shape_cast %121 : vector<8xf32> to vector<8x1xf32>
    %cst_52 = arith.constant 3.200000e+01 : f32
    %123 = vector.broadcast %cst_52 : f32 to vector<8x1xf32>
    %124 = arith.divf %122, %123 : vector<8x1xf32>
    %125 = vector.broadcast %124 : vector<8x1xf32> to vector<8x32xf32>
    %126 = arith.subf %120, %125 : vector<8x32xf32>
    %127 = arith.mulf %126, %126 : vector<8x32xf32>
    %cst_53 = arith.constant dense<0.000000e+00> : vector<8xf32>
    %128 = vector.multi_reduction <add>, %127, %cst_53 [1] : vector<8x32xf32> to vector<8xf32>
    %129 = vector.shape_cast %128 : vector<8xf32> to vector<8x1xf32>
    %cst_54 = arith.constant 3.200000e+01 : f32
    %130 = vector.broadcast %cst_54 : f32 to vector<8x1xf32>
    %131 = arith.divf %129, %130 : vector<8x1xf32>
    %132 = vector.broadcast %124 : vector<8x1xf32> to vector<8x32xf32>
    %133 = arith.subf %120, %132 : vector<8x32xf32>
    %cst_55 = arith.constant 9.99999974E-6 : f32
    %134 = vector.broadcast %cst_55 : f32 to vector<8x1xf32>
    %135 = arith.addf %131, %134 : vector<8x1xf32>
    %136 = math.rsqrt %135 : vector<8x1xf32>
    %137 = vector.broadcast %136 : vector<8x1xf32> to vector<8x32xf32>
    %138 = arith.mulf %133, %137 : vector<8x32xf32>
    %139 = vector.broadcast %29 : vector<1x32xf32> to vector<8x32xf32>
    %140 = arith.mulf %138, %139 : vector<8x32xf32>
    %141 = vector.broadcast %30 : vector<1x32xf32> to vector<8x32xf32>
    %142 = arith.addf %140, %141 : vector<8x32xf32>
    %cst_56 = arith.constant dense<0.000000e+00> : vector<8x128xf32>
    %143 = tpu.matmul %142, %24, %cst_56 {dimension_numbers = #tpu.dot_dimension_numbers<[1], [0], [0], [1], [0, 0, 1, 1], [], []>} : vector<8x32xf32>, vector<32x128xf32>, vector<8x128xf32> -> vector<8x128xf32>
    %144 = vector.broadcast %31 : vector<1x128xf32> to vector<8x128xf32>
    %145 = arith.addf %143, %144 : vector<8x128xf32>
    %cst_57 = arith.constant 0.000000e+00 : f32
    %146 = vector.broadcast %cst_57 : f32 to vector<8x128xf32>
    %147 = arith.maximumf %145, %146 : vector<8x128xf32>
    %cst_58 = arith.constant dense<0.000000e+00> : vector<8x32xf32>
    %148 = tpu.matmul %147, %26, %cst_58 {dimension_numbers = #tpu.dot_dimension_numbers<[1], [0], [0], [1], [0, 0, 1, 1], [], []>} : vector<8x128xf32>, vector<128x32xf32>, vector<8x32xf32> -> vector<8x32xf32>
    %149 = vector.broadcast %32 : vector<1x32xf32> to vector<8x32xf32>
    %150 = arith.addf %148, %149 : vector<8x32xf32>
    %151 = arith.addf %142, %150 : vector<8x32xf32>
    %cst_59 = arith.constant dense<0.000000e+00> : vector<8xf32>
    %152 = vector.multi_reduction <add>, %151, %cst_59 [1] : vector<8x32xf32> to vector<8xf32>
    %153 = vector.shape_cast %152 : vector<8xf32> to vector<8x1xf32>
    %cst_60 = arith.constant 3.200000e+01 : f32
    %154 = vector.broadcast %cst_60 : f32 to vector<8x1xf32>
    %155 = arith.divf %153, %154 : vector<8x1xf32>
    %156 = vector.broadcast %155 : vector<8x1xf32> to vector<8x32xf32>
    %157 = arith.subf %151, %156 : vector<8x32xf32>
    %158 = arith.mulf %157, %157 : vector<8x32xf32>
    %cst_61 = arith.constant dense<0.000000e+00> : vector<8xf32>
    %159 = vector.multi_reduction <add>, %158, %cst_61 [1] : vector<8x32xf32> to vector<8xf32>
    %160 = vector.shape_cast %159 : vector<8xf32> to vector<8x1xf32>
    %cst_62 = arith.constant 3.200000e+01 : f32
    %161 = vector.broadcast %cst_62 : f32 to vector<8x1xf32>
    %162 = arith.divf %160, %161 : vector<8x1xf32>
    %163 = vector.broadcast %155 : vector<8x1xf32> to vector<8x32xf32>
    %164 = arith.subf %151, %163 : vector<8x32xf32>
    %cst_63 = arith.constant 9.99999974E-6 : f32
    %165 = vector.broadcast %cst_63 : f32 to vector<8x1xf32>
    %166 = arith.addf %162, %165 : vector<8x1xf32>
    %167 = math.rsqrt %166 : vector<8x1xf32>
    %168 = vector.broadcast %167 : vector<8x1xf32> to vector<8x32xf32>
    %169 = arith.mulf %164, %168 : vector<8x32xf32>
    %170 = vector.broadcast %33 : vector<1x32xf32> to vector<8x32xf32>
    %171 = arith.mulf %169, %170 : vector<8x32xf32>
    %172 = vector.broadcast %34 : vector<1x32xf32> to vector<8x32xf32>
    %173 = arith.addf %171, %172 : vector<8x32xf32>
    %c1 = arith.constant 1 : index
    %c0_64 = arith.constant 0 : index
    %c0_65 = arith.constant 0 : index
    %174 = vector.load %arg5[%c1, %c0_64, %c0_65] : memref<2x32x544xf32, #tpu.memory_space<vmem>>, vector<1x32x544xf32>
    %175 = vector.shape_cast %174 : vector<1x32x544xf32> to vector<32x544xf32>
    %c1_66 = arith.constant 1 : index
    %c0_67 = arith.constant 0 : index
    %c0_68 = arith.constant 0 : index
    %176 = vector.load %arg6[%c1_66, %c0_67, %c0_68] : memref<2x32x32xf32, #tpu.memory_space<vmem>>, vector<1x32x32xf32>
    %177 = vector.shape_cast %176 : vector<1x32x32xf32> to vector<32x32xf32>
    %c1_69 = arith.constant 1 : index
    %c0_70 = arith.constant 0 : index
    %c0_71 = arith.constant 0 : index
    %178 = vector.load %arg7[%c1_69, %c0_70, %c0_71] : memref<2x32x128xf32, #tpu.memory_space<vmem>>, vector<1x32x128xf32>
    %179 = vector.shape_cast %178 : vector<1x32x128xf32> to vector<32x128xf32>
    %c1_72 = arith.constant 1 : index
    %c0_73 = arith.constant 0 : index
    %c0_74 = arith.constant 0 : index
    %180 = vector.load %arg8[%c1_72, %c0_73, %c0_74] : memref<2x128x32xf32, #tpu.memory_space<vmem>>, vector<1x128x32xf32>
    %181 = vector.shape_cast %180 : vector<1x128x32xf32> to vector<128x32xf32>
    %c1_75 = arith.constant 1 : index
    %c0_76 = arith.constant 0 : index
    %c0_77 = arith.constant 0 : index
    %182 = vector.load %arg9[%c1_75, %c0_76, %c0_77] : memref<2x8x128xf32, #tpu.memory_space<vmem>>, vector<1x8x128xf32>
    %183 = vector.shape_cast %182 : vector<1x8x128xf32> to vector<8x128xf32>
    %184 = vector.extract_strided_slice %183 {offsets = [0, 0], sizes = [1, 32], strides = [1, 1]} : vector<8x128xf32> to vector<1x32xf32>
    %185 = vector.extract_strided_slice %183 {offsets = [1, 0], sizes = [1, 32], strides = [1, 1]} : vector<8x128xf32> to vector<1x32xf32>
    %186 = vector.extract_strided_slice %183 {offsets = [2, 0], sizes = [1, 128], strides = [1, 1]} : vector<8x128xf32> to vector<1x128xf32>
    %187 = vector.extract_strided_slice %183 {offsets = [3, 0], sizes = [1, 32], strides = [1, 1]} : vector<8x128xf32> to vector<1x32xf32>
    %188 = vector.extract_strided_slice %183 {offsets = [4, 0], sizes = [1, 32], strides = [1, 1]} : vector<8x128xf32> to vector<1x32xf32>
    %189 = vector.extract_strided_slice %183 {offsets = [5, 0], sizes = [1, 32], strides = [1, 1]} : vector<8x128xf32> to vector<1x32xf32>
    %cst_78 = arith.constant dense<0.000000e+00> : vector<8x544xf32>
    %190 = tpu.matmul %173, %175, %cst_78 {dimension_numbers = #tpu.dot_dimension_numbers<[1], [0], [0], [1], [0, 0, 1, 1], [], []>} : vector<8x32xf32>, vector<32x544xf32>, vector<8x544xf32> -> vector<8x544xf32>
    %191 = vector.extract_strided_slice %190 {offsets = [0, 0], sizes = [8, 512], strides = [1, 1]} : vector<8x544xf32> to vector<8x512xf32>
    %192 = vector.extract_strided_slice %190 {offsets = [0, 512], sizes = [8, 32], strides = [1, 1]} : vector<8x544xf32> to vector<8x32xf32>
    %193 = arith.mulf %191, %6 : vector<8x512xf32>
    %cst_79 = arith.constant dense<0.000000e+00> : vector<8x64xf32>
    %194 = tpu.matmul %193, %9, %cst_79 {dimension_numbers = #tpu.dot_dimension_numbers<[1], [0], [0], [1], [0, 0, 1, 1], [], []>} : vector<8x512xf32>, vector<512x64xf32>, vector<8x64xf32> -> vector<8x64xf32>
    %195 = vector.extract_strided_slice %194 {offsets = [0, 0], sizes = [8, 32], strides = [1, 1]} : vector<8x64xf32> to vector<8x32xf32>
    %196 = vector.extract_strided_slice %194 {offsets = [0, 32], sizes = [8, 32], strides = [1, 1]} : vector<8x64xf32> to vector<8x32xf32>
    %197 = vector.extract_strided_slice %195 {offsets = [0, 0], sizes = [8, 8], strides = [1, 1]} : vector<8x32xf32> to vector<8x8xf32>
    %198 = vector.extract_strided_slice %196 {offsets = [0, 0], sizes = [8, 8], strides = [1, 1]} : vector<8x32xf32> to vector<8x8xf32>
    %199 = vector.extract_strided_slice %192 {offsets = [0, 0], sizes = [8, 8], strides = [1, 1]} : vector<8x32xf32> to vector<8x8xf32>
    %cst_80 = arith.constant dense<0.000000e+00> : vector<8x8xf32>
    %200 = tpu.matmul %197, %198, %cst_80 {dimension_numbers = #tpu.dot_dimension_numbers<[1], [1], [0], [0], [0, 0, 1, 0], [], []>} : vector<8x8xf32>, vector<8x8xf32>, vector<8x8xf32> -> vector<8x8xf32>
    %cst_81 = arith.constant 0.353553385 : f32
    %201 = vector.broadcast %cst_81 : f32 to vector<8x8xf32>
    %202 = arith.mulf %200, %201 : vector<8x8xf32>
    %203 = vector.broadcast %8 : vector<1x8xf32> to vector<8x8xf32>
    %204 = arith.addf %202, %203 : vector<8x8xf32>
    %cst_82 = arith.constant dense<0xFF800000> : vector<8xf32>
    %205 = vector.multi_reduction <maximumf>, %204, %cst_82 [1] : vector<8x8xf32> to vector<8xf32>
    %206 = vector.shape_cast %205 : vector<8xf32> to vector<8x1xf32>
    %207 = vector.broadcast %206 : vector<8x1xf32> to vector<8x8xf32>
    %208 = arith.subf %204, %207 : vector<8x8xf32>
    %209 = math.exp %208 : vector<8x8xf32>
    %cst_83 = arith.constant dense<0.000000e+00> : vector<8xf32>
    %210 = vector.multi_reduction <add>, %209, %cst_83 [1] : vector<8x8xf32> to vector<8xf32>
    %211 = vector.shape_cast %210 : vector<8xf32> to vector<8x1xf32>
    %212 = tpu.reciprocal %211 {approx = true} : vector<8x1xf32> -> vector<8x1xf32>
    %213 = vector.broadcast %212 : vector<8x1xf32> to vector<8x8xf32>
    %214 = arith.mulf %209, %213 : vector<8x8xf32>
    %cst_84 = arith.constant dense<0.000000e+00> : vector<8x8xf32>
    %215 = tpu.matmul %214, %199, %cst_84 {dimension_numbers = #tpu.dot_dimension_numbers<[1], [0], [0], [1], [0, 0, 1, 1], [], []>} : vector<8x8xf32>, vector<8x8xf32>, vector<8x8xf32> -> vector<8x8xf32>
    %216 = vector.extract_strided_slice %195 {offsets = [0, 8], sizes = [8, 8], strides = [1, 1]} : vector<8x32xf32> to vector<8x8xf32>
    %217 = vector.extract_strided_slice %196 {offsets = [0, 8], sizes = [8, 8], strides = [1, 1]} : vector<8x32xf32> to vector<8x8xf32>
    %218 = vector.extract_strided_slice %192 {offsets = [0, 8], sizes = [8, 8], strides = [1, 1]} : vector<8x32xf32> to vector<8x8xf32>
    %cst_85 = arith.constant dense<0.000000e+00> : vector<8x8xf32>
    %219 = tpu.matmul %216, %217, %cst_85 {dimension_numbers = #tpu.dot_dimension_numbers<[1], [1], [0], [0], [0, 0, 1, 0], [], []>} : vector<8x8xf32>, vector<8x8xf32>, vector<8x8xf32> -> vector<8x8xf32>
    %cst_86 = arith.constant 0.353553385 : f32
    %220 = vector.broadcast %cst_86 : f32 to vector<8x8xf32>
    %221 = arith.mulf %219, %220 : vector<8x8xf32>
    %222 = vector.broadcast %8 : vector<1x8xf32> to vector<8x8xf32>
    %223 = arith.addf %221, %222 : vector<8x8xf32>
    %cst_87 = arith.constant dense<0xFF800000> : vector<8xf32>
    %224 = vector.multi_reduction <maximumf>, %223, %cst_87 [1] : vector<8x8xf32> to vector<8xf32>
    %225 = vector.shape_cast %224 : vector<8xf32> to vector<8x1xf32>
    %226 = vector.broadcast %225 : vector<8x1xf32> to vector<8x8xf32>
    %227 = arith.subf %223, %226 : vector<8x8xf32>
    %228 = math.exp %227 : vector<8x8xf32>
    %cst_88 = arith.constant dense<0.000000e+00> : vector<8xf32>
    %229 = vector.multi_reduction <add>, %228, %cst_88 [1] : vector<8x8xf32> to vector<8xf32>
    %230 = vector.shape_cast %229 : vector<8xf32> to vector<8x1xf32>
    %231 = tpu.reciprocal %230 {approx = true} : vector<8x1xf32> -> vector<8x1xf32>
    %232 = vector.broadcast %231 : vector<8x1xf32> to vector<8x8xf32>
    %233 = arith.mulf %228, %232 : vector<8x8xf32>
    %cst_89 = arith.constant dense<0.000000e+00> : vector<8x8xf32>
    %234 = tpu.matmul %233, %218, %cst_89 {dimension_numbers = #tpu.dot_dimension_numbers<[1], [0], [0], [1], [0, 0, 1, 1], [], []>} : vector<8x8xf32>, vector<8x8xf32>, vector<8x8xf32> -> vector<8x8xf32>
    %235 = vector.extract_strided_slice %195 {offsets = [0, 16], sizes = [8, 8], strides = [1, 1]} : vector<8x32xf32> to vector<8x8xf32>
    %236 = vector.extract_strided_slice %196 {offsets = [0, 16], sizes = [8, 8], strides = [1, 1]} : vector<8x32xf32> to vector<8x8xf32>
    %237 = vector.extract_strided_slice %192 {offsets = [0, 16], sizes = [8, 8], strides = [1, 1]} : vector<8x32xf32> to vector<8x8xf32>
    %cst_90 = arith.constant dense<0.000000e+00> : vector<8x8xf32>
    %238 = tpu.matmul %235, %236, %cst_90 {dimension_numbers = #tpu.dot_dimension_numbers<[1], [1], [0], [0], [0, 0, 1, 0], [], []>} : vector<8x8xf32>, vector<8x8xf32>, vector<8x8xf32> -> vector<8x8xf32>
    %cst_91 = arith.constant 0.353553385 : f32
    %239 = vector.broadcast %cst_91 : f32 to vector<8x8xf32>
    %240 = arith.mulf %238, %239 : vector<8x8xf32>
    %241 = vector.broadcast %8 : vector<1x8xf32> to vector<8x8xf32>
    %242 = arith.addf %240, %241 : vector<8x8xf32>
    %cst_92 = arith.constant dense<0xFF800000> : vector<8xf32>
    %243 = vector.multi_reduction <maximumf>, %242, %cst_92 [1] : vector<8x8xf32> to vector<8xf32>
    %244 = vector.shape_cast %243 : vector<8xf32> to vector<8x1xf32>
    %245 = vector.broadcast %244 : vector<8x1xf32> to vector<8x8xf32>
    %246 = arith.subf %242, %245 : vector<8x8xf32>
    %247 = math.exp %246 : vector<8x8xf32>
    %cst_93 = arith.constant dense<0.000000e+00> : vector<8xf32>
    %248 = vector.multi_reduction <add>, %247, %cst_93 [1] : vector<8x8xf32> to vector<8xf32>
    %249 = vector.shape_cast %248 : vector<8xf32> to vector<8x1xf32>
    %250 = tpu.reciprocal %249 {approx = true} : vector<8x1xf32> -> vector<8x1xf32>
    %251 = vector.broadcast %250 : vector<8x1xf32> to vector<8x8xf32>
    %252 = arith.mulf %247, %251 : vector<8x8xf32>
    %cst_94 = arith.constant dense<0.000000e+00> : vector<8x8xf32>
    %253 = tpu.matmul %252, %237, %cst_94 {dimension_numbers = #tpu.dot_dimension_numbers<[1], [0], [0], [1], [0, 0, 1, 1], [], []>} : vector<8x8xf32>, vector<8x8xf32>, vector<8x8xf32> -> vector<8x8xf32>
    %254 = vector.extract_strided_slice %195 {offsets = [0, 24], sizes = [8, 8], strides = [1, 1]} : vector<8x32xf32> to vector<8x8xf32>
    %255 = vector.extract_strided_slice %196 {offsets = [0, 24], sizes = [8, 8], strides = [1, 1]} : vector<8x32xf32> to vector<8x8xf32>
    %256 = vector.extract_strided_slice %192 {offsets = [0, 24], sizes = [8, 8], strides = [1, 1]} : vector<8x32xf32> to vector<8x8xf32>
    %cst_95 = arith.constant dense<0.000000e+00> : vector<8x8xf32>
    %257 = tpu.matmul %254, %255, %cst_95 {dimension_numbers = #tpu.dot_dimension_numbers<[1], [1], [0], [0], [0, 0, 1, 0], [], []>} : vector<8x8xf32>, vector<8x8xf32>, vector<8x8xf32> -> vector<8x8xf32>
    %cst_96 = arith.constant 0.353553385 : f32
    %258 = vector.broadcast %cst_96 : f32 to vector<8x8xf32>
    %259 = arith.mulf %257, %258 : vector<8x8xf32>
    %260 = vector.broadcast %8 : vector<1x8xf32> to vector<8x8xf32>
    %261 = arith.addf %259, %260 : vector<8x8xf32>
    %cst_97 = arith.constant dense<0xFF800000> : vector<8xf32>
    %262 = vector.multi_reduction <maximumf>, %261, %cst_97 [1] : vector<8x8xf32> to vector<8xf32>
    %263 = vector.shape_cast %262 : vector<8xf32> to vector<8x1xf32>
    %264 = vector.broadcast %263 : vector<8x1xf32> to vector<8x8xf32>
    %265 = arith.subf %261, %264 : vector<8x8xf32>
    %266 = math.exp %265 : vector<8x8xf32>
    %cst_98 = arith.constant dense<0.000000e+00> : vector<8xf32>
    %267 = vector.multi_reduction <add>, %266, %cst_98 [1] : vector<8x8xf32> to vector<8xf32>
    %268 = vector.shape_cast %267 : vector<8xf32> to vector<8x1xf32>
    %269 = tpu.reciprocal %268 {approx = true} : vector<8x1xf32> -> vector<8x1xf32>
    %270 = vector.broadcast %269 : vector<8x1xf32> to vector<8x8xf32>
    %271 = arith.mulf %266, %270 : vector<8x8xf32>
    %cst_99 = arith.constant dense<0.000000e+00> : vector<8x8xf32>
    %272 = tpu.matmul %271, %256, %cst_99 {dimension_numbers = #tpu.dot_dimension_numbers<[1], [0], [0], [1], [0, 0, 1, 1], [], []>} : vector<8x8xf32>, vector<8x8xf32>, vector<8x8xf32> -> vector<8x8xf32>
    %273 = tpu.concatenate %215, %234, %253, %272 in 1 : vector<8x8xf32>, vector<8x8xf32>, vector<8x8xf32>, vector<8x8xf32> -> vector<8x32xf32>
    %cst_100 = arith.constant dense<0.000000e+00> : vector<8x32xf32>
    %274 = tpu.matmul %273, %177, %cst_100 {dimension_numbers = #tpu.dot_dimension_numbers<[1], [0], [0], [1], [0, 0, 1, 1], [], []>} : vector<8x32xf32>, vector<32x32xf32>, vector<8x32xf32> -> vector<8x32xf32>
    %275 = arith.addf %173, %274 : vector<8x32xf32>
    %cst_101 = arith.constant dense<0.000000e+00> : vector<8xf32>
    %276 = vector.multi_reduction <add>, %275, %cst_101 [1] : vector<8x32xf32> to vector<8xf32>
    %277 = vector.shape_cast %276 : vector<8xf32> to vector<8x1xf32>
    %cst_102 = arith.constant 3.200000e+01 : f32
    %278 = vector.broadcast %cst_102 : f32 to vector<8x1xf32>
    %279 = arith.divf %277, %278 : vector<8x1xf32>
    %280 = vector.broadcast %279 : vector<8x1xf32> to vector<8x32xf32>
    %281 = arith.subf %275, %280 : vector<8x32xf32>
    %282 = arith.mulf %281, %281 : vector<8x32xf32>
    %cst_103 = arith.constant dense<0.000000e+00> : vector<8xf32>
    %283 = vector.multi_reduction <add>, %282, %cst_103 [1] : vector<8x32xf32> to vector<8xf32>
    %284 = vector.shape_cast %283 : vector<8xf32> to vector<8x1xf32>
    %cst_104 = arith.constant 3.200000e+01 : f32
    %285 = vector.broadcast %cst_104 : f32 to vector<8x1xf32>
    %286 = arith.divf %284, %285 : vector<8x1xf32>
    %287 = vector.broadcast %279 : vector<8x1xf32> to vector<8x32xf32>
    %288 = arith.subf %275, %287 : vector<8x32xf32>
    %cst_105 = arith.constant 9.99999974E-6 : f32
    %289 = vector.broadcast %cst_105 : f32 to vector<8x1xf32>
    %290 = arith.addf %286, %289 : vector<8x1xf32>
    %291 = math.rsqrt %290 : vector<8x1xf32>
    %292 = vector.broadcast %291 : vector<8x1xf32> to vector<8x32xf32>
    %293 = arith.mulf %288, %292 : vector<8x32xf32>
    %294 = vector.broadcast %184 : vector<1x32xf32> to vector<8x32xf32>
    %295 = arith.mulf %293, %294 : vector<8x32xf32>
    %296 = vector.broadcast %185 : vector<1x32xf32> to vector<8x32xf32>
    %297 = arith.addf %295, %296 : vector<8x32xf32>
    %cst_106 = arith.constant dense<0.000000e+00> : vector<8x128xf32>
    %298 = tpu.matmul %297, %179, %cst_106 {dimension_numbers = #tpu.dot_dimension_numbers<[1], [0], [0], [1], [0, 0, 1, 1], [], []>} : vector<8x32xf32>, vector<32x128xf32>, vector<8x128xf32> -> vector<8x128xf32>
    %299 = vector.broadcast %186 : vector<1x128xf32> to vector<8x128xf32>
    %300 = arith.addf %298, %299 : vector<8x128xf32>
    %cst_107 = arith.constant 0.000000e+00 : f32
    %301 = vector.broadcast %cst_107 : f32 to vector<8x128xf32>
    %302 = arith.maximumf %300, %301 : vector<8x128xf32>
    %cst_108 = arith.constant dense<0.000000e+00> : vector<8x32xf32>
    %303 = tpu.matmul %302, %181, %cst_108 {dimension_numbers = #tpu.dot_dimension_numbers<[1], [0], [0], [1], [0, 0, 1, 1], [], []>} : vector<8x128xf32>, vector<128x32xf32>, vector<8x32xf32> -> vector<8x32xf32>
    %304 = vector.broadcast %187 : vector<1x32xf32> to vector<8x32xf32>
    %305 = arith.addf %303, %304 : vector<8x32xf32>
    %306 = arith.addf %297, %305 : vector<8x32xf32>
    %cst_109 = arith.constant dense<0.000000e+00> : vector<8xf32>
    %307 = vector.multi_reduction <add>, %306, %cst_109 [1] : vector<8x32xf32> to vector<8xf32>
    %308 = vector.shape_cast %307 : vector<8xf32> to vector<8x1xf32>
    %cst_110 = arith.constant 3.200000e+01 : f32
    %309 = vector.broadcast %cst_110 : f32 to vector<8x1xf32>
    %310 = arith.divf %308, %309 : vector<8x1xf32>
    %311 = vector.broadcast %310 : vector<8x1xf32> to vector<8x32xf32>
    %312 = arith.subf %306, %311 : vector<8x32xf32>
    %313 = arith.mulf %312, %312 : vector<8x32xf32>
    %cst_111 = arith.constant dense<0.000000e+00> : vector<8xf32>
    %314 = vector.multi_reduction <add>, %313, %cst_111 [1] : vector<8x32xf32> to vector<8xf32>
    %315 = vector.shape_cast %314 : vector<8xf32> to vector<8x1xf32>
    %cst_112 = arith.constant 3.200000e+01 : f32
    %316 = vector.broadcast %cst_112 : f32 to vector<8x1xf32>
    %317 = arith.divf %315, %316 : vector<8x1xf32>
    %318 = vector.broadcast %310 : vector<8x1xf32> to vector<8x32xf32>
    %319 = arith.subf %306, %318 : vector<8x32xf32>
    %cst_113 = arith.constant 9.99999974E-6 : f32
    %320 = vector.broadcast %cst_113 : f32 to vector<8x1xf32>
    %321 = arith.addf %317, %320 : vector<8x1xf32>
    %322 = math.rsqrt %321 : vector<8x1xf32>
    %323 = vector.broadcast %322 : vector<8x1xf32> to vector<8x32xf32>
    %324 = arith.mulf %319, %323 : vector<8x32xf32>
    %325 = vector.broadcast %188 : vector<1x32xf32> to vector<8x32xf32>
    %326 = arith.mulf %324, %325 : vector<8x32xf32>
    %327 = vector.broadcast %189 : vector<1x32xf32> to vector<8x32xf32>
    %328 = arith.addf %326, %327 : vector<8x32xf32>
    %329 = vector.extract_strided_slice %328 {offsets = [0, 0], sizes = [1, 32], strides = [1, 1]} : vector<8x32xf32> to vector<1x32xf32>
    %c0_114 = arith.constant 0 : index
    %c0_115 = arith.constant 0 : index
    %c0_116 = arith.constant 0 : index
    %330 = vector.load %arg11[%c0_114, %c0_115, %c0_116] : memref<1x1x32xf32, #tpu.memory_space<vmem>>, vector<1x1x32xf32>
    %331 = vector.shape_cast %330 : vector<1x1x32xf32> to vector<1x32xf32>
    %332 = vector.shape_cast %329 : vector<1x32xf32> to vector<1x1x32xf32>
    tpu.vector_store %arg11[%c0_114, %c0_115, %c0_116], %332 {strides = array<i32>} : memref<1x1x32xf32, #tpu.memory_space<vmem>>, vector<1x1x32xf32>,
    return
  }
  func.func @transform_0(%arg0: i32) -> (i32, i32, i32) {
    %c0_i32 = arith.constant 0 : i32
    %c0_i32_0 = arith.constant 0 : i32
    %c0_i32_1 = arith.constant 0 : i32
    return %arg0, %c0_i32, %c0_i32_0 : i32, i32, i32
  }
  func.func @transform_1(%arg0: i32) -> (i32, i32, i32) {
    %c0_i32 = arith.constant 0 : i32
    %c0_i32_0 = arith.constant 0 : i32
    %c0_i32_1 = arith.constant 0 : i32
    return %arg0, %c0_i32, %c0_i32_0 : i32, i32, i32
  }
  func.func @transform_2(%arg0: i32) -> (i32, i32, i32) {
    %c0_i32 = arith.constant 0 : i32
    %c0_i32_0 = arith.constant 0 : i32
    %c0_i32_1 = arith.constant 0 : i32
    return %arg0, %c0_i32, %c0_i32_0 : i32, i32, i32
  }
  func.func @transform_3(%arg0: i32) -> (i32, i32) {
    %c0_i32 = arith.constant 0 : i32
    %c0_i32_0 = arith.constant 0 : i32
    %c0_i32_1 = arith.constant 0 : i32
    return %c0_i32, %c0_i32_0 : i32, i32
  }
  func.func @transform_4(%arg0: i32) -> (i32, i32, i32) {
    %c0_i32 = arith.constant 0 : i32
    %c0_i32_0 = arith.constant 0 : i32
    %c0_i32_1 = arith.constant 0 : i32
    %c0_i32_2 = arith.constant 0 : i32
    return %c0_i32, %c0_i32_0, %c0_i32_1 : i32, i32, i32
  }
  func.func @transform_5(%arg0: i32) -> (i32, i32, i32) {
    %c0_i32 = arith.constant 0 : i32
    %c0_i32_0 = arith.constant 0 : i32
    %c0_i32_1 = arith.constant 0 : i32
    %c0_i32_2 = arith.constant 0 : i32
    return %c0_i32, %c0_i32_0, %c0_i32_1 : i32, i32, i32
  }
  func.func @transform_6(%arg0: i32) -> (i32, i32, i32) {
    %c0_i32 = arith.constant 0 : i32
    %c0_i32_0 = arith.constant 0 : i32
    %c0_i32_1 = arith.constant 0 : i32
    %c0_i32_2 = arith.constant 0 : i32
    return %c0_i32, %c0_i32_0, %c0_i32_1 : i32, i32, i32
  }
  func.func @transform_7(%arg0: i32) -> (i32, i32, i32) {
    %c0_i32 = arith.constant 0 : i32
    %c0_i32_0 = arith.constant 0 : i32
    %c0_i32_1 = arith.constant 0 : i32
    %c0_i32_2 = arith.constant 0 : i32
    return %c0_i32, %c0_i32_0, %c0_i32_1 : i32, i32, i32
  }
  func.func @transform_8(%arg0: i32) -> (i32, i32, i32) {
    %c0_i32 = arith.constant 0 : i32
    %c0_i32_0 = arith.constant 0 : i32
    %c0_i32_1 = arith.constant 0 : i32
    %c0_i32_2 = arith.constant 0 : i32
    return %c0_i32, %c0_i32_0, %c0_i32_1 : i32, i32, i32
  }
  func.func @transform_9(%arg0: i32) -> (i32, i32) {
    %c0_i32 = arith.constant 0 : i32
    %c0_i32_0 = arith.constant 0 : i32
    %c0_i32_1 = arith.constant 0 : i32
    return %c0_i32, %c0_i32_0 : i32, i32
  }
  func.func @transform_10(%arg0: i32) -> (i32, i32, i32) {
    %c0_i32 = arith.constant 0 : i32
    %c0_i32_0 = arith.constant 0 : i32
    %c0_i32_1 = arith.constant 0 : i32
    return %arg0, %c0_i32, %c0_i32_0 : i32, i32, i32
  }
}

</mosaic_0001>

<llo_original>
// kernel: tpu_custom_call.1
$region0: #{tpu_custom_call.1}
  #allocation0 [shape = 'u32[]', space=smem, size = 0x4, offset = 0x4, fixed_abs, tag = 'smem constant byte address 0x4 - core index']
  #allocation1 [shape = 'u32[144,128]{1,0:T(1,128)}', space=vmem, size = 0x12000, scoped, tag = 'internal scratch']
  %s0 = inlined_call_operand.vmem [shape: f32[2,8,41], index: 0, kind: input, shape index: {}]
  %s1 = inlined_call_operand.vmem [shape: f32[2,8,512], index: 1, kind: input, shape index: {}]
  %s2 = inlined_call_operand.vmem [shape: f32[2,1,8], index: 2, kind: input, shape index: {}]
  %s3 = inlined_call_operand.vmem [shape: f32[8,32], index: 3, kind: input, shape index: {}]
  %s4 = inlined_call_operand.vmem [shape: f32[2,32,544], index: 4, kind: input, shape index: {}]
  %s5 = inlined_call_operand.vmem [shape: f32[2,32,32], index: 5, kind: input, shape index: {}]
  %s6 = inlined_call_operand.vmem [shape: f32[2,32,128], index: 6, kind: input, shape index: {}]
  %s7 = inlined_call_operand.vmem [shape: f32[2,128,32], index: 7, kind: input, shape index: {}]
  %s8 = inlined_call_operand.vmem [shape: f32[2,8,128], index: 8, kind: input, shape index: {}]
  %s9 = inlined_call_operand.vmem [shape: f32[512,64], index: 9, kind: input, shape index: {}]
  %s10 = inlined_call_operand.hbm [shape: f32[2,1,32], index: 10, kind: output, shape index: {}]
  %s11 = sld [smem:[#allocation0]]
  $region73: #{tpu_custom_call.1} parent=0
    _
  %s13 = ssub.s32 1, %s11
  %s14 = scalar_select 0, %s13, %s11
  $region1: #{tpu_custom_call.1} parent=0
    #allocation2 [shape = 'u8[1024]{0}', space=vmem, size = 0x400, scoped, tag = 'output window, operand 0']
    #allocation3 [shape = 's32[2]{0}', space=sflag, size = 0x8, scoped, tag = 'scoped memory for tpu_custom_call.1']
    %15 = vsyncpa [#allocation3], 0
    %s16 = scalar_lea.sflag [#allocation3], 1
    %17 = vsyncpa %s16, 0
    loop: start=0, step=1, limit=4
    $region2: #{tpu_custom_call.1} parent=1 // loop_pre_header
      _
    $region3: #{tpu_custom_call.1} parent=1 // loop_header
      %s19 = sphi 0, %s23
      %p20 = scmp.ge.s32.totalorder %s19, 4
      %s29 = sphi 0, %s31
      %s32 = sphi 0, %s29
      %s33 = sphi 0, %s32
      %s49 = sphi 0, %s33
      %s55 = sphi 0, %s57
      %s58 = sphi 0, %s55
      %s59 = sphi 0, %s58
      %s75 = sphi 0, %s59
      %s81 = sphi 0, %s83
      %s84 = sphi 0, %s81
      %s85 = sphi 0, %s84
      %s101 = sphi 0, %s85
      %s105 = sphi 0, %s105
      %s107 = sphi 0, %s105
      %s108 = sphi 0, %s107
      %s122 = sphi 0, %s108
      %s126 = sphi 0, %s126
      %s128 = sphi 0, %s126
      %s129 = sphi 0, %s128
      %s143 = sphi 0, %s129
      %s147 = sphi 0, %s147
      %s149 = sphi 0, %s147
      %s150 = sphi 0, %s149
      %s164 = sphi 0, %s150
      %s168 = sphi 0, %s168
      %s170 = sphi 0, %s168
      %s171 = sphi 0, %s170
      %s185 = sphi 0, %s171
      %s189 = sphi 0, %s189
      %s191 = sphi 0, %s189
      %s192 = sphi 0, %s191
      %s206 = sphi 0, %s192
      %s210 = sphi 0, %s210
      %s212 = sphi 0, %s210
      %s213 = sphi 0, %s212
      %s227 = sphi 0, %s213
      %s231 = sphi 0, %s231
      %s233 = sphi 0, %s231
      %s234 = sphi 0, %s233
      %s248 = sphi 0, %s234
      %s254 = sphi 0, %s256
      %s257 = sphi 0, %s254
      %s258 = sphi 0, %s257
      %s274 = sphi 0, %s258
    $region4: #{tpu_custom_call.1} parent=1 // loop_header_branch
      %22 = sbr.rel (%p20) target = $region8
    $region5: #{tpu_custom_call.1} parent=1 // loop_body
      %s24 = ssub.s32 %s19, 1
      %s25 = ssub.s32 %s19, 2
      %s26 = sadd.s32 %s19, 1
      %s27 = ssub.s32 %s19, %s26
      %p28 = scmp.eq.s32.totalorder %s27, 0
      %s30 = sadd.s32 %s29, 1
      %s31 = scalar_select %p28, %s29, %s30
      %p34 = pneg %p28
      %p35 = scmp.eq.s32.totalorder %s19, 1
      %p36 = por %p34, %p35
      %p37 = scmp.ne.s32.totalorder %s29, %s32
      %p38 = scmp.eq.s32.totalorder %s19, 0
      %p39 = por %p37, %p38
      %p40 = scmp.ne.s32.totalorder %s29, %s32
      %p41 = scmp.eq.s32.totalorder %s24, 1
      %p42 = por %p40, %p41
      %p43 = scmp.ne.s32.totalorder %s32, %s33
      %p44 = scmp.eq.s32.totalorder %s24, 0
      %p45 = por %p43, %p44
      %p46 = scmp.ne.s32.totalorder %s32, %s33
      %p47 = scmp.eq.s32.totalorder %s25, 1
      %p48 = por %p46, %p47
      %p50 = scmp.ne.s32.totalorder %s33, %s49
      %p51 = scmp.eq.s32.totalorder %s25, 0
      %p52 = por %p50, %p51
      %s53 = ssub.s32 %s19, %s26
      %p54 = scmp.eq.s32.totalorder %s53, 0
      %s56 = sadd.s32 %s55, 1
      %s57 = scalar_select %p54, %s55, %s56
      %p60 = pneg %p54
      %p61 = scmp.eq.s32.totalorder %s19, 1
      %p62 = por %p60, %p61
      %p63 = scmp.ne.s32.totalorder %s55, %s58
      %p64 = scmp.eq.s32.totalorder %s19, 0
      %p65 = por %p63, %p64
      %p66 = scmp.ne.s32.totalorder %s55, %s58
      %p67 = scmp.eq.s32.totalorder %s24, 1
      %p68 = por %p66, %p67
      %p69 = scmp.ne.s32.totalorder %s58, %s59
      %p70 = scmp.eq.s32.totalorder %s24, 0
      %p71 = por %p69, %p70
      %p72 = scmp.ne.s32.totalorder %s58, %s59
      %p73 = scmp.eq.s32.totalorder %s25, 1
      %p74 = por %p72, %p73
      %p76 = scmp.ne.s32.totalorder %s59, %s75
      %p77 = scmp.eq.s32.totalorder %s25, 0
      %p78 = por %p76, %p77
      %s79 = ssub.s32 %s19, %s26
      %p80 = scmp.eq.s32.totalorder %s79, 0
      %s82 = sadd.s32 %s81, 1
      %s83 = scalar_select %p80, %s81, %s82
      %p86 = pneg %p80
      %p87 = scmp.eq.s32.totalorder %s19, 1
      %p88 = por %p86, %p87
      %p89 = scmp.ne.s32.totalorder %s81, %s84
      %p90 = scmp.eq.s32.totalorder %s19, 0
      %p91 = por %p89, %p90
      %p92 = scmp.ne.s32.totalorder %s81, %s84
      %p93 = scmp.eq.s32.totalorder %s24, 1
      %p94 = por %p92, %p93
      %p95 = scmp.ne.s32.totalorder %s84, %s85
      %p96 = scmp.eq.s32.totalorder %s24, 0
      %p97 = por %p95, %p96
      %p98 = scmp.ne.s32.totalorder %s84, %s85
      %p99 = scmp.eq.s32.totalorder %s25, 1
      %p100 = por %p98, %p99
      %p102 = scmp.ne.s32.totalorder %s85, %s101
      %p103 = scmp.eq.s32.totalorder %s25, 0
      %p104 = por %p102, %p103
      %s106 = sadd.s32 %s105, 1
      %p109 = scmp.eq.s32.totalorder %s19, 1
      %p110 = scmp.ne.s32.totalorder %s105, %s107
      %p111 = scmp.eq.s32.totalorder %s19, 0
      %p112 = por %p110, %p111
      %p113 = scmp.ne.s32.totalorder %s105, %s107
      %p114 = scmp.eq.s32.totalorder %s24, 1
      %p115 = por %p113, %p114
      %p116 = scmp.ne.s32.totalorder %s107, %s108
      %p117 = scmp.eq.s32.totalorder %s24, 0
      %p118 = por %p116, %p117
      %p119 = scmp.ne.s32.totalorder %s107, %s108
      %p120 = scmp.eq.s32.totalorder %s25, 1
      %p121 = por %p119, %p120
      %p123 = scmp.ne.s32.totalorder %s108, %s122
      %p124 = scmp.eq.s32.totalorder %s25, 0
      %p125 = por %p123, %p124
      %s127 = sadd.s32 %s126, 1
      %p130 = scmp.eq.s32.totalorder %s19, 1
      %p131 = scmp.ne.s32.totalorder %s126, %s128
      %p132 = scmp.eq.s32.totalorder %s19, 0
      %p133 = por %p131, %p132
      %p134 = scmp.ne.s32.totalorder %s126, %s128
      %p135 = scmp.eq.s32.totalorder %s24, 1
      %p136 = por %p134, %p135
      %p137 = scmp.ne.s32.totalorder %s128, %s129
      %p138 = scmp.eq.s32.totalorder %s24, 0
      %p139 = por %p137, %p138
      %p140 = scmp.ne.s32.totalorder %s128, %s129
      %p141 = scmp.eq.s32.totalorder %s25, 1
      %p142 = por %p140, %p141
      %p144 = scmp.ne.s32.totalorder %s129, %s143
      %p145 = scmp.eq.s32.totalorder %s25, 0
      %p146 = por %p144, %p145
      %s148 = sadd.s32 %s147, 1
      %p151 = scmp.eq.s32.totalorder %s19, 1
      %p152 = scmp.ne.s32.totalorder %s147, %s149
      %p153 = scmp.eq.s32.totalorder %s19, 0
      %p154 = por %p152, %p153
      %p155 = scmp.ne.s32.totalorder %s147, %s149
      %p156 = scmp.eq.s32.totalorder %s24, 1
      %p157 = por %p155, %p156
      %p158 = scmp.ne.s32.totalorder %s149, %s150
      %p159 = scmp.eq.s32.totalorder %s24, 0
      %p160 = por %p158, %p159
      %p161 = scmp.ne.s32.totalorder %s149, %s150
      %p162 = scmp.eq.s32.totalorder %s25, 1
      %p163 = por %p161, %p162
      %p165 = scmp.ne.s32.totalorder %s150, %s164
      %p166 = scmp.eq.s32.totalorder %s25, 0
      %p167 = por %p165, %p166
      %s169 = sadd.s32 %s168, 1
      %p172 = scmp.eq.s32.totalorder %s19, 1
      %p173 = scmp.ne.s32.totalorder %s168, %s170
      %p174 = scmp.eq.s32.totalorder %s19, 0
      %p175 = por %p173, %p174
      %p176 = scmp.ne.s32.totalorder %s168, %s170
      %p177 = scmp.eq.s32.totalorder %s24, 1
      %p178 = por %p176, %p177
      %p179 = scmp.ne.s32.totalorder %s170, %s171
      %p180 = scmp.eq.s32.totalorder %s24, 0
      %p181 = por %p179, %p180
      %p182 = scmp.ne.s32.totalorder %s170, %s171
      %p183 = scmp.eq.s32.totalorder %s25, 1
      %p184 = por %p182, %p183
      %p186 = scmp.ne.s32.totalorder %s171, %s185
      %p187 = scmp.eq.s32.totalorder %s25, 0
      %p188 = por %p186, %p187
      %s190 = sadd.s32 %s189, 1
      %p193 = scmp.eq.s32.totalorder %s19, 1
      %p194 = scmp.ne.s32.totalorder %s189, %s191
      %p195 = scmp.eq.s32.totalorder %s19, 0
      %p196 = por %p194, %p195
      %p197 = scmp.ne.s32.totalorder %s189, %s191
      %p198 = scmp.eq.s32.totalorder %s24, 1
      %p199 = por %p197, %p198
      %p200 = scmp.ne.s32.totalorder %s191, %s192
      %p201 = scmp.eq.s32.totalorder %s24, 0
      %p202 = por %p200, %p201
      %p203 = scmp.ne.s32.totalorder %s191, %s192
      %p204 = scmp.eq.s32.totalorder %s25, 1
      %p205 = por %p203, %p204
      %p207 = scmp.ne.s32.totalorder %s192, %s206
      %p208 = scmp.eq.s32.totalorder %s25, 0
      %p209 = por %p207, %p208
      %s211 = sadd.s32 %s210, 1
      %p214 = scmp.eq.s32.totalorder %s19, 1
      %p215 = scmp.ne.s32.totalorder %s210, %s212
      %p216 = scmp.eq.s32.totalorder %s19, 0
      %p217 = por %p215, %p216
      %p218 = scmp.ne.s32.totalorder %s210, %s212
      %p219 = scmp.eq.s32.totalorder %s24, 1
      %p220 = por %p218, %p219
      %p221 = scmp.ne.s32.totalorder %s212, %s213
      %p222 = scmp.eq.s32.totalorder %s24, 0
      %p223 = por %p221, %p222
      %p224 = scmp.ne.s32.totalorder %s212, %s213
      %p225 = scmp.eq.s32.totalorder %s25, 1
      %p226 = por %p224, %p225
      %p228 = scmp.ne.s32.totalorder %s213, %s227
      %p229 = scmp.eq.s32.totalorder %s25, 0
      %p230 = por %p228, %p229
      %s232 = sadd.s32 %s231, 1
      %p235 = scmp.eq.s32.totalorder %s19, 1
      %p236 = scmp.ne.s32.totalorder %s231, %s233
      %p237 = scmp.eq.s32.totalorder %s19, 0
      %p238 = por %p236, %p237
      %p239 = scmp.ne.s32.totalorder %s231, %s233
      %p240 = scmp.eq.s32.totalorder %s24, 1
      %p241 = por %p239, %p240
      %p242 = scmp.ne.s32.totalorder %s233, %s234
      %p243 = scmp.eq.s32.totalorder %s24, 0
      %p244 = por %p242, %p243
      %p245 = scmp.ne.s32.totalorder %s233, %s234
      %p246 = scmp.eq.s32.totalorder %s25, 1
      %p247 = por %p245, %p246
      %p249 = scmp.ne.s32.totalorder %s234, %s248
      %p250 = scmp.eq.s32.totalorder %s25, 0
      %p251 = por %p249, %p250
      %s252 = ssub.s32 %s19, %s26
      %p253 = scmp.eq.s32.totalorder %s252, 0
      %s255 = sadd.s32 %s254, 1
      %s256 = scalar_select %p253, %s254, %s255
      %p259 = pneg %p253
      %p260 = scmp.eq.s32.totalorder %s19, 1
      %p261 = por %p259, %p260
      %p262 = scmp.ne.s32.totalorder %s254, %s257
      %p263 = scmp.eq.s32.totalorder %s19, 0
      %p264 = por %p262, %p263
      %p265 = scmp.ne.s32.totalorder %s254, %s257
      %p266 = scmp.eq.s32.totalorder %s24, 1
      %p267 = por %p265, %p266
      %p268 = scmp.ne.s32.totalorder %s257, %s258
      %p269 = scmp.eq.s32.totalorder %s24, 0
      %p270 = por %p268, %p269
      %p271 = scmp.ne.s32.totalorder %s257, %s258
      %p272 = scmp.eq.s32.totalorder %s25, 1
      %p273 = por %p271, %p272
      %p275 = scmp.ne.s32.totalorder %s258, %s274
      %p276 = scmp.eq.s32.totalorder %s25, 0
      %p277 = por %p275, %p276
      %p278 = scmp.le.s32.totalorder 1, %s19
      %p279 = scmp.lt.s32.totalorder %s19, 3
      %p280 = pnand %p278, %p279
      %p281 = pneg %p280
      // Predicated region
      $region9: #{tpu_custom_call.1} parent=5 // pred_check
        _
      $region10: #{tpu_custom_call.1} parent=5 // pred_check_branch
        %283 = sbr.rel (%p280) target = $region12
      $region11: #{tpu_custom_call.1} parent=5 // pred_region
        %s284 = ssub.s32 %s19, 1
        // Predicated region
        $region13: #{tpu_custom_call.1} parent=11 // pred_check
          %p285 = pneg %p118
        $region14: #{tpu_custom_call.1} parent=11 // pred_check_branch
          %287 = sbr.rel (%p285) target = $region16
        $region15: #{tpu_custom_call.1} parent=11 // pred_region
          _
        $region16: #{tpu_custom_call.1} parent=11 // pred_fallthru
          _
        // Predicated region
        $region17: #{tpu_custom_call.1} parent=11 // pred_check
          %p288 = pneg %p139
        $region18: #{tpu_custom_call.1} parent=11 // pred_check_branch
          %290 = sbr.rel (%p288) target = $region20
        $region19: #{tpu_custom_call.1} parent=11 // pred_region
          _
        $region20: #{tpu_custom_call.1} parent=11 // pred_fallthru
          _
        // Predicated region
        $region21: #{tpu_custom_call.1} parent=11 // pred_check
          %p291 = pneg %p160
        $region22: #{tpu_custom_call.1} parent=11 // pred_check_branch
          %293 = sbr.rel (%p291) target = $region24
        $region23: #{tpu_custom_call.1} parent=11 // pred_region
          _
        $region24: #{tpu_custom_call.1} parent=11 // pred_fallthru
          _
        // Predicated region
        $region25: #{tpu_custom_call.1} parent=11 // pred_check
          %p294 = pneg %p181
        $region26: #{tpu_custom_call.1} parent=11 // pred_check_branch
          %296 = sbr.rel (%p294) target = $region28
        $region27: #{tpu_custom_call.1} parent=11 // pred_region
          _
        $region28: #{tpu_custom_call.1} parent=11 // pred_fallthru
          _
        // Predicated region
        $region29: #{tpu_custom_call.1} parent=11 // pred_check
          %p297 = pneg %p202
        $region30: #{tpu_custom_call.1} parent=11 // pred_check_branch
          %299 = sbr.rel (%p297) target = $region32
        $region31: #{tpu_custom_call.1} parent=11 // pred_region
          _
        $region32: #{tpu_custom_call.1} parent=11 // pred_fallthru
          _
        // Predicated region
        $region33: #{tpu_custom_call.1} parent=11 // pred_check
          %p300 = pneg %p223
        $region34: #{tpu_custom_call.1} parent=11 // pred_check_branch
          %302 = sbr.rel (%p300) target = $region36
        $region35: #{tpu_custom_call.1} parent=11 // pred_region
          _
        $region36: #{tpu_custom_call.1} parent=11 // pred_fallthru
          _
        // Predicated region
        $region37: #{tpu_custom_call.1} parent=11 // pred_check
          %p303 = pneg %p244
        $region38: #{tpu_custom_call.1} parent=11 // pred_check_branch
          %305 = sbr.rel (%p303) target = $region40
        $region39: #{tpu_custom_call.1} parent=11 // pred_region
          _
        $region40: #{tpu_custom_call.1} parent=11 // pred_fallthru
          _
      $region12: #{tpu_custom_call.1} parent=5 // pred_fallthru
        _
      %p306 = scmp.lt.s32.totalorder %s19, 2
      // Predicated region
      $region41: #{tpu_custom_call.1} parent=5 // pred_check
        %p307 = pneg %p306
      $region42: #{tpu_custom_call.1} parent=5 // pred_check_branch
        %309 = sbr.rel (%p307) target = $region44
      $region43: #{tpu_custom_call.1} parent=5 // pred_region
        // Predicated region
        $region45: #{tpu_custom_call.1} parent=43 // pred_check
          %p310 = pneg %p39
        $region46: #{tpu_custom_call.1} parent=43 // pred_check_branch
          %312 = sbr.rel (%p310) target = $region48
        $region47: #{tpu_custom_call.1} parent=43 // pred_region
          %p313 = scmp.lt.s32.totalorder %s19, 1
          %s314 = scalar_select %p313, %s19, 1
          %s315 = smul.addr %s314, 8
          %s316 = scalar_lea.vmem %s0, %s315
        $region48: #{tpu_custom_call.1} parent=43 // pred_fallthru
          _
        // Predicated region
        $region49: #{tpu_custom_call.1} parent=43 // pred_check
          %p317 = pneg %p65
        $region50: #{tpu_custom_call.1} parent=43 // pred_check_branch
          %319 = sbr.rel (%p317) target = $region52
        $region51: #{tpu_custom_call.1} parent=43 // pred_region
          %p320 = scmp.lt.s32.totalorder %s19, 1
          %s321 = scalar_select %p320, %s19, 1
          %s322 = smul.addr %s321, 4
          %s323 = smul.addr %s322, 8
          %s324 = scalar_lea.vmem %s1, %s323
        $region52: #{tpu_custom_call.1} parent=43 // pred_fallthru
          _
        // Predicated region
        $region53: #{tpu_custom_call.1} parent=43 // pred_check
          %p325 = pneg %p91
        $region54: #{tpu_custom_call.1} parent=43 // pred_check_branch
          %327 = sbr.rel (%p325) target = $region56
        $region55: #{tpu_custom_call.1} parent=43 // pred_region
          %p328 = scmp.lt.s32.totalorder %s19, 1
          %s329 = scalar_select %p328, %s19, 1
          %s330 = scalar_lea.vmem %s2, %s329
        $region56: #{tpu_custom_call.1} parent=43 // pred_fallthru
          _
      $region44: #{tpu_custom_call.1} parent=5 // pred_fallthru
        _
      %p331 = scmp.le.s32.totalorder 1, %s19
      %p332 = scmp.lt.s32.totalorder %s19, 3
      %p333 = pnand %p331, %p332
      %p334 = pneg %p333
      // Predicated region
      $region57: #{tpu_custom_call.1} parent=5 // pred_check
        _
      $region58: #{tpu_custom_call.1} parent=5 // pred_check_branch
        %336 = sbr.rel (%p333) target = $region60
      $region59: #{tpu_custom_call.1} parent=5 // pred_region
        %s337 = ssub.s32 %s19, 1
        %p338 = scmp.lt.s32.totalorder %s24, 1
        %s339 = scalar_select %p338, %s24, 1
        %s340 = smul.addr %s339, 8
        %s341 = scalar_lea.vmem %s0, %s340
        %p342 = pneg %p45
        %p343 = pneg %p42
        %p344 = scmp.lt.s32.totalorder %s24, 1
        %s345 = scalar_select %p344, %s24, 1
        %s346 = smul.addr %s345, 4
        %s347 = smul.addr %s346, 8
        %s348 = scalar_lea.vmem %s1, %s347
        %p349 = pneg %p71
        %p350 = pneg %p68
        %p351 = scmp.lt.s32.totalorder %s24, 1
        %s352 = scalar_select %p351, %s24, 1
        %s353 = scalar_lea.vmem %s2, %s352
        %p354 = pneg %p97
        %p355 = pneg %p94
        %p356 = pneg %p118
        %p357 = pneg %p115
        %p358 = pneg %p139
        %p359 = pneg %p136
        %p360 = pneg %p160
        %p361 = pneg %p157
        %p362 = pneg %p181
        %p363 = pneg %p178
        %p364 = pneg %p202
        %p365 = pneg %p199
        %p366 = pneg %p223
        %p367 = pneg %p220
        %p368 = pneg %p244
        %p369 = pneg %p241
        %p370 = pneg %p270
        %p371 = pneg %p267
        %s372 = sand.u32 %s257, 1
        %s373 = scalar_lea.sflag [#allocation3], %s372
        %s374 = sand.u32 %s257, 1
        %s375 = scalar_lea.vmem [#allocation2], %s374
        %p376 = scmp.lt.s32.totalorder %s24, 1
        %s377 = scalar_select %p376, %s24, 1
        %s378 = smul.addr %s377, 8
        %s379 = scalar_lea.vmem %s0, %s378
        %p380 = scmp.lt.s32.totalorder %s24, 1
        %s381 = scalar_select %p380, %s24, 1
        %s382 = smul.addr %s381, 4
        %s383 = smul.addr %s382, 8
        %s384 = scalar_lea.vmem %s1, %s383
        %p385 = scmp.lt.s32.totalorder %s24, 1
        %s386 = scalar_select %p385, %s24, 1
        %s387 = scalar_lea.vmem %s2, %s386
        %v388 = vld [vmem:[%s379] sm:$0xff]
        %v389 = vld [vmem:[%s384] sm:$0xff]
        %v390 = vld [vmem:[%s384 + $0x8] sm:$0xff]
        %v391 = vld [vmem:[%s384 + $0x10] sm:$0xff]
        %v392 = vld [vmem:[%s384 + $0x18] sm:$0xff]
        %v393 = vld [vmem:[%s387] sm:$0x1]
        %v394 = vld [vmem:[%s9] sm:$0xff]
        %v395 = vld [vmem:[%s9 + $0x8] sm:$0xff]
        %v396 = vld [vmem:[%s9 + $0x10] sm:$0xff]
        %v397 = vld [vmem:[%s9 + $0x18] sm:$0xff]
        %v398 = vld [vmem:[%s9 + $0x20] sm:$0xff]
        %v399 = vld [vmem:[%s9 + $0x28] sm:$0xff]
        %v400 = vld [vmem:[%s9 + $0x30] sm:$0xff]
        %v401 = vld [vmem:[%s9 + $0x38] sm:$0xff]
        %v402 = vld [vmem:[%s9 + $0x40] sm:$0xff]
        %v403 = vld [vmem:[%s9 + $0x48] sm:$0xff]
        %v404 = vld [vmem:[%s9 + $0x50] sm:$0xff]
        %v405 = vld [vmem:[%s9 + $0x58] sm:$0xff]
        %v406 = vld [vmem:[%s9 + $0x60] sm:$0xff]
        %v407 = vld [vmem:[%s9 + $0x68] sm:$0xff]
        %v408 = vld [vmem:[%s9 + $0x70] sm:$0xff]
        %v409 = vld [vmem:[%s9 + $0x78] sm:$0xff]
        %v410 = vld [vmem:[%s9 + $0x80] sm:$0xff]
        %v411 = vld [vmem:[%s9 + $0x88] sm:$0xff]
        %v412 = vld [vmem:[%s9 + $0x90] sm:$0xff]
        %v413 = vld [vmem:[%s9 + $0x98] sm:$0xff]
        %v414 = vld [vmem:[%s9 + $0xa0] sm:$0xff]
        %v415 = vld [vmem:[%s9 + $0xa8] sm:$0xff]
        %v416 = vld [vmem:[%s9 + $0xb0] sm:$0xff]
        %v417 = vld [vmem:[%s9 + $0xb8] sm:$0xff]
        %v418 = vld [vmem:[%s9 + $0xc0] sm:$0xff]
        %v419 = vld [vmem:[%s9 + $0xc8] sm:$0xff]
        %v420 = vld [vmem:[%s9 + $0xd0] sm:$0xff]
        %v421 = vld [vmem:[%s9 + $0xd8] sm:$0xff]
        %v422 = vld [vmem:[%s9 + $0xe0] sm:$0xff]
        %v423 = vld [vmem:[%s9 + $0xe8] sm:$0xff]
        %v424 = vld [vmem:[%s9 + $0xf0] sm:$0xff]
        %v425 = vld [vmem:[%s9 + $0xf8] sm:$0xff]
        %v426 = vld [vmem:[%s9 + $0x100] sm:$0xff]
        %v427 = vld [vmem:[%s9 + $0x108] sm:$0xff]
        %v428 = vld [vmem:[%s9 + $0x110] sm:$0xff]
        %v429 = vld [vmem:[%s9 + $0x118] sm:$0xff]
        %v430 = vld [vmem:[%s9 + $0x120] sm:$0xff]
        %v431 = vld [vmem:[%s9 + $0x128] sm:$0xff]
        %v432 = vld [vmem:[%s9 + $0x130] sm:$0xff]
        %v433 = vld [vmem:[%s9 + $0x138] sm:$0xff]
        %v434 = vld [vmem:[%s9 + $0x140] sm:$0xff]
        %v435 = vld [vmem:[%s9 + $0x148] sm:$0xff]
        %v436 = vld [vmem:[%s9 + $0x150] sm:$0xff]
        %v437 = vld [vmem:[%s9 + $0x158] sm:$0xff]
        %v438 = vld [vmem:[%s9 + $0x160] sm:$0xff]
        %v439 = vld [vmem:[%s9 + $0x168] sm:$0xff]
        %v440 = vld [vmem:[%s9 + $0x170] sm:$0xff]
        %v441 = vld [vmem:[%s9 + $0x178] sm:$0xff]
        %v442 = vld [vmem:[%s9 + $0x180] sm:$0xff]
        %v443 = vld [vmem:[%s9 + $0x188] sm:$0xff]
        %v444 = vld [vmem:[%s9 + $0x190] sm:$0xff]
        %v445 = vld [vmem:[%s9 + $0x198] sm:$0xff]
        %v446 = vld [vmem:[%s9 + $0x1a0] sm:$0xff]
        %v447 = vld [vmem:[%s9 + $0x1a8] sm:$0xff]
        %v448 = vld [vmem:[%s9 + $0x1b0] sm:$0xff]
        %v449 = vld [vmem:[%s9 + $0x1b8] sm:$0xff]
        %v450 = vld [vmem:[%s9 + $0x1c0] sm:$0xff]
        %v451 = vld [vmem:[%s9 + $0x1c8] sm:$0xff]
        %v452 = vld [vmem:[%s9 + $0x1d0] sm:$0xff]
        %v453 = vld [vmem:[%s9 + $0x1d8] sm:$0xff]
        %v454 = vld [vmem:[%s9 + $0x1e0] sm:$0xff]
        %v455 = vld [vmem:[%s9 + $0x1e8] sm:$0xff]
        %v456 = vld [vmem:[%s9 + $0x1f0] sm:$0xff]
        %v457 = vld [vmem:[%s9 + $0x1f8] sm:$0xff]
        %v458 = vld [vmem:[%s3] sm:$0xff]
        %vm459 = vcmask 64512
        %v461 = vsel %vm459, %v388, 0
        %463 = vmatprep.subr.mxu0 0.0
        %464 = vmatpush1.msra.mxu0 %v458
        %465 = vmatprep.subr.mxu0 0.0
        %466 = vmatpush1.msra.mxu0 0.0
        %467 = vmatprep.subr.mxu0 0.0
        %468 = vmatpush1.msra.mxu0 0.0
        %469 = vmatprep.subr.mxu0 0.0
        %470 = vmatpush1.msra.mxu0 0.0
        %471 = vmatprep.subr.mxu0 0.0
        %472 = vmatpush1.msra.mxu0 0.0
        %473 = vmatprep.subr.mxu0 0.0
        %474 = vmatpush1.msra.mxu0 0.0
        %475 = vmatprep.subr.mxu0 0.0
        %476 = vmatpush1.msra.mxu0 0.0
        %477 = vmatprep.subr.mxu0 0.0
        %478 = vmatpush1.msra.mxu0 0.0
        %479 = vmatprep.subr.mxu0 0.0
        %480 = vmatpush1.msra.mxu0 0.0
        %481 = vmatprep.subr.mxu0 0.0
        %482 = vmatpush1.msra.mxu0 0.0
        %483 = vmatprep.subr.mxu0 0.0
        %484 = vmatpush1.msra.mxu0 0.0
        %485 = vmatprep.subr.mxu0 0.0
        %486 = vmatpush1.msra.mxu0 0.0
        %487 = vmatprep.subr.mxu0 0.0
        %488 = vmatpush1.msra.mxu0 0.0
        %489 = vmatprep.subr.mxu0 0.0
        %490 = vmatpush1.msra.mxu0 0.0
        %491 = vmatprep.subr.mxu0 0.0
        %492 = vmatpush1.msra.mxu0 0.0
        %493 = vmatprep.subr.mxu0 0.0
        %494 = vmatpush1.msra.mxu0 0.0
        %495 = vmatprep.subr.mxu0 0.0
        %496 = vmatpush1.msra.mxu0 0.0
        %497 = vmatprep.subr.mxu0 0.0
        %498 = vmatpush1.msra.mxu0 0.0
        %499 = vmatprep.subr.mxu0 0.0
        %500 = vmatpush1.msra.mxu0 0.0
        %501 = vmatprep.subr.mxu0 0.0
        %502 = vmatpush1.msra.mxu0 0.0
        %503 = vmatprep.subr.mxu0 0.0
        %504 = vmatpush1.msra.mxu0 0.0
        %505 = vmatprep.subr.mxu0 0.0
        %506 = vmatpush1.msra.mxu0 0.0
        %507 = vmatprep.subr.mxu0 0.0
        %508 = vmatpush1.msra.mxu0 0.0
        %509 = vmatprep.subr.mxu0 0.0
        %510 = vmatpush1.msra.mxu0 0.0
        %511 = vmatprep.subr.mxu0 0.0
        %512 = vmatpush1.msra.mxu0 0.0
        %513 = vmatprep.subr.mxu0 0.0
        %514 = vmatpush1.msra.mxu0 0.0
        %515 = vmatprep.subr.mxu0 0.0
        %516 = vmatpush1.msra.mxu0 0.0
        %517 = vmatprep.subr.mxu0 0.0
        %518 = vmatpush1.msra.mxu0 0.0
        %519 = vmatprep.subr.mxu0 0.0
        %520 = vmatpush1.msra.mxu0 0.0
        %521 = vmatprep.subr.mxu0 0.0
        %522 = vmatpush1.msra.mxu0 0.0
        %523 = vmatprep.subr.mxu0 0.0
        %524 = vmatpush1.msra.mxu0 0.0
        %525 = vmatprep.subr.mxu0 0.0
        %526 = vmatpush1.msra.mxu0 0.0
        %527 = vmatprep.mubr.f32.mxu0 0.0
        %528 = vmatmul.mubr.f32.gmra.mrb[0].mxu0 %v461
        %v529 = vpop.f32.mrb[0].mxu0
        %v530 = vadd.f32 0.0, %v529
        %v531 = vpop.f32.mrb[0].mxu0
        %532 = vdwg.mxu0
        %v533 = vsub.f32 1.0, %v388
        %535 = vset.pattern.permute.xlu0 40
        %536 = vperm.xlu0 %535, %v533
        %v537 = vpop.permute.xlu0 %536
        %v539 = vmul.f32 %v530, %v537
        %540 = vset.pattern.permute.xlu0 40
        %541 = vperm.xlu0 %540, %v388
        %v542 = vpop.permute.xlu0 %541
        %v544 = vmul.f32 %v388, %v542
        %546 = vrot.lane.b32.xlu0 %v544, 120
        %v547 = vpop.permute.xlu0 %546
        %v549 = vadd.f32 %v539, %v547
        %v550 = vld [vmem:[%s4] sm:$0xff]
        %v551 = vld [vmem:[%s4 + $0x8] sm:$0xff]
        %v552 = vld [vmem:[%s4 + $0x10] sm:$0xff]
        %v553 = vld [vmem:[%s4 + $0x18] sm:$0xff]
        %v554 = vld [vmem:[%s4 + $0x20] sm:$0xff]
        %v555 = vld [vmem:[%s4 + $0x28] sm:$0xff]
        %v556 = vld [vmem:[%s4 + $0x30] sm:$0xff]
        %v557 = vld [vmem:[%s4 + $0x38] sm:$0xff]
        %v558 = vld [vmem:[%s4 + $0x40] sm:$0xff]
        %v559 = vld [vmem:[%s4 + $0x48] sm:$0xff]
        %v560 = vld [vmem:[%s4 + $0x50] sm:$0xff]
        %v561 = vld [vmem:[%s4 + $0x58] sm:$0xff]
        %v562 = vld [vmem:[%s4 + $0x60] sm:$0xff]
        %v563 = vld [vmem:[%s4 + $0x68] sm:$0xff]
        %v564 = vld [vmem:[%s4 + $0x70] sm:$0xff]
        %v565 = vld [vmem:[%s4 + $0x78] sm:$0xff]
        %v566 = vld [vmem:[%s4 + $0x80] sm:$0xff]
        %v567 = vld [vmem:[%s4 + $0x88] sm:$0xff]
        %v568 = vld [vmem:[%s4 + $0x90] sm:$0xff]
        %v569 = vld [vmem:[%s4 + $0x98] sm:$0xff]
        %v570 = vld [vmem:[%s5] sm:$0xff]
        %v571 = vld [vmem:[%s5 + $0x8] sm:$0xff]
        %v572 = vld [vmem:[%s5 + $0x10] sm:$0xff]
        %v573 = vld [vmem:[%s5 + $0x18] sm:$0xff]
        %v574 = vld [vmem:[%s6] sm:$0xff]
        %v575 = vld [vmem:[%s6 + $0x8] sm:$0xff]
        %v576 = vld [vmem:[%s6 + $0x10] sm:$0xff]
        %v577 = vld [vmem:[%s6 + $0x18] sm:$0xff]
        %v578 = vld [vmem:[%s7] sm:$0xff]
        %v579 = vld [vmem:[%s7 + $0x8] sm:$0xff]
        %v580 = vld [vmem:[%s7 + $0x10] sm:$0xff]
        %v581 = vld [vmem:[%s7 + $0x18] sm:$0xff]
        %v582 = vld [vmem:[%s7 + $0x20] sm:$0xff]
        %v583 = vld [vmem:[%s7 + $0x28] sm:$0xff]
        %v584 = vld [vmem:[%s7 + $0x30] sm:$0xff]
        %v585 = vld [vmem:[%s7 + $0x38] sm:$0xff]
        %v586 = vld [vmem:[%s7 + $0x40] sm:$0xff]
        %v587 = vld [vmem:[%s7 + $0x48] sm:$0xff]
        %v588 = vld [vmem:[%s7 + $0x50] sm:$0xff]
        %v589 = vld [vmem:[%s7 + $0x58] sm:$0xff]
        %v590 = vld [vmem:[%s7 + $0x60] sm:$0xff]
        %v591 = vld [vmem:[%s7 + $0x68] sm:$0xff]
        %v592 = vld [vmem:[%s7 + $0x70] sm:$0xff]
        %v593 = vld [vmem:[%s7 + $0x78] sm:$0xff]
        %v594 = vld [vmem:[%s8] sm:$0xff]
        %vm595 = vcmask 261120
        %v597 = vsel %vm595, %v549, 0
        %599 = vmatprep.subr.mxu0 %v551
        %600 = vmatpush1.msra.mxu0 %v550
        %601 = vmatprep.subr.mxu0 %v556
        %602 = vmatpush1.msra.mxu0 %v555
        %603 = vmatprep.subr.mxu0 %v561
        %604 = vmatpush1.msra.mxu0 %v560
        %605 = vmatprep.subr.mxu0 %v566
        %606 = vmatpush1.msra.mxu0 %v565
        %607 = vmatprep.subr.mxu0 0.0
        %608 = vmatpush1.msra.mxu0 0.0
        %609 = vmatprep.subr.mxu0 0.0
        %610 = vmatpush1.msra.mxu0 0.0
        %611 = vmatprep.subr.mxu0 0.0
        %612 = vmatpush1.msra.mxu0 0.0
        %613 = vmatprep.subr.mxu0 0.0
        %614 = vmatpush1.msra.mxu0 0.0
        %615 = vmatprep.subr.mxu0 0.0
        %616 = vmatpush1.msra.mxu0 0.0
        %617 = vmatprep.subr.mxu0 0.0
        %618 = vmatpush1.msra.mxu0 0.0
        %619 = vmatprep.subr.mxu0 0.0
        %620 = vmatpush1.msra.mxu0 0.0
        %621 = vmatprep.subr.mxu0 0.0
        %622 = vmatpush1.msra.mxu0 0.0
        %623 = vmatprep.subr.mxu0 0.0
        %624 = vmatpush1.msra.mxu0 0.0
        %625 = vmatprep.subr.mxu0 0.0
        %626 = vmatpush1.msra.mxu0 0.0
        %627 = vmatprep.subr.mxu0 0.0
        %628 = vmatpush1.msra.mxu0 0.0
        %629 = vmatprep.subr.mxu0 0.0
        %630 = vmatpush1.msra.mxu0 0.0
        %631 = vmatprep.subr.mxu0 0.0
        %632 = vmatpush1.msra.mxu0 0.0
        %633 = vmatprep.subr.mxu0 0.0
        %634 = vmatpush1.msra.mxu0 0.0
        %635 = vmatprep.subr.mxu0 0.0
        %636 = vmatpush1.msra.mxu0 0.0
        %637 = vmatprep.subr.mxu0 0.0
        %638 = vmatpush1.msra.mxu0 0.0
        %639 = vmatprep.subr.mxu0 0.0
        %640 = vmatpush1.msra.mxu0 0.0
        %641 = vmatprep.subr.mxu0 0.0
        %642 = vmatpush1.msra.mxu0 0.0
        %643 = vmatprep.subr.mxu0 0.0
        %644 = vmatpush1.msra.mxu0 0.0
        %645 = vmatprep.subr.mxu0 0.0
        %646 = vmatpush1.msra.mxu0 0.0
        %647 = vmatprep.subr.mxu0 0.0
        %648 = vmatpush1.msra.mxu0 0.0
        %649 = vmatprep.subr.mxu0 0.0
        %650 = vmatpush1.msra.mxu0 0.0
        %651 = vmatprep.subr.mxu0 0.0
        %652 = vmatpush1.msra.mxu0 0.0
        %653 = vmatprep.subr.mxu0 0.0
        %654 = vmatpush1.msra.mxu0 0.0
        %655 = vmatprep.subr.mxu0 0.0
        %656 = vmatpush1.msra.mxu0 0.0
        %657 = vmatprep.subr.mxu0 0.0
        %658 = vmatpush1.msra.mxu0 0.0
        %659 = vmatprep.subr.mxu0 0.0
        %660 = vmatpush1.msra.mxu0 0.0
        %661 = vmatprep.subr.mxu0 0.0
        %662 = vmatpush1.msra.mxu0 0.0
        %663 = vmatprep.mubr.f32.mxu0 0.0
        %664 = vmatmul.mubr.f32.gmra.mrb[0].mxu0 %v597
        %v665 = vpop.f32.mrb[0].mxu0
        %v666 = vadd.f32 0.0, %v665
        %v667 = vpop.f32.mrb[0].mxu0
        %v668 = vadd.f32 0.0, %v667
        %669 = vdwg.mxu0
        %670 = vmatprep.subr.mxu0 %v553
        %671 = vmatpush1.msra.mxu0 %v552
        %672 = vmatprep.subr.mxu0 %v558
        %673 = vmatpush1.msra.mxu0 %v557
        %674 = vmatprep.subr.mxu0 %v563
        %675 = vmatpush1.msra.mxu0 %v562
        %676 = vmatprep.subr.mxu0 %v568
        %677 = vmatpush1.msra.mxu0 %v567
        %678 = vmatprep.subr.mxu0 0.0
        %679 = vmatpush1.msra.mxu0 0.0
        %680 = vmatprep.subr.mxu0 0.0
        %681 = vmatpush1.msra.mxu0 0.0
        %682 = vmatprep.subr.mxu0 0.0
        %683 = vmatpush1.msra.mxu0 0.0
        %684 = vmatprep.subr.mxu0 0.0
        %685 = vmatpush1.msra.mxu0 0.0
        %686 = vmatprep.subr.mxu0 0.0
        %687 = vmatpush1.msra.mxu0 0.0
        %688 = vmatprep.subr.mxu0 0.0
        %689 = vmatpush1.msra.mxu0 0.0
        %690 = vmatprep.subr.mxu0 0.0
        %691 = vmatpush1.msra.mxu0 0.0
        %692 = vmatprep.subr.mxu0 0.0
        %693 = vmatpush1.msra.mxu0 0.0
        %694 = vmatprep.subr.mxu0 0.0
        %695 = vmatpush1.msra.mxu0 0.0
        %696 = vmatprep.subr.mxu0 0.0
        %697 = vmatpush1.msra.mxu0 0.0
        %698 = vmatprep.subr.mxu0 0.0
        %699 = vmatpush1.msra.mxu0 0.0
        %700 = vmatprep.subr.mxu0 0.0
        %701 = vmatpush1.msra.mxu0 0.0
        %702 = vmatprep.subr.mxu0 0.0
        %703 = vmatpush1.msra.mxu0 0.0
        %704 = vmatprep.subr.mxu0 0.0
        %705 = vmatpush1.msra.mxu0 0.0
        %706 = vmatprep.subr.mxu0 0.0
        %707 = vmatpush1.msra.mxu0 0.0
        %708 = vmatprep.subr.mxu0 0.0
        %709 = vmatpush1.msra.mxu0 0.0
        %710 = vmatprep.subr.mxu0 0.0
        %711 = vmatpush1.msra.mxu0 0.0
        %712 = vmatprep.subr.mxu0 0.0
        %713 = vmatpush1.msra.mxu0 0.0
        %714 = vmatprep.subr.mxu0 0.0
        %715 = vmatpush1.msra.mxu0 0.0
        %716 = vmatprep.subr.mxu0 0.0
        %717 = vmatpush1.msra.mxu0 0.0
        %718 = vmatprep.subr.mxu0 0.0
        %719 = vmatpush1.msra.mxu0 0.0
        %720 = vmatprep.subr.mxu0 0.0
        %721 = vmatpush1.msra.mxu0 0.0
        %722 = vmatprep.subr.mxu0 0.0
        %723 = vmatpush1.msra.mxu0 0.0
        %724 = vmatprep.subr.mxu0 0.0
        %725 = vmatpush1.msra.mxu0 0.0
        %726 = vmatprep.subr.mxu0 0.0
        %727 = vmatpush1.msra.mxu0 0.0
        %728 = vmatprep.subr.mxu0 0.0
        %729 = vmatpush1.msra.mxu0 0.0
        %730 = vmatprep.subr.mxu0 0.0
        %731 = vmatpush1.msra.mxu0 0.0
        %732 = vmatprep.subr.mxu0 0.0
        %733 = vmatpush1.msra.mxu0 0.0
        %734 = vmatprep.mubr.f32.mxu0 0.0
        %735 = vmatmul.mubr.f32.gmra.mrb[0].mxu0 %v597
        %v736 = vpop.f32.mrb[0].mxu0
        %v737 = vadd.f32 0.0, %v736
        %v738 = vpop.f32.mrb[0].mxu0
        %v739 = vadd.f32 0.0, %v738
        %740 = vdwg.mxu0
        %741 = vmatprep.subr.mxu0 0.0
        %742 = vmatpush1.msra.mxu0 %v554
        %743 = vmatprep.subr.mxu0 0.0
        %744 = vmatpush1.msra.mxu0 %v559
        %745 = vmatprep.subr.mxu0 0.0
        %746 = vmatpush1.msra.mxu0 %v564
        %747 = vmatprep.subr.mxu0 0.0
        %748 = vmatpush1.msra.mxu0 %v569
        %749 = vmatprep.subr.mxu0 0.0
        %750 = vmatpush1.msra.mxu0 0.0
        %751 = vmatprep.subr.mxu0 0.0
        %752 = vmatpush1.msra.mxu0 0.0
        %753 = vmatprep.subr.mxu0 0.0
        %754 = vmatpush1.msra.mxu0 0.0
        %755 = vmatprep.subr.mxu0 0.0
        %756 = vmatpush1.msra.mxu0 0.0
        %757 = vmatprep.subr.mxu0 0.0
        %758 = vmatpush1.msra.mxu0 0.0
        %759 = vmatprep.subr.mxu0 0.0
        %760 = vmatpush1.msra.mxu0 0.0
        %761 = vmatprep.subr.mxu0 0.0
        %762 = vmatpush1.msra.mxu0 0.0
        %763 = vmatprep.subr.mxu0 0.0
        %764 = vmatpush1.msra.mxu0 0.0
        %765 = vmatprep.subr.mxu0 0.0
        %766 = vmatpush1.msra.mxu0 0.0
        %767 = vmatprep.subr.mxu0 0.0
        %768 = vmatpush1.msra.mxu0 0.0
        %769 = vmatprep.subr.mxu0 0.0
        %770 = vmatpush1.msra.mxu0 0.0
        %771 = vmatprep.subr.mxu0 0.0
        %772 = vmatpush1.msra.mxu0 0.0
        %773 = vmatprep.subr.mxu0 0.0
        %774 = vmatpush1.msra.mxu0 0.0
        %775 = vmatprep.subr.mxu0 0.0
        %776 = vmatpush1.msra.mxu0 0.0
        %777 = vmatprep.subr.mxu0 0.0
        %778 = vmatpush1.msra.mxu0 0.0
        %779 = vmatprep.subr.mxu0 0.0
        %780 = vmatpush1.msra.mxu0 0.0
        %781 = vmatprep.subr.mxu0 0.0
        %782 = vmatpush1.msra.mxu0 0.0
        %783 = vmatprep.subr.mxu0 0.0
        %784 = vmatpush1.msra.mxu0 0.0
        %785 = vmatprep.subr.mxu0 0.0
        %786 = vmatpush1.msra.mxu0 0.0
        %787 = vmatprep.subr.mxu0 0.0
        %788 = vmatpush1.msra.mxu0 0.0
        %789 = vmatprep.subr.mxu0 0.0
        %790 = vmatpush1.msra.mxu0 0.0
        %791 = vmatprep.subr.mxu0 0.0
        %792 = vmatpush1.msra.mxu0 0.0
        %793 = vmatprep.subr.mxu0 0.0
        %794 = vmatpush1.msra.mxu0 0.0
        %795 = vmatprep.subr.mxu0 0.0
        %796 = vmatpush1.msra.mxu0 0.0
        %797 = vmatprep.subr.mxu0 0.0
        %798 = vmatpush1.msra.mxu0 0.0
        %799 = vmatprep.subr.mxu0 0.0
        %800 = vmatpush1.msra.mxu0 0.0
        %801 = vmatprep.subr.mxu0 0.0
        %802 = vmatpush1.msra.mxu0 0.0
        %803 = vmatprep.subr.mxu0 0.0
        %804 = vmatpush1.msra.mxu0 0.0
        %805 = vmatprep.mubr.f32.mxu0 0.0
        %806 = vmatmul.mubr.f32.gmra.mrb[0].mxu0 %v597
        %v807 = vpop.f32.mrb[0].mxu0
        %v808 = vadd.f32 0.0, %v807
        %v809 = vpop.f32.mrb[0].mxu0
        %810 = vdwg.mxu0
        %v811 = vmul.f32 %v666, %v389
        %v812 = vmul.f32 %v668, %v390
        %v813 = vmul.f32 %v737, %v391
        %v814 = vmul.f32 %v739, %v392
        %815 = vmatprep.subr.mxu0 0.0
        %816 = vmatpush1.msra.mxu0 %v394
        %817 = vmatprep.subr.mxu0 0.0
        %818 = vmatpush1.msra.mxu0 %v395
        %819 = vmatprep.subr.mxu0 0.0
        %820 = vmatpush1.msra.mxu0 %v396
        %821 = vmatprep.subr.mxu0 0.0
        %822 = vmatpush1.msra.mxu0 %v397
        %823 = vmatprep.subr.mxu0 0.0
        %824 = vmatpush1.msra.mxu0 %v398
        %825 = vmatprep.subr.mxu0 0.0
        %826 = vmatpush1.msra.mxu0 %v399
        %827 = vmatprep.subr.mxu0 0.0
        %828 = vmatpush1.msra.mxu0 %v400
        %829 = vmatprep.subr.mxu0 0.0
        %830 = vmatpush1.msra.mxu0 %v401
        %831 = vmatprep.subr.mxu0 0.0
        %832 = vmatpush1.msra.mxu0 %v402
        %833 = vmatprep.subr.mxu0 0.0
        %834 = vmatpush1.msra.mxu0 %v403
        %835 = vmatprep.subr.mxu0 0.0
        %836 = vmatpush1.msra.mxu0 %v404
        %837 = vmatprep.subr.mxu0 0.0
        %838 = vmatpush1.msra.mxu0 %v405
        %839 = vmatprep.subr.mxu0 0.0
        %840 = vmatpush1.msra.mxu0 %v406
        %841 = vmatprep.subr.mxu0 0.0
        %842 = vmatpush1.msra.mxu0 %v407
        %843 = vmatprep.subr.mxu0 0.0
        %844 = vmatpush1.msra.mxu0 %v408
        %845 = vmatprep.subr.mxu0 0.0
        %846 = vmatpush1.msra.mxu0 %v409
        %847 = vmatprep.subr.mxu0 0.0
        %848 = vmatpush1.msra.mxu0 %v410
        %849 = vmatprep.subr.mxu0 0.0
        %850 = vmatpush1.msra.mxu0 %v411
        %851 = vmatprep.subr.mxu0 0.0
        %852 = vmatpush1.msra.mxu0 %v412
        %853 = vmatprep.subr.mxu0 0.0
        %854 = vmatpush1.msra.mxu0 %v413
        %855 = vmatprep.subr.mxu0 0.0
        %856 = vmatpush1.msra.mxu0 %v414
        %857 = vmatprep.subr.mxu0 0.0
        %858 = vmatpush1.msra.mxu0 %v415
        %859 = vmatprep.subr.mxu0 0.0
        %860 = vmatpush1.msra.mxu0 %v416
        %861 = vmatprep.subr.mxu0 0.0
        %862 = vmatpush1.msra.mxu0 %v417
        %863 = vmatprep.subr.mxu0 0.0
        %864 = vmatpush1.msra.mxu0 %v418
        %865 = vmatprep.subr.mxu0 0.0
        %866 = vmatpush1.msra.mxu0 %v419
        %867 = vmatprep.subr.mxu0 0.0
        %868 = vmatpush1.msra.mxu0 %v420
        %869 = vmatprep.subr.mxu0 0.0
        %870 = vmatpush1.msra.mxu0 %v421
        %871 = vmatprep.subr.mxu0 0.0
        %872 = vmatpush1.msra.mxu0 %v422
        %873 = vmatprep.subr.mxu0 0.0
        %874 = vmatpush1.msra.mxu0 %v423
        %875 = vmatprep.subr.mxu0 0.0
        %876 = vmatpush1.msra.mxu0 %v424
        %877 = vmatprep.subr.mxu0 0.0
        %878 = vmatpush1.msra.mxu0 %v425
        %879 = vmatprep.mubr.f32.mxu0 %v812
        %880 = vmatmul.mubr.f32.gmra.mrb[0].mxu0 %v811
        %v881 = vpop.f32.mrb[0].mxu0
        %v882 = vadd.f32 0.0, %v881
        %v883 = vpop.f32.mrb[0].mxu0
        %884 = vdwg.mxu0
        %885 = vmatprep.subr.mxu0 0.0
        %886 = vmatpush1.msra.mxu0 %v426
        %887 = vmatprep.subr.mxu0 0.0
        %888 = vmatpush1.msra.mxu0 %v427
        %889 = vmatprep.subr.mxu0 0.0
        %890 = vmatpush1.msra.mxu0 %v428
        %891 = vmatprep.subr.mxu0 0.0
        %892 = vmatpush1.msra.mxu0 %v429
        %893 = vmatprep.subr.mxu0 0.0
        %894 = vmatpush1.msra.mxu0 %v430
        %895 = vmatprep.subr.mxu0 0.0
        %896 = vmatpush1.msra.mxu0 %v431
        %897 = vmatprep.subr.mxu0 0.0
        %898 = vmatpush1.msra.mxu0 %v432
        %899 = vmatprep.subr.mxu0 0.0
        %900 = vmatpush1.msra.mxu0 %v433
        %901 = vmatprep.subr.mxu0 0.0
        %902 = vmatpush1.msra.mxu0 %v434
        %903 = vmatprep.subr.mxu0 0.0
        %904 = vmatpush1.msra.mxu0 %v435
        %905 = vmatprep.subr.mxu0 0.0
        %906 = vmatpush1.msra.mxu0 %v436
        %907 = vmatprep.subr.mxu0 0.0
        %908 = vmatpush1.msra.mxu0 %v437
        %909 = vmatprep.subr.mxu0 0.0
        %910 = vmatpush1.msra.mxu0 %v438
        %911 = vmatprep.subr.mxu0 0.0
        %912 = vmatpush1.msra.mxu0 %v439
        %913 = vmatprep.subr.mxu0 0.0
        %914 = vmatpush1.msra.mxu0 %v440
        %915 = vmatprep.subr.mxu0 0.0
        %916 = vmatpush1.msra.mxu0 %v441
        %917 = vmatprep.subr.mxu0 0.0
        %918 = vmatpush1.msra.mxu0 %v442
        %919 = vmatprep.subr.mxu0 0.0
        %920 = vmatpush1.msra.mxu0 %v443
        %921 = vmatprep.subr.mxu0 0.0
        %922 = vmatpush1.msra.mxu0 %v444
        %923 = vmatprep.subr.mxu0 0.0
        %924 = vmatpush1.msra.mxu0 %v445
        %925 = vmatprep.subr.mxu0 0.0
        %926 = vmatpush1.msra.mxu0 %v446
        %927 = vmatprep.subr.mxu0 0.0
        %928 = vmatpush1.msra.mxu0 %v447
        %929 = vmatprep.subr.mxu0 0.0
        %930 = vmatpush1.msra.mxu0 %v448
        %931 = vmatprep.subr.mxu0 0.0
        %932 = vmatpush1.msra.mxu0 %v449
        %933 = vmatprep.subr.mxu0 0.0
        %934 = vmatpush1.msra.mxu0 %v450
        %935 = vmatprep.subr.mxu0 0.0
        %936 = vmatpush1.msra.mxu0 %v451
        %937 = vmatprep.subr.mxu0 0.0
        %938 = vmatpush1.msra.mxu0 %v452
        %939 = vmatprep.subr.mxu0 0.0
        %940 = vmatpush1.msra.mxu0 %v453
        %941 = vmatprep.subr.mxu0 0.0
        %942 = vmatpush1.msra.mxu0 %v454
        %943 = vmatprep.subr.mxu0 0.0
        %944 = vmatpush1.msra.mxu0 %v455
        %945 = vmatprep.subr.mxu0 0.0
        %946 = vmatpush1.msra.mxu0 %v456
        %947 = vmatprep.subr.mxu0 0.0
        %948 = vmatpush1.msra.mxu0 %v457
        %949 = vmatprep.mubr.f32.mxu0 %v814
        %950 = vmatmul.mubr.f32.gmra.mrb[0].mxu0 %v813
        %v951 = vpop.f32.mrb[0].mxu0
        %v952 = vadd.f32 %v882, %v951
        %v953 = vpop.f32.mrb[0].mxu0
        %954 = vdwg.mxu0
        %956 = vrot.lane.b32.xlu0 %v952, 96
        %v957 = vpop.permute.xlu0 %956
        %v958 = vsel %vm459, %v952, 0
        %v960 = vsel %vm459, %v957, 0
        %962 = vmatprep.subr.mxu0 0.0
        %963 = vmatpush1.xpose.msra.mxu0 %v960
        %964 = vmatprep.subr.mxu0 0.0
        %965 = vmatpush1.xpose.msra.mxu0 0.0
        %966 = vmatprep.subr.mxu0 0.0
        %967 = vmatpush1.xpose.msra.mxu0 0.0
        %968 = vmatprep.subr.mxu0 0.0
        %969 = vmatpush1.xpose.msra.mxu0 0.0
        %970 = vmatprep.subr.mxu0 0.0
        %971 = vmatpush1.xpose.msra.mxu0 0.0
        %972 = vmatprep.subr.mxu0 0.0
        %973 = vmatpush1.xpose.msra.mxu0 0.0
        %974 = vmatprep.subr.mxu0 0.0
        %975 = vmatpush1.xpose.msra.mxu0 0.0
        %976 = vmatprep.subr.mxu0 0.0
        %977 = vmatpush1.xpose.msra.mxu0 0.0
        %978 = vmatprep.subr.mxu0 0.0
        %979 = vmatpush1.xpose.msra.mxu0 0.0
        %980 = vmatprep.subr.mxu0 0.0
        %981 = vmatpush1.xpose.msra.mxu0 0.0
        %982 = vmatprep.subr.mxu0 0.0
        %983 = vmatpush1.xpose.msra.mxu0 0.0
        %984 = vmatprep.subr.mxu0 0.0
        %985 = vmatpush1.xpose.msra.mxu0 0.0
        %986 = vmatprep.subr.mxu0 0.0
        %987 = vmatpush1.xpose.msra.mxu0 0.0
        %988 = vmatprep.subr.mxu0 0.0
        %989 = vmatpush1.xpose.msra.mxu0 0.0
        %990 = vmatprep.subr.mxu0 0.0
        %991 = vmatpush1.xpose.msra.mxu0 0.0
        %992 = vmatprep.subr.mxu0 0.0
        %993 = vmatpush1.xpose.msra.mxu0 0.0
        %994 = vmatprep.subr.mxu0 0.0
        %995 = vmatpush1.xpose.msra.mxu0 0.0
        %996 = vmatprep.subr.mxu0 0.0
        %997 = vmatpush1.xpose.msra.mxu0 0.0
        %998 = vmatprep.subr.mxu0 0.0
        %999 = vmatpush1.xpose.msra.mxu0 0.0
        %1000 = vmatprep.subr.mxu0 0.0
        %1001 = vmatpush1.xpose.msra.mxu0 0.0
        %1002 = vmatprep.subr.mxu0 0.0
        %1003 = vmatpush1.xpose.msra.mxu0 0.0
        %1004 = vmatprep.subr.mxu0 0.0
        %1005 = vmatpush1.xpose.msra.mxu0 0.0
        %1006 = vmatprep.subr.mxu0 0.0
        %1007 = vmatpush1.xpose.msra.mxu0 0.0
        %1008 = vmatprep.subr.mxu0 0.0
        %1009 = vmatpush1.xpose.msra.mxu0 0.0
        %1010 = vmatprep.subr.mxu0 0.0
        %1011 = vmatpush1.xpose.msra.mxu0 0.0
        %1012 = vmatprep.subr.mxu0 0.0
        %1013 = vmatpush1.xpose.msra.mxu0 0.0
        %1014 = vmatprep.subr.mxu0 0.0
        %1015 = vmatpush1.xpose.msra.mxu0 0.0
        %1016 = vmatprep.subr.mxu0 0.0
        %1017 = vmatpush1.xpose.msra.mxu0 0.0
        %1018 = vmatprep.subr.mxu0 0.0
        %1019 = vmatpush1.xpose.msra.mxu0 0.0
        %1020 = vmatprep.subr.mxu0 0.0
        %1021 = vmatpush1.xpose.msra.mxu0 0.0
        %1022 = vmatprep.subr.mxu0 0.0
        %1023 = vmatpush1.xpose.msra.mxu0 0.0
        %1024 = vmatprep.subr.mxu0 0.0
        %1025 = vmatpush1.xpose.msra.mxu0 0.0
        %1026 = vmatprep.mubr.f32.mxu0 0.0
        %1027 = vmatmul.mubr.f32.gmra.mrb[0].mxu0 %v958
        %v1028 = vpop.f32.mrb[0].mxu0
        %v1029 = vadd.f32 0.0, %v1028
        %v1030 = vpop.f32.mrb[0].mxu0
        %1031 = vdwg.mxu0
        %v1032 = vmul.f32 %v1029, 0.35355338
        %v1034 = vlaneseq
        %v1035 = vshrl.u32 %v1034, 7
        %v1036 = vsub.s32 0, %v1035
        %v1037 = vrot.slane %v393, %v1036
        %v1039 = vadd.f32 %v1032, %v1037
        %v1040 = vsel %vm459, %v1039, -inf
        %1041 = vmax.xlane.f32.xlu0 %v1040
        %v1042 = vpop.xlane.xlu0 %1041
        %v1043 = vsub.f32 %v1039, %v1042
        %v1044 = vmul.f32 %v1043, 1.442695
        %v1045 = vpow.pop %v1044
        %v1046 = vsel %vm459, %v1045, 0.0
        %1047 = vadd.xlane.f32.xlu0 %v1046
        %v1048 = vpop.xlane.xlu0 %1047
        %v1049 = vrcp.pop %v1048
        %v1050 = vmul.f32 %v1045, %v1049
        %v1052 = vsel %vm459, %v1050, 0
        %1054 = vmatprep.subr.mxu0 0.0
        %1055 = vmatpush1.msra.mxu0 %v808
        %1056 = vmatprep.subr.mxu0 0.0
        %1057 = vmatpush1.msra.mxu0 0.0
        %1058 = vmatprep.subr.mxu0 0.0
        %1059 = vmatpush1.msra.mxu0 0.0
        %1060 = vmatprep.subr.mxu0 0.0
        %1061 = vmatpush1.msra.mxu0 0.0
        %1062 = vmatprep.subr.mxu0 0.0
        %1063 = vmatpush1.msra.mxu0 0.0
        %1064 = vmatprep.subr.mxu0 0.0
        %1065 = vmatpush1.msra.mxu0 0.0
        %1066 = vmatprep.subr.mxu0 0.0
        %1067 = vmatpush1.msra.mxu0 0.0
        %1068 = vmatprep.subr.mxu0 0.0
        %1069 = vmatpush1.msra.mxu0 0.0
        %1070 = vmatprep.subr.mxu0 0.0
        %1071 = vmatpush1.msra.mxu0 0.0
        %1072 = vmatprep.subr.mxu0 0.0
        %1073 = vmatpush1.msra.mxu0 0.0
        %1074 = vmatprep.subr.mxu0 0.0
        %1075 = vmatpush1.msra.mxu0 0.0
        %1076 = vmatprep.subr.mxu0 0.0
        %1077 = vmatpush1.msra.mxu0 0.0
        %1078 = vmatprep.subr.mxu0 0.0
        %1079 = vmatpush1.msra.mxu0 0.0
        %1080 = vmatprep.subr.mxu0 0.0
        %1081 = vmatpush1.msra.mxu0 0.0
        %1082 = vmatprep.subr.mxu0 0.0
        %1083 = vmatpush1.msra.mxu0 0.0
        %1084 = vmatprep.subr.mxu0 0.0
        %1085 = vmatpush1.msra.mxu0 0.0
        %1086 = vmatprep.subr.mxu0 0.0
        %1087 = vmatpush1.msra.mxu0 0.0
        %1088 = vmatprep.subr.mxu0 0.0
        %1089 = vmatpush1.msra.mxu0 0.0
        %1090 = vmatprep.subr.mxu0 0.0
        %1091 = vmatpush1.msra.mxu0 0.0
        %1092 = vmatprep.subr.mxu0 0.0
        %1093 = vmatpush1.msra.mxu0 0.0
        %1094 = vmatprep.subr.mxu0 0.0
        %1095 = vmatpush1.msra.mxu0 0.0
        %1096 = vmatprep.subr.mxu0 0.0
        %1097 = vmatpush1.msra.mxu0 0.0
        %1098 = vmatprep.subr.mxu0 0.0
        %1099 = vmatpush1.msra.mxu0 0.0
        %1100 = vmatprep.subr.mxu0 0.0
        %1101 = vmatpush1.msra.mxu0 0.0
        %1102 = vmatprep.subr.mxu0 0.0
        %1103 = vmatpush1.msra.mxu0 0.0
        %1104 = vmatprep.subr.mxu0 0.0
        %1105 = vmatpush1.msra.mxu0 0.0
        %1106 = vmatprep.subr.mxu0 0.0
        %1107 = vmatpush1.msra.mxu0 0.0
        %1108 = vmatprep.subr.mxu0 0.0
        %1109 = vmatpush1.msra.mxu0 0.0
        %1110 = vmatprep.subr.mxu0 0.0
        %1111 = vmatpush1.msra.mxu0 0.0
        %1112 = vmatprep.subr.mxu0 0.0
        %1113 = vmatpush1.msra.mxu0 0.0
        %1114 = vmatprep.subr.mxu0 0.0
        %1115 = vmatpush1.msra.mxu0 0.0
        %1116 = vmatprep.subr.mxu0 0.0
        %1117 = vmatpush1.msra.mxu0 0.0
        %1118 = vmatprep.mubr.f32.mxu0 0.0
        %1119 = vmatmul.mubr.f32.gmra.mrb[0].mxu0 %v1052
        %v1120 = vpop.f32.mrb[0].mxu0
        %v1121 = vadd.f32 0.0, %v1120
        %v1122 = vpop.f32.mrb[0].mxu0
        %1123 = vdwg.mxu0
        %1124 = vrot.lane.b32.xlu0 %v952, 120
        %v1125 = vpop.permute.xlu0 %1124
        %1126 = vrot.lane.b32.xlu0 %v952, 88
        %v1127 = vpop.permute.xlu0 %1126
        %v1128 = vsel %vm459, %v1125, 0
        %v1130 = vsel %vm459, %v1127, 0
        %1132 = vmatprep.subr.mxu0 0.0
        %1133 = vmatpush1.xpose.msra.mxu0 %v1130
        %1134 = vmatprep.subr.mxu0 0.0
        %1135 = vmatpush1.xpose.msra.mxu0 0.0
        %1136 = vmatprep.subr.mxu0 0.0
        %1137 = vmatpush1.xpose.msra.mxu0 0.0
        %1138 = vmatprep.subr.mxu0 0.0
        %1139 = vmatpush1.xpose.msra.mxu0 0.0
        %1140 = vmatprep.subr.mxu0 0.0
        %1141 = vmatpush1.xpose.msra.mxu0 0.0
        %1142 = vmatprep.subr.mxu0 0.0
        %1143 = vmatpush1.xpose.msra.mxu0 0.0
        %1144 = vmatprep.subr.mxu0 0.0
        %1145 = vmatpush1.xpose.msra.mxu0 0.0
        %1146 = vmatprep.subr.mxu0 0.0
        %1147 = vmatpush1.xpose.msra.mxu0 0.0
        %1148 = vmatprep.subr.mxu0 0.0
        %1149 = vmatpush1.xpose.msra.mxu0 0.0
        %1150 = vmatprep.subr.mxu0 0.0
        %1151 = vmatpush1.xpose.msra.mxu0 0.0
        %1152 = vmatprep.subr.mxu0 0.0
        %1153 = vmatpush1.xpose.msra.mxu0 0.0
        %1154 = vmatprep.subr.mxu0 0.0
        %1155 = vmatpush1.xpose.msra.mxu0 0.0
        %1156 = vmatprep.subr.mxu0 0.0
        %1157 = vmatpush1.xpose.msra.mxu0 0.0
        %1158 = vmatprep.subr.mxu0 0.0
        %1159 = vmatpush1.xpose.msra.mxu0 0.0
        %1160 = vmatprep.subr.mxu0 0.0
        %1161 = vmatpush1.xpose.msra.mxu0 0.0
        %1162 = vmatprep.subr.mxu0 0.0
        %1163 = vmatpush1.xpose.msra.mxu0 0.0
        %1164 = vmatprep.subr.mxu0 0.0
        %1165 = vmatpush1.xpose.msra.mxu0 0.0
        %1166 = vmatprep.subr.mxu0 0.0
        %1167 = vmatpush1.xpose.msra.mxu0 0.0
        %1168 = vmatprep.subr.mxu0 0.0
        %1169 = vmatpush1.xpose.msra.mxu0 0.0
        %1170 = vmatprep.subr.mxu0 0.0
        %1171 = vmatpush1.xpose.msra.mxu0 0.0
        %1172 = vmatprep.subr.mxu0 0.0
        %1173 = vmatpush1.xpose.msra.mxu0 0.0
        %1174 = vmatprep.subr.mxu0 0.0
        %1175 = vmatpush1.xpose.msra.mxu0 0.0
        %1176 = vmatprep.subr.mxu0 0.0
        %1177 = vmatpush1.xpose.msra.mxu0 0.0
        %1178 = vmatprep.subr.mxu0 0.0
        %1179 = vmatpush1.xpose.msra.mxu0 0.0
        %1180 = vmatprep.subr.mxu0 0.0
        %1181 = vmatpush1.xpose.msra.mxu0 0.0
        %1182 = vmatprep.subr.mxu0 0.0
        %1183 = vmatpush1.xpose.msra.mxu0 0.0
        %1184 = vmatprep.subr.mxu0 0.0
        %1185 = vmatpush1.xpose.msra.mxu0 0.0
        %1186 = vmatprep.subr.mxu0 0.0
        %1187 = vmatpush1.xpose.msra.mxu0 0.0
        %1188 = vmatprep.subr.mxu0 0.0
        %1189 = vmatpush1.xpose.msra.mxu0 0.0
        %1190 = vmatprep.subr.mxu0 0.0
        %1191 = vmatpush1.xpose.msra.mxu0 0.0
        %1192 = vmatprep.subr.mxu0 0.0
        %1193 = vmatpush1.xpose.msra.mxu0 0.0
        %1194 = vmatprep.subr.mxu0 0.0
        %1195 = vmatpush1.xpose.msra.mxu0 0.0
        %1196 = vmatprep.mubr.f32.mxu0 0.0
        %1197 = vmatmul.mubr.f32.gmra.mrb[0].mxu0 %v1128
        %v1198 = vpop.f32.mrb[0].mxu0
        %v1199 = vadd.f32 0.0, %v1198
        %v1200 = vpop.f32.mrb[0].mxu0
        %1201 = vdwg.mxu0
        %v1202 = vmul.f32 %v1199, 0.35355338
        %v1203 = vadd.f32 %v1202, %v1037
        %v1204 = vsel %vm459, %v1203, -inf
        %1205 = vmax.xlane.f32.xlu0 %v1204
        %v1206 = vpop.xlane.xlu0 %1205
        %v1207 = vsub.f32 %v1203, %v1206
        %v1208 = vmul.f32 %v1207, 1.442695
        %v1209 = vpow.pop %v1208
        %v1210 = vsel %vm459, %v1209, 0.0
        %1211 = vadd.xlane.f32.xlu0 %v1210
        %v1212 = vpop.xlane.xlu0 %1211
        %v1213 = vrcp.pop %v1212
        %v1214 = vmul.f32 %v1209, %v1213
        %1216 = vrot.lane.b32.xlu0 %v808, 120
        %v1217 = vpop.permute.xlu0 %1216
        %v1220 = vsel %vm459, %v1214, 0
        %1222 = vmatprep.subr.mxu0 0.0
        %1223 = vmatpush1.msra.mxu0 %v1217
        %1224 = vmatprep.subr.mxu0 0.0
        %1225 = vmatpush1.msra.mxu0 0.0
        %1226 = vmatprep.subr.mxu0 0.0
        %1227 = vmatpush1.msra.mxu0 0.0
        %1228 = vmatprep.subr.mxu0 0.0
        %1229 = vmatpush1.msra.mxu0 0.0
        %1230 = vmatprep.subr.mxu0 0.0
        %1231 = vmatpush1.msra.mxu0 0.0
        %1232 = vmatprep.subr.mxu0 0.0
        %1233 = vmatpush1.msra.mxu0 0.0
        %1234 = vmatprep.subr.mxu0 0.0
        %1235 = vmatpush1.msra.mxu0 0.0
        %1236 = vmatprep.subr.mxu0 0.0
        %1237 = vmatpush1.msra.mxu0 0.0
        %1238 = vmatprep.subr.mxu0 0.0
        %1239 = vmatpush1.msra.mxu0 0.0
        %1240 = vmatprep.subr.mxu0 0.0
        %1241 = vmatpush1.msra.mxu0 0.0
        %1242 = vmatprep.subr.mxu0 0.0
        %1243 = vmatpush1.msra.mxu0 0.0
        %1244 = vmatprep.subr.mxu0 0.0
        %1245 = vmatpush1.msra.mxu0 0.0
        %1246 = vmatprep.subr.mxu0 0.0
        %1247 = vmatpush1.msra.mxu0 0.0
        %1248 = vmatprep.subr.mxu0 0.0
        %1249 = vmatpush1.msra.mxu0 0.0
        %1250 = vmatprep.subr.mxu0 0.0
        %1251 = vmatpush1.msra.mxu0 0.0
        %1252 = vmatprep.subr.mxu0 0.0
        %1253 = vmatpush1.msra.mxu0 0.0
        %1254 = vmatprep.subr.mxu0 0.0
        %1255 = vmatpush1.msra.mxu0 0.0
        %1256 = vmatprep.subr.mxu0 0.0
        %1257 = vmatpush1.msra.mxu0 0.0
        %1258 = vmatprep.subr.mxu0 0.0
        %1259 = vmatpush1.msra.mxu0 0.0
        %1260 = vmatprep.subr.mxu0 0.0
        %1261 = vmatpush1.msra.mxu0 0.0
        %1262 = vmatprep.subr.mxu0 0.0
        %1263 = vmatpush1.msra.mxu0 0.0
        %1264 = vmatprep.subr.mxu0 0.0
        %1265 = vmatpush1.msra.mxu0 0.0
        %1266 = vmatprep.subr.mxu0 0.0
        %1267 = vmatpush1.msra.mxu0 0.0
        %1268 = vmatprep.subr.mxu0 0.0
        %1269 = vmatpush1.msra.mxu0 0.0
        %1270 = vmatprep.subr.mxu0 0.0
        %1271 = vmatpush1.msra.mxu0 0.0
        %1272 = vmatprep.subr.mxu0 0.0
        %1273 = vmatpush1.msra.mxu0 0.0
        %1274 = vmatprep.subr.mxu0 0.0
        %1275 = vmatpush1.msra.mxu0 0.0
        %1276 = vmatprep.subr.mxu0 0.0
        %1277 = vmatpush1.msra.mxu0 0.0
        %1278 = vmatprep.subr.mxu0 0.0
        %1279 = vmatpush1.msra.mxu0 0.0
        %1280 = vmatprep.subr.mxu0 0.0
        %1281 = vmatpush1.msra.mxu0 0.0
        %1282 = vmatprep.subr.mxu0 0.0
        %1283 = vmatpush1.msra.mxu0 0.0
        %1284 = vmatprep.subr.mxu0 0.0
        %1285 = vmatpush1.msra.mxu0 0.0
        %1286 = vmatprep.mubr.f32.mxu0 0.0
        %1287 = vmatmul.mubr.f32.gmra.mrb[0].mxu0 %v1220
        %v1288 = vpop.f32.mrb[0].mxu0
        %v1289 = vadd.f32 0.0, %v1288
        %v1290 = vpop.f32.mrb[0].mxu0
        %1291 = vdwg.mxu0
        %1292 = vrot.lane.b32.xlu0 %v952, 112
        %v1293 = vpop.permute.xlu0 %1292
        %1294 = vrot.lane.b32.xlu0 %v952, 80
        %v1295 = vpop.permute.xlu0 %1294
        %v1296 = vsel %vm459, %v1293, 0
        %v1298 = vsel %vm459, %v1295, 0
        %1300 = vmatprep.subr.mxu0 0.0
        %1301 = vmatpush1.xpose.msra.mxu0 %v1298
        %1302 = vmatprep.subr.mxu0 0.0
        %1303 = vmatpush1.xpose.msra.mxu0 0.0
        %1304 = vmatprep.subr.mxu0 0.0
        %1305 = vmatpush1.xpose.msra.mxu0 0.0
        %1306 = vmatprep.subr.mxu0 0.0
        %1307 = vmatpush1.xpose.msra.mxu0 0.0
        %1308 = vmatprep.subr.mxu0 0.0
        %1309 = vmatpush1.xpose.msra.mxu0 0.0
        %1310 = vmatprep.subr.mxu0 0.0
        %1311 = vmatpush1.xpose.msra.mxu0 0.0
        %1312 = vmatprep.subr.mxu0 0.0
        %1313 = vmatpush1.xpose.msra.mxu0 0.0
        %1314 = vmatprep.subr.mxu0 0.0
        %1315 = vmatpush1.xpose.msra.mxu0 0.0
        %1316 = vmatprep.subr.mxu0 0.0
        %1317 = vmatpush1.xpose.msra.mxu0 0.0
        %1318 = vmatprep.subr.mxu0 0.0
        %1319 = vmatpush1.xpose.msra.mxu0 0.0
        %1320 = vmatprep.subr.mxu0 0.0
        %1321 = vmatpush1.xpose.msra.mxu0 0.0
        %1322 = vmatprep.subr.mxu0 0.0
        %1323 = vmatpush1.xpose.msra.mxu0 0.0
        %1324 = vmatprep.subr.mxu0 0.0
        %1325 = vmatpush1.xpose.msra.mxu0 0.0
        %1326 = vmatprep.subr.mxu0 0.0
        %1327 = vmatpush1.xpose.msra.mxu0 0.0
        %1328 = vmatprep.subr.mxu0 0.0
        %1329 = vmatpush1.xpose.msra.mxu0 0.0
        %1330 = vmatprep.subr.mxu0 0.0
        %1331 = vmatpush1.xpose.msra.mxu0 0.0
        %1332 = vmatprep.subr.mxu0 0.0
        %1333 = vmatpush1.xpose.msra.mxu0 0.0
        %1334 = vmatprep.subr.mxu0 0.0
        %1335 = vmatpush1.xpose.msra.mxu0 0.0
        %1336 = vmatprep.subr.mxu0 0.0
        %1337 = vmatpush1.xpose.msra.mxu0 0.0
        %1338 = vmatprep.subr.mxu0 0.0
        %1339 = vmatpush1.xpose.msra.mxu0 0.0
        %1340 = vmatprep.subr.mxu0 0.0
        %1341 = vmatpush1.xpose.msra.mxu0 0.0
        %1342 = vmatprep.subr.mxu0 0.0
        %1343 = vmatpush1.xpose.msra.mxu0 0.0
        %1344 = vmatprep.subr.mxu0 0.0
        %1345 = vmatpush1.xpose.msra.mxu0 0.0
        %1346 = vmatprep.subr.mxu0 0.0
        %1347 = vmatpush1.xpose.msra.mxu0 0.0
        %1348 = vmatprep.subr.mxu0 0.0
        %1349 = vmatpush1.xpose.msra.mxu0 0.0
        %1350 = vmatprep.subr.mxu0 0.0
        %1351 = vmatpush1.xpose.msra.mxu0 0.0
        %1352 = vmatprep.subr.mxu0 0.0
        %1353 = vmatpush1.xpose.msra.mxu0 0.0
        %1354 = vmatprep.subr.mxu0 0.0
        %1355 = vmatpush1.xpose.msra.mxu0 0.0
        %1356 = vmatprep.subr.mxu0 0.0
        %1357 = vmatpush1.xpose.msra.mxu0 0.0
        %1358 = vmatprep.subr.mxu0 0.0
        %1359 = vmatpush1.xpose.msra.mxu0 0.0
        %1360 = vmatprep.subr.mxu0 0.0
        %1361 = vmatpush1.xpose.msra.mxu0 0.0
        %1362 = vmatprep.subr.mxu0 0.0
        %1363 = vmatpush1.xpose.msra.mxu0 0.0
        %1364 = vmatprep.mubr.f32.mxu0 0.0
        %1365 = vmatmul.mubr.f32.gmra.mrb[0].mxu0 %v1296
        %v1366 = vpop.f32.mrb[0].mxu0
        %v1367 = vadd.f32 0.0, %v1366
        %v1368 = vpop.f32.mrb[0].mxu0
        %1369 = vdwg.mxu0
        %v1370 = vmul.f32 %v1367, 0.35355338
        %v1371 = vadd.f32 %v1370, %v1037
        %v1372 = vsel %vm459, %v1371, -inf
        %1373 = vmax.xlane.f32.xlu0 %v1372
        %v1374 = vpop.xlane.xlu0 %1373
        %v1375 = vsub.f32 %v1371, %v1374
        %v1376 = vmul.f32 %v1375, 1.442695
        %v1377 = vpow.pop %v1376
        %v1378 = vsel %vm459, %v1377, 0.0
        %1379 = vadd.xlane.f32.xlu0 %v1378
        %v1380 = vpop.xlane.xlu0 %1379
        %v1381 = vrcp.pop %v1380
        %v1382 = vmul.f32 %v1377, %v1381
        %1383 = vrot.lane.b32.xlu0 %v808, 112
        %v1384 = vpop.permute.xlu0 %1383
        %v1387 = vsel %vm459, %v1382, 0
        %1389 = vmatprep.subr.mxu0 0.0
        %1390 = vmatpush1.msra.mxu0 %v1384
        %1391 = vmatprep.subr.mxu0 0.0
        %1392 = vmatpush1.msra.mxu0 0.0
        %1393 = vmatprep.subr.mxu0 0.0
        %1394 = vmatpush1.msra.mxu0 0.0
        %1395 = vmatprep.subr.mxu0 0.0
        %1396 = vmatpush1.msra.mxu0 0.0
        %1397 = vmatprep.subr.mxu0 0.0
        %1398 = vmatpush1.msra.mxu0 0.0
        %1399 = vmatprep.subr.mxu0 0.0
        %1400 = vmatpush1.msra.mxu0 0.0
        %1401 = vmatprep.subr.mxu0 0.0
        %1402 = vmatpush1.msra.mxu0 0.0
        %1403 = vmatprep.subr.mxu0 0.0
        %1404 = vmatpush1.msra.mxu0 0.0
        %1405 = vmatprep.subr.mxu0 0.0
        %1406 = vmatpush1.msra.mxu0 0.0
        %1407 = vmatprep.subr.mxu0 0.0
        %1408 = vmatpush1.msra.mxu0 0.0
        %1409 = vmatprep.subr.mxu0 0.0
        %1410 = vmatpush1.msra.mxu0 0.0
        %1411 = vmatprep.subr.mxu0 0.0
        %1412 = vmatpush1.msra.mxu0 0.0
        %1413 = vmatprep.subr.mxu0 0.0
        %1414 = vmatpush1.msra.mxu0 0.0
        %1415 = vmatprep.subr.mxu0 0.0
        %1416 = vmatpush1.msra.mxu0 0.0
        %1417 = vmatprep.subr.mxu0 0.0
        %1418 = vmatpush1.msra.mxu0 0.0
        %1419 = vmatprep.subr.mxu0 0.0
        %1420 = vmatpush1.msra.mxu0 0.0
        %1421 = vmatprep.subr.mxu0 0.0
        %1422 = vmatpush1.msra.mxu0 0.0
        %1423 = vmatprep.subr.mxu0 0.0
        %1424 = vmatpush1.msra.mxu0 0.0
        %1425 = vmatprep.subr.mxu0 0.0
        %1426 = vmatpush1.msra.mxu0 0.0
        %1427 = vmatprep.subr.mxu0 0.0
        %1428 = vmatpush1.msra.mxu0 0.0
        %1429 = vmatprep.subr.mxu0 0.0
        %1430 = vmatpush1.msra.mxu0 0.0
        %1431 = vmatprep.subr.mxu0 0.0
        %1432 = vmatpush1.msra.mxu0 0.0
        %1433 = vmatprep.subr.mxu0 0.0
        %1434 = vmatpush1.msra.mxu0 0.0
        %1435 = vmatprep.subr.mxu0 0.0
        %1436 = vmatpush1.msra.mxu0 0.0
        %1437 = vmatprep.subr.mxu0 0.0
        %1438 = vmatpush1.msra.mxu0 0.0
        %1439 = vmatprep.subr.mxu0 0.0
        %1440 = vmatpush1.msra.mxu0 0.0
        %1441 = vmatprep.subr.mxu0 0.0
        %1442 = vmatpush1.msra.mxu0 0.0
        %1443 = vmatprep.subr.mxu0 0.0
        %1444 = vmatpush1.msra.mxu0 0.0
        %1445 = vmatprep.subr.mxu0 0.0
        %1446 = vmatpush1.msra.mxu0 0.0
        %1447 = vmatprep.subr.mxu0 0.0
        %1448 = vmatpush1.msra.mxu0 0.0
        %1449 = vmatprep.subr.mxu0 0.0
        %1450 = vmatpush1.msra.mxu0 0.0
        %1451 = vmatprep.subr.mxu0 0.0
        %1452 = vmatpush1.msra.mxu0 0.0
        %1453 = vmatprep.mubr.f32.mxu0 0.0
        %1454 = vmatmul.mubr.f32.gmra.mrb[0].mxu0 %v1387
        %v1455 = vpop.f32.mrb[0].mxu0
        %v1456 = vadd.f32 0.0, %v1455
        %v1457 = vpop.f32.mrb[0].mxu0
        %1458 = vdwg.mxu0
        %1459 = vrot.lane.b32.xlu0 %v952, 104
        %v1460 = vpop.permute.xlu0 %1459
        %1461 = vrot.lane.b32.xlu0 %v952, 72
        %v1462 = vpop.permute.xlu0 %1461
        %v1463 = vsel %vm459, %v1460, 0
        %v1465 = vsel %vm459, %v1462, 0
        %1467 = vmatprep.subr.mxu0 0.0
        %1468 = vmatpush1.xpose.msra.mxu0 %v1465
        %1469 = vmatprep.subr.mxu0 0.0
        %1470 = vmatpush1.xpose.msra.mxu0 0.0
        %1471 = vmatprep.subr.mxu0 0.0
        %1472 = vmatpush1.xpose.msra.mxu0 0.0
        %1473 = vmatprep.subr.mxu0 0.0
        %1474 = vmatpush1.xpose.msra.mxu0 0.0
        %1475 = vmatprep.subr.mxu0 0.0
        %1476 = vmatpush1.xpose.msra.mxu0 0.0
        %1477 = vmatprep.subr.mxu0 0.0
        %1478 = vmatpush1.xpose.msra.mxu0 0.0
        %1479 = vmatprep.subr.mxu0 0.0
        %1480 = vmatpush1.xpose.msra.mxu0 0.0
        %1481 = vmatprep.subr.mxu0 0.0
        %1482 = vmatpush1.xpose.msra.mxu0 0.0
        %1483 = vmatprep.subr.mxu0 0.0
        %1484 = vmatpush1.xpose.msra.mxu0 0.0
        %1485 = vmatprep.subr.mxu0 0.0
        %1486 = vmatpush1.xpose.msra.mxu0 0.0
        %1487 = vmatprep.subr.mxu0 0.0
        %1488 = vmatpush1.xpose.msra.mxu0 0.0
        %1489 = vmatprep.subr.mxu0 0.0
        %1490 = vmatpush1.xpose.msra.mxu0 0.0
        %1491 = vmatprep.subr.mxu0 0.0
        %1492 = vmatpush1.xpose.msra.mxu0 0.0
        %1493 = vmatprep.subr.mxu0 0.0
        %1494 = vmatpush1.xpose.msra.mxu0 0.0
        %1495 = vmatprep.subr.mxu0 0.0
        %1496 = vmatpush1.xpose.msra.mxu0 0.0
        %1497 = vmatprep.subr.mxu0 0.0
        %1498 = vmatpush1.xpose.msra.mxu0 0.0
        %1499 = vmatprep.subr.mxu0 0.0
        %1500 = vmatpush1.xpose.msra.mxu0 0.0
        %1501 = vmatprep.subr.mxu0 0.0
        %1502 = vmatpush1.xpose.msra.mxu0 0.0
        %1503 = vmatprep.subr.mxu0 0.0
        %1504 = vmatpush1.xpose.msra.mxu0 0.0
        %1505 = vmatprep.subr.mxu0 0.0
        %1506 = vmatpush1.xpose.msra.mxu0 0.0
        %1507 = vmatprep.subr.mxu0 0.0
        %1508 = vmatpush1.xpose.msra.mxu0 0.0
        %1509 = vmatprep.subr.mxu0 0.0
        %1510 = vmatpush1.xpose.msra.mxu0 0.0
        %1511 = vmatprep.subr.mxu0 0.0
        %1512 = vmatpush1.xpose.msra.mxu0 0.0
        %1513 = vmatprep.subr.mxu0 0.0
        %1514 = vmatpush1.xpose.msra.mxu0 0.0
        %1515 = vmatprep.subr.mxu0 0.0
        %1516 = vmatpush1.xpose.msra.mxu0 0.0
        %1517 = vmatprep.subr.mxu0 0.0
        %1518 = vmatpush1.xpose.msra.mxu0 0.0
        %1519 = vmatprep.subr.mxu0 0.0
        %1520 = vmatpush1.xpose.msra.mxu0 0.0
        %1521 = vmatprep.subr.mxu0 0.0
        %1522 = vmatpush1.xpose.msra.mxu0 0.0
        %1523 = vmatprep.subr.mxu0 0.0
        %1524 = vmatpush1.xpose.msra.mxu0 0.0
        %1525 = vmatprep.subr.mxu0 0.0
        %1526 = vmatpush1.xpose.msra.mxu0 0.0
        %1527 = vmatprep.subr.mxu0 0.0
        %1528 = vmatpush1.xpose.msra.mxu0 0.0
        %1529 = vmatprep.subr.mxu0 0.0
        %1530 = vmatpush1.xpose.msra.mxu0 0.0
        %1531 = vmatprep.mubr.f32.mxu0 0.0
        %1532 = vmatmul.mubr.f32.gmra.mrb[0].mxu0 %v1463
        %v1533 = vpop.f32.mrb[0].mxu0
        %v1534 = vadd.f32 0.0, %v1533
        %v1535 = vpop.f32.mrb[0].mxu0
        %1536 = vdwg.mxu0
        %v1537 = vmul.f32 %v1534, 0.35355338
        %v1538 = vadd.f32 %v1537, %v1037
        %v1539 = vsel %vm459, %v1538, -inf
        %1540 = vmax.xlane.f32.xlu0 %v1539
        %v1541 = vpop.xlane.xlu0 %1540
        %v1542 = vsub.f32 %v1538, %v1541
        %v1543 = vmul.f32 %v1542, 1.442695
        %v1544 = vpow.pop %v1543
        %v1545 = vsel %vm459, %v1544, 0.0
        %1546 = vadd.xlane.f32.xlu0 %v1545
        %v1547 = vpop.xlane.xlu0 %1546
        %v1548 = vrcp.pop %v1547
        %v1549 = vmul.f32 %v1544, %v1548
        %1550 = vrot.lane.b32.xlu0 %v808, 104
        %v1551 = vpop.permute.xlu0 %1550
        %v1554 = vsel %vm459, %v1549, 0
        %1556 = vmatprep.subr.mxu0 0.0
        %1557 = vmatpush1.msra.mxu0 %v1551
        %1558 = vmatprep.subr.mxu0 0.0
        %1559 = vmatpush1.msra.mxu0 0.0
        %1560 = vmatprep.subr.mxu0 0.0
        %1561 = vmatpush1.msra.mxu0 0.0
        %1562 = vmatprep.subr.mxu0 0.0
        %1563 = vmatpush1.msra.mxu0 0.0
        %1564 = vmatprep.subr.mxu0 0.0
        %1565 = vmatpush1.msra.mxu0 0.0
        %1566 = vmatprep.subr.mxu0 0.0
        %1567 = vmatpush1.msra.mxu0 0.0
        %1568 = vmatprep.subr.mxu0 0.0
        %1569 = vmatpush1.msra.mxu0 0.0
        %1570 = vmatprep.subr.mxu0 0.0
        %1571 = vmatpush1.msra.mxu0 0.0
        %1572 = vmatprep.subr.mxu0 0.0
        %1573 = vmatpush1.msra.mxu0 0.0
        %1574 = vmatprep.subr.mxu0 0.0
        %1575 = vmatpush1.msra.mxu0 0.0
        %1576 = vmatprep.subr.mxu0 0.0
        %1577 = vmatpush1.msra.mxu0 0.0
        %1578 = vmatprep.subr.mxu0 0.0
        %1579 = vmatpush1.msra.mxu0 0.0
        %1580 = vmatprep.subr.mxu0 0.0
        %1581 = vmatpush1.msra.mxu0 0.0
        %1582 = vmatprep.subr.mxu0 0.0
        %1583 = vmatpush1.msra.mxu0 0.0
        %1584 = vmatprep.subr.mxu0 0.0
        %1585 = vmatpush1.msra.mxu0 0.0
        %1586 = vmatprep.subr.mxu0 0.0
        %1587 = vmatpush1.msra.mxu0 0.0
        %1588 = vmatprep.subr.mxu0 0.0
        %1589 = vmatpush1.msra.mxu0 0.0
        %1590 = vmatprep.subr.mxu0 0.0
        %1591 = vmatpush1.msra.mxu0 0.0
        %1592 = vmatprep.subr.mxu0 0.0
        %1593 = vmatpush1.msra.mxu0 0.0
        %1594 = vmatprep.subr.mxu0 0.0
        %1595 = vmatpush1.msra.mxu0 0.0
        %1596 = vmatprep.subr.mxu0 0.0
        %1597 = vmatpush1.msra.mxu0 0.0
        %1598 = vmatprep.subr.mxu0 0.0
        %1599 = vmatpush1.msra.mxu0 0.0
        %1600 = vmatprep.subr.mxu0 0.0
        %1601 = vmatpush1.msra.mxu0 0.0
        %1602 = vmatprep.subr.mxu0 0.0
        %1603 = vmatpush1.msra.mxu0 0.0
        %1604 = vmatprep.subr.mxu0 0.0
        %1605 = vmatpush1.msra.mxu0 0.0
        %1606 = vmatprep.subr.mxu0 0.0
        %1607 = vmatpush1.msra.mxu0 0.0
        %1608 = vmatprep.subr.mxu0 0.0
        %1609 = vmatpush1.msra.mxu0 0.0
        %1610 = vmatprep.subr.mxu0 0.0
        %1611 = vmatpush1.msra.mxu0 0.0
        %1612 = vmatprep.subr.mxu0 0.0
        %1613 = vmatpush1.msra.mxu0 0.0
        %1614 = vmatprep.subr.mxu0 0.0
        %1615 = vmatpush1.msra.mxu0 0.0
        %1616 = vmatprep.subr.mxu0 0.0
        %1617 = vmatpush1.msra.mxu0 0.0
        %1618 = vmatprep.subr.mxu0 0.0
        %1619 = vmatpush1.msra.mxu0 0.0
        %1620 = vmatprep.mubr.f32.mxu0 0.0
        %1621 = vmatmul.mubr.f32.gmra.mrb[0].mxu0 %v1554
        %v1622 = vpop.f32.mrb[0].mxu0
        %v1623 = vadd.f32 0.0, %v1622
        %v1624 = vpop.f32.mrb[0].mxu0
        %1625 = vdwg.mxu0
        %1627 = vrot.lane.b32.xlu0 %v1289, 8
        %v1628 = vpop.permute.xlu0 %1627
        %1631 = vrot.lane.b32.xlu0 %v1456, 16
        %v1632 = vpop.permute.xlu0 %1631
        %1635 = vrot.lane.b32.xlu0 %v1623, 24
        %v1636 = vpop.permute.xlu0 %1635
        %v1638 = vsel %vm459, %v1121, %v1628
        %vm1639 = vcmask 130048
        %v1640 = vsel %vm1639, %v1638, %v1632
        %vm1641 = vcmask 195584
        %v1642 = vsel %vm1641, %v1640, %v1636
        %v1644 = vsel %vm595, %v1642, 0
        %1646 = vmatprep.subr.mxu0 0.0
        %1647 = vmatpush1.msra.mxu0 %v570
        %1648 = vmatprep.subr.mxu0 0.0
        %1649 = vmatpush1.msra.mxu0 %v571
        %1650 = vmatprep.subr.mxu0 0.0
        %1651 = vmatpush1.msra.mxu0 %v572
        %1652 = vmatprep.subr.mxu0 0.0
        %1653 = vmatpush1.msra.mxu0 %v573
        %1654 = vmatprep.subr.mxu0 0.0
        %1655 = vmatpush1.msra.mxu0 0.0
        %1656 = vmatprep.subr.mxu0 0.0
        %1657 = vmatpush1.msra.mxu0 0.0
        %1658 = vmatprep.subr.mxu0 0.0
        %1659 = vmatpush1.msra.mxu0 0.0
        %1660 = vmatprep.subr.mxu0 0.0
        %1661 = vmatpush1.msra.mxu0 0.0
        %1662 = vmatprep.subr.mxu0 0.0
        %1663 = vmatpush1.msra.mxu0 0.0
        %1664 = vmatprep.subr.mxu0 0.0
        %1665 = vmatpush1.msra.mxu0 0.0
        %1666 = vmatprep.subr.mxu0 0.0
        %1667 = vmatpush1.msra.mxu0 0.0
        %1668 = vmatprep.subr.mxu0 0.0
        %1669 = vmatpush1.msra.mxu0 0.0
        %1670 = vmatprep.subr.mxu0 0.0
        %1671 = vmatpush1.msra.mxu0 0.0
        %1672 = vmatprep.subr.mxu0 0.0
        %1673 = vmatpush1.msra.mxu0 0.0
        %1674 = vmatprep.subr.mxu0 0.0
        %1675 = vmatpush1.msra.mxu0 0.0
        %1676 = vmatprep.subr.mxu0 0.0
        %1677 = vmatpush1.msra.mxu0 0.0
        %1678 = vmatprep.subr.mxu0 0.0
        %1679 = vmatpush1.msra.mxu0 0.0
        %1680 = vmatprep.subr.mxu0 0.0
        %1681 = vmatpush1.msra.mxu0 0.0
        %1682 = vmatprep.subr.mxu0 0.0
        %1683 = vmatpush1.msra.mxu0 0.0
        %1684 = vmatprep.subr.mxu0 0.0
        %1685 = vmatpush1.msra.mxu0 0.0
        %1686 = vmatprep.subr.mxu0 0.0
        %1687 = vmatpush1.msra.mxu0 0.0
        %1688 = vmatprep.subr.mxu0 0.0
        %1689 = vmatpush1.msra.mxu0 0.0
        %1690 = vmatprep.subr.mxu0 0.0
        %1691 = vmatpush1.msra.mxu0 0.0
        %1692 = vmatprep.subr.mxu0 0.0
        %1693 = vmatpush1.msra.mxu0 0.0
        %1694 = vmatprep.subr.mxu0 0.0
        %1695 = vmatpush1.msra.mxu0 0.0
        %1696 = vmatprep.subr.mxu0 0.0
        %1697 = vmatpush1.msra.mxu0 0.0
        %1698 = vmatprep.subr.mxu0 0.0
        %1699 = vmatpush1.msra.mxu0 0.0
        %1700 = vmatprep.subr.mxu0 0.0
        %1701 = vmatpush1.msra.mxu0 0.0
        %1702 = vmatprep.subr.mxu0 0.0
        %1703 = vmatpush1.msra.mxu0 0.0
        %1704 = vmatprep.subr.mxu0 0.0
        %1705 = vmatpush1.msra.mxu0 0.0
        %1706 = vmatprep.subr.mxu0 0.0
        %1707 = vmatpush1.msra.mxu0 0.0
        %1708 = vmatprep.subr.mxu0 0.0
        %1709 = vmatpush1.msra.mxu0 0.0
        %1710 = vmatprep.mubr.f32.mxu0 0.0
        %1711 = vmatmul.mubr.f32.gmra.mrb[0].mxu0 %v1644
        %v1712 = vpop.f32.mrb[0].mxu0
        %v1713 = vadd.f32 0.0, %v1712
        %v1714 = vpop.f32.mrb[0].mxu0
        %1715 = vdwg.mxu0
        %v1716 = vadd.f32 %v549, %v1713
        %v1717 = vsel %vm595, %v1716, 0.0
        %1718 = vadd.xlane.f32.xlu0 %v1717
        %v1719 = vpop.xlane.xlu0 %1718
        %v1720 = vrcp.pop 32.0
        %v1721 = vmul.f32 %v1719, %v1720
        %v1722 = vsub.f32 %v1716, %v1721
        %v1723 = vmul.f32 %v1722, %v1722
        %v1724 = vsel %vm595, %v1723, 0.0
        %1725 = vadd.xlane.f32.xlu0 %v1724
        %v1726 = vpop.xlane.xlu0 %1725
        %v1727 = vmul.f32 %v1726, %v1720
        %v1728 = vadd.f32 %v1727, 1e-05
        %v1729 = vrsqrt.pop %v1728
        %v1730 = vmul.f32 %v1722, %v1729
        %v1731 = vlaneseq
        %v1732 = vshrl.u32 %v1731, 7
        %v1733 = vsub.s32 0, %v1732
        %v1734 = vrot.slane %v594, %v1733
        %v1735 = vmul.f32 %v1730, %v1734
        %v1736 = vlaneseq
        %v1737 = vshrl.u32 %v1736, 7
        %v1738 = vsub.s32 1, %v1737
        %v1739 = vrot.slane %v594, %v1738
        %v1740 = vadd.f32 %v1735, %v1739
        %v1741 = vlaneseq
        %v1742 = vshrl.u32 %v1741, 7
        %v1743 = vsub.s32 2, %v1742
        %v1744 = vrot.slane %v594, %v1743
        %v1746 = vsel %vm595, %v1740, 0
        %1748 = vmatprep.subr.mxu0 0.0
        %1749 = vmatpush1.msra.mxu0 %v574
        %1750 = vmatprep.subr.mxu0 0.0
        %1751 = vmatpush1.msra.mxu0 %v575
        %1752 = vmatprep.subr.mxu0 0.0
        %1753 = vmatpush1.msra.mxu0 %v576
        %1754 = vmatprep.subr.mxu0 0.0
        %1755 = vmatpush1.msra.mxu0 %v577
        %1756 = vmatprep.subr.mxu0 0.0
        %1757 = vmatpush1.msra.mxu0 0.0
        %1758 = vmatprep.subr.mxu0 0.0
        %1759 = vmatpush1.msra.mxu0 0.0
        %1760 = vmatprep.subr.mxu0 0.0
        %1761 = vmatpush1.msra.mxu0 0.0
        %1762 = vmatprep.subr.mxu0 0.0
        %1763 = vmatpush1.msra.mxu0 0.0
        %1764 = vmatprep.subr.mxu0 0.0
        %1765 = vmatpush1.msra.mxu0 0.0
        %1766 = vmatprep.subr.mxu0 0.0
        %1767 = vmatpush1.msra.mxu0 0.0
        %1768 = vmatprep.subr.mxu0 0.0
        %1769 = vmatpush1.msra.mxu0 0.0
        %1770 = vmatprep.subr.mxu0 0.0
        %1771 = vmatpush1.msra.mxu0 0.0
        %1772 = vmatprep.subr.mxu0 0.0
        %1773 = vmatpush1.msra.mxu0 0.0
        %1774 = vmatprep.subr.mxu0 0.0
        %1775 = vmatpush1.msra.mxu0 0.0
        %1776 = vmatprep.subr.mxu0 0.0
        %1777 = vmatpush1.msra.mxu0 0.0
        %1778 = vmatprep.subr.mxu0 0.0
        %1779 = vmatpush1.msra.mxu0 0.0
        %1780 = vmatprep.subr.mxu0 0.0
        %1781 = vmatpush1.msra.mxu0 0.0
        %1782 = vmatprep.subr.mxu0 0.0
        %1783 = vmatpush1.msra.mxu0 0.0
        %1784 = vmatprep.subr.mxu0 0.0
        %1785 = vmatpush1.msra.mxu0 0.0
        %1786 = vmatprep.subr.mxu0 0.0
        %1787 = vmatpush1.msra.mxu0 0.0
        %1788 = vmatprep.subr.mxu0 0.0
        %1789 = vmatpush1.msra.mxu0 0.0
        %1790 = vmatprep.subr.mxu0 0.0
        %1791 = vmatpush1.msra.mxu0 0.0
        %1792 = vmatprep.subr.mxu0 0.0
        %1793 = vmatpush1.msra.mxu0 0.0
        %1794 = vmatprep.subr.mxu0 0.0
        %1795 = vmatpush1.msra.mxu0 0.0
        %1796 = vmatprep.subr.mxu0 0.0
        %1797 = vmatpush1.msra.mxu0 0.0
        %1798 = vmatprep.subr.mxu0 0.0
        %1799 = vmatpush1.msra.mxu0 0.0
        %1800 = vmatprep.subr.mxu0 0.0
        %1801 = vmatpush1.msra.mxu0 0.0
        %1802 = vmatprep.subr.mxu0 0.0
        %1803 = vmatpush1.msra.mxu0 0.0
        %1804 = vmatprep.subr.mxu0 0.0
        %1805 = vmatpush1.msra.mxu0 0.0
        %1806 = vmatprep.subr.mxu0 0.0
        %1807 = vmatpush1.msra.mxu0 0.0
        %1808 = vmatprep.subr.mxu0 0.0
        %1809 = vmatpush1.msra.mxu0 0.0
        %1810 = vmatprep.subr.mxu0 0.0
        %1811 = vmatpush1.msra.mxu0 0.0
        %1812 = vmatprep.mubr.f32.mxu0 0.0
        %1813 = vmatmul.mubr.f32.gmra.mrb[0].mxu0 %v1746
        %v1814 = vpop.f32.mrb[0].mxu0
        %v1815 = vadd.f32 %v1744, %v1814
        %v1816 = vpop.f32.mrb[0].mxu0
        %1817 = vdwg.mxu0
        %v1818 = vmax.f32 %v1815, 0.0
        %v1819 = vlaneseq
        %v1820 = vshrl.u32 %v1819, 7
        %v1821 = vsub.s32 3, %v1820
        %v1822 = vrot.slane %v594, %v1821
        %1823 = vmatprep.subr.mxu0 0.0
        %1824 = vmatpush1.msra.mxu0 %v578
        %1825 = vmatprep.subr.mxu0 0.0
        %1826 = vmatpush1.msra.mxu0 %v579
        %1827 = vmatprep.subr.mxu0 0.0
        %1828 = vmatpush1.msra.mxu0 %v580
        %1829 = vmatprep.subr.mxu0 0.0
        %1830 = vmatpush1.msra.mxu0 %v581
        %1831 = vmatprep.subr.mxu0 0.0
        %1832 = vmatpush1.msra.mxu0 %v582
        %1833 = vmatprep.subr.mxu0 0.0
        %1834 = vmatpush1.msra.mxu0 %v583
        %1835 = vmatprep.subr.mxu0 0.0
        %1836 = vmatpush1.msra.mxu0 %v584
        %1837 = vmatprep.subr.mxu0 0.0
        %1838 = vmatpush1.msra.mxu0 %v585
        %1839 = vmatprep.subr.mxu0 0.0
        %1840 = vmatpush1.msra.mxu0 %v586
        %1841 = vmatprep.subr.mxu0 0.0
        %1842 = vmatpush1.msra.mxu0 %v587
        %1843 = vmatprep.subr.mxu0 0.0
        %1844 = vmatpush1.msra.mxu0 %v588
        %1845 = vmatprep.subr.mxu0 0.0
        %1846 = vmatpush1.msra.mxu0 %v589
        %1847 = vmatprep.subr.mxu0 0.0
        %1848 = vmatpush1.msra.mxu0 %v590
        %1849 = vmatprep.subr.mxu0 0.0
        %1850 = vmatpush1.msra.mxu0 %v591
        %1851 = vmatprep.subr.mxu0 0.0
        %1852 = vmatpush1.msra.mxu0 %v592
        %1853 = vmatprep.subr.mxu0 0.0
        %1854 = vmatpush1.msra.mxu0 %v593
        %1855 = vmatprep.subr.mxu0 0.0
        %1856 = vmatpush1.msra.mxu0 0.0
        %1857 = vmatprep.subr.mxu0 0.0
        %1858 = vmatpush1.msra.mxu0 0.0
        %1859 = vmatprep.subr.mxu0 0.0
        %1860 = vmatpush1.msra.mxu0 0.0
        %1861 = vmatprep.subr.mxu0 0.0
        %1862 = vmatpush1.msra.mxu0 0.0
        %1863 = vmatprep.subr.mxu0 0.0
        %1864 = vmatpush1.msra.mxu0 0.0
        %1865 = vmatprep.subr.mxu0 0.0
        %1866 = vmatpush1.msra.mxu0 0.0
        %1867 = vmatprep.subr.mxu0 0.0
        %1868 = vmatpush1.msra.mxu0 0.0
        %1869 = vmatprep.subr.mxu0 0.0
        %1870 = vmatpush1.msra.mxu0 0.0
        %1871 = vmatprep.subr.mxu0 0.0
        %1872 = vmatpush1.msra.mxu0 0.0
        %1873 = vmatprep.subr.mxu0 0.0
        %1874 = vmatpush1.msra.mxu0 0.0
        %1875 = vmatprep.subr.mxu0 0.0
        %1876 = vmatpush1.msra.mxu0 0.0
        %1877 = vmatprep.subr.mxu0 0.0
        %1878 = vmatpush1.msra.mxu0 0.0
        %1879 = vmatprep.subr.mxu0 0.0
        %1880 = vmatpush1.msra.mxu0 0.0
        %1881 = vmatprep.subr.mxu0 0.0
        %1882 = vmatpush1.msra.mxu0 0.0
        %1883 = vmatprep.subr.mxu0 0.0
        %1884 = vmatpush1.msra.mxu0 0.0
        %1885 = vmatprep.subr.mxu0 0.0
        %1886 = vmatpush1.msra.mxu0 0.0
        %1887 = vmatprep.mubr.f32.mxu0 0.0
        %1888 = vmatmul.mubr.f32.gmra.mrb[0].mxu0 %v1818
        %v1889 = vpop.f32.mrb[0].mxu0
        %v1890 = vadd.f32 %v1822, %v1889
        %v1891 = vpop.f32.mrb[0].mxu0
        %1892 = vdwg.mxu0
        %v1893 = vadd.f32 %v1740, %v1890
        %v1894 = vsel %vm595, %v1893, 0.0
        %1895 = vadd.xlane.f32.xlu0 %v1894
        %v1896 = vpop.xlane.xlu0 %1895
        %v1897 = vmul.f32 %v1896, %v1720
        %v1898 = vsub.f32 %v1893, %v1897
        %v1899 = vmul.f32 %v1898, %v1898
        %v1900 = vsel %vm595, %v1899, 0.0
        %1901 = vadd.xlane.f32.xlu0 %v1900
        %v1902 = vpop.xlane.xlu0 %1901
        %v1903 = vmul.f32 %v1902, %v1720
        %v1904 = vadd.f32 %v1903, 1e-05
        %v1905 = vrsqrt.pop %v1904
        %v1906 = vmul.f32 %v1898, %v1905
        %v1907 = vlaneseq
        %v1908 = vshrl.u32 %v1907, 7
        %v1909 = vsub.s32 4, %v1908
        %v1910 = vrot.slane %v594, %v1909
        %v1911 = vmul.f32 %v1906, %v1910
        %v1912 = vlaneseq
        %v1913 = vshrl.u32 %v1912, 7
        %v1914 = vsub.s32 5, %v1913
        %v1915 = vrot.slane %v594, %v1914
        %v1916 = vadd.f32 %v1911, %v1915
        %s1917 = scalar_lea.vmem %s4, 160
        %v1918 = vld [vmem:[%s1917] sm:$0xff]
        %v1919 = vld [vmem:[%s1917 + $0x8] sm:$0xff]
        %v1920 = vld [vmem:[%s1917 + $0x10] sm:$0xff]
        %v1921 = vld [vmem:[%s1917 + $0x18] sm:$0xff]
        %v1922 = vld [vmem:[%s1917 + $0x20] sm:$0xff]
        %v1923 = vld [vmem:[%s1917 + $0x28] sm:$0xff]
        %v1924 = vld [vmem:[%s1917 + $0x30] sm:$0xff]
        %v1925 = vld [vmem:[%s1917 + $0x38] sm:$0xff]
        %v1926 = vld [vmem:[%s1917 + $0x40] sm:$0xff]
        %v1927 = vld [vmem:[%s1917 + $0x48] sm:$0xff]
        %v1928 = vld [vmem:[%s1917 + $0x50] sm:$0xff]
        %v1929 = vld [vmem:[%s1917 + $0x58] sm:$0xff]
        %v1930 = vld [vmem:[%s1917 + $0x60] sm:$0xff]
        %v1931 = vld [vmem:[%s1917 + $0x68] sm:$0xff]
        %v1932 = vld [vmem:[%s1917 + $0x70] sm:$0xff]
        %v1933 = vld [vmem:[%s1917 + $0x78] sm:$0xff]
        %v1934 = vld [vmem:[%s1917 + $0x80] sm:$0xff]
        %v1935 = vld [vmem:[%s1917 + $0x88] sm:$0xff]
        %v1936 = vld [vmem:[%s1917 + $0x90] sm:$0xff]
        %v1937 = vld [vmem:[%s1917 + $0x98] sm:$0xff]
        %s1938 = scalar_lea.vmem %s5, 32
        %v1939 = vld [vmem:[%s1938] sm:$0xff]
        %v1940 = vld [vmem:[%s1938 + $0x8] sm:$0xff]
        %v1941 = vld [vmem:[%s1938 + $0x10] sm:$0xff]
        %v1942 = vld [vmem:[%s1938 + $0x18] sm:$0xff]
        %s1943 = scalar_lea.vmem %s6, 32
        %v1944 = vld [vmem:[%s1943] sm:$0xff]
        %v1945 = vld [vmem:[%s1943 + $0x8] sm:$0xff]
        %v1946 = vld [vmem:[%s1943 + $0x10] sm:$0xff]
        %v1947 = vld [vmem:[%s1943 + $0x18] sm:$0xff]
        %s1948 = scalar_lea.vmem %s7, 128
        %v1949 = vld [vmem:[%s1948] sm:$0xff]
        %v1950 = vld [vmem:[%s1948 + $0x8] sm:$0xff]
        %v1951 = vld [vmem:[%s1948 + $0x10] sm:$0xff]
        %v1952 = vld [vmem:[%s1948 + $0x18] sm:$0xff]
        %v1953 = vld [vmem:[%s1948 + $0x20] sm:$0xff]
        %v1954 = vld [vmem:[%s1948 + $0x28] sm:$0xff]
        %v1955 = vld [vmem:[%s1948 + $0x30] sm:$0xff]
        %v1956 = vld [vmem:[%s1948 + $0x38] sm:$0xff]
        %v1957 = vld [vmem:[%s1948 + $0x40] sm:$0xff]
        %v1958 = vld [vmem:[%s1948 + $0x48] sm:$0xff]
        %v1959 = vld [vmem:[%s1948 + $0x50] sm:$0xff]
        %v1960 = vld [vmem:[%s1948 + $0x58] sm:$0xff]
        %v1961 = vld [vmem:[%s1948 + $0x60] sm:$0xff]
        %v1962 = vld [vmem:[%s1948 + $0x68] sm:$0xff]
        %v1963 = vld [vmem:[%s1948 + $0x70] sm:$0xff]
        %v1964 = vld [vmem:[%s1948 + $0x78] sm:$0xff]
        %s1965 = scalar_lea.vmem %s8, 8
        %v1966 = vld [vmem:[%s1965] sm:$0xff]
        %v1968 = vsel %vm595, %v1916, 0
        %1970 = vmatprep.subr.mxu0 %v1919
        %1971 = vmatpush1.msra.mxu0 %v1918
        %1972 = vmatprep.subr.mxu0 %v1924
        %1973 = vmatpush1.msra.mxu0 %v1923
        %1974 = vmatprep.subr.mxu0 %v1929
        %1975 = vmatpush1.msra.mxu0 %v1928
        %1976 = vmatprep.subr.mxu0 %v1934
        %1977 = vmatpush1.msra.mxu0 %v1933
        %1978 = vmatprep.subr.mxu0 0.0
        %1979 = vmatpush1.msra.mxu0 0.0
        %1980 = vmatprep.subr.mxu0 0.0
        %1981 = vmatpush1.msra.mxu0 0.0
        %1982 = vmatprep.subr.mxu0 0.0
        %1983 = vmatpush1.msra.mxu0 0.0
        %1984 = vmatprep.subr.mxu0 0.0
        %1985 = vmatpush1.msra.mxu0 0.0
        %1986 = vmatprep.subr.mxu0 0.0
        %1987 = vmatpush1.msra.mxu0 0.0
        %1988 = vmatprep.subr.mxu0 0.0
        %1989 = vmatpush1.msra.mxu0 0.0
        %1990 = vmatprep.subr.mxu0 0.0
        %1991 = vmatpush1.msra.mxu0 0.0
        %1992 = vmatprep.subr.mxu0 0.0
        %1993 = vmatpush1.msra.mxu0 0.0
        %1994 = vmatprep.subr.mxu0 0.0
        %1995 = vmatpush1.msra.mxu0 0.0
        %1996 = vmatprep.subr.mxu0 0.0
        %1997 = vmatpush1.msra.mxu0 0.0
        %1998 = vmatprep.subr.mxu0 0.0
        %1999 = vmatpush1.msra.mxu0 0.0
        %2000 = vmatprep.subr.mxu0 0.0
        %2001 = vmatpush1.msra.mxu0 0.0
        %2002 = vmatprep.subr.mxu0 0.0
        %2003 = vmatpush1.msra.mxu0 0.0
        %2004 = vmatprep.subr.mxu0 0.0
        %2005 = vmatpush1.msra.mxu0 0.0
        %2006 = vmatprep.subr.mxu0 0.0
        %2007 = vmatpush1.msra.mxu0 0.0
        %2008 = vmatprep.subr.mxu0 0.0
        %2009 = vmatpush1.msra.mxu0 0.0
        %2010 = vmatprep.subr.mxu0 0.0
        %2011 = vmatpush1.msra.mxu0 0.0
        %2012 = vmatprep.subr.mxu0 0.0
        %2013 = vmatpush1.msra.mxu0 0.0
        %2014 = vmatprep.subr.mxu0 0.0
        %2015 = vmatpush1.msra.mxu0 0.0
        %2016 = vmatprep.subr.mxu0 0.0
        %2017 = vmatpush1.msra.mxu0 0.0
        %2018 = vmatprep.subr.mxu0 0.0
        %2019 = vmatpush1.msra.mxu0 0.0
        %2020 = vmatprep.subr.mxu0 0.0
        %2021 = vmatpush1.msra.mxu0 0.0
        %2022 = vmatprep.subr.mxu0 0.0
        %2023 = vmatpush1.msra.mxu0 0.0
        %2024 = vmatprep.subr.mxu0 0.0
        %2025 = vmatpush1.msra.mxu0 0.0
        %2026 = vmatprep.subr.mxu0 0.0
        %2027 = vmatpush1.msra.mxu0 0.0
        %2028 = vmatprep.subr.mxu0 0.0
        %2029 = vmatpush1.msra.mxu0 0.0
        %2030 = vmatprep.subr.mxu0 0.0
        %2031 = vmatpush1.msra.mxu0 0.0
        %2032 = vmatprep.subr.mxu0 0.0
        %2033 = vmatpush1.msra.mxu0 0.0
        %2034 = vmatprep.mubr.f32.mxu0 0.0
        %2035 = vmatmul.mubr.f32.gmra.mrb[0].mxu0 %v1968
        %v2036 = vpop.f32.mrb[0].mxu0
        %v2037 = vadd.f32 0.0, %v2036
        %v2038 = vpop.f32.mrb[0].mxu0
        %v2039 = vadd.f32 0.0, %v2038
        %2040 = vdwg.mxu0
        %2041 = vmatprep.subr.mxu0 %v1921
        %2042 = vmatpush1.msra.mxu0 %v1920
        %2043 = vmatprep.subr.mxu0 %v1926
        %2044 = vmatpush1.msra.mxu0 %v1925
        %2045 = vmatprep.subr.mxu0 %v1931
        %2046 = vmatpush1.msra.mxu0 %v1930
        %2047 = vmatprep.subr.mxu0 %v1936
        %2048 = vmatpush1.msra.mxu0 %v1935
        %2049 = vmatprep.subr.mxu0 0.0
        %2050 = vmatpush1.msra.mxu0 0.0
        %2051 = vmatprep.subr.mxu0 0.0
        %2052 = vmatpush1.msra.mxu0 0.0
        %2053 = vmatprep.subr.mxu0 0.0
        %2054 = vmatpush1.msra.mxu0 0.0
        %2055 = vmatprep.subr.mxu0 0.0
        %2056 = vmatpush1.msra.mxu0 0.0
        %2057 = vmatprep.subr.mxu0 0.0
        %2058 = vmatpush1.msra.mxu0 0.0
        %2059 = vmatprep.subr.mxu0 0.0
        %2060 = vmatpush1.msra.mxu0 0.0
        %2061 = vmatprep.subr.mxu0 0.0
        %2062 = vmatpush1.msra.mxu0 0.0
        %2063 = vmatprep.subr.mxu0 0.0
        %2064 = vmatpush1.msra.mxu0 0.0
        %2065 = vmatprep.subr.mxu0 0.0
        %2066 = vmatpush1.msra.mxu0 0.0
        %2067 = vmatprep.subr.mxu0 0.0
        %2068 = vmatpush1.msra.mxu0 0.0
        %2069 = vmatprep.subr.mxu0 0.0
        %2070 = vmatpush1.msra.mxu0 0.0
        %2071 = vmatprep.subr.mxu0 0.0
        %2072 = vmatpush1.msra.mxu0 0.0
        %2073 = vmatprep.subr.mxu0 0.0
        %2074 = vmatpush1.msra.mxu0 0.0
        %2075 = vmatprep.subr.mxu0 0.0
        %2076 = vmatpush1.msra.mxu0 0.0
        %2077 = vmatprep.subr.mxu0 0.0
        %2078 = vmatpush1.msra.mxu0 0.0
        %2079 = vmatprep.subr.mxu0 0.0
        %2080 = vmatpush1.msra.mxu0 0.0
        %2081 = vmatprep.subr.mxu0 0.0
        %2082 = vmatpush1.msra.mxu0 0.0
        %2083 = vmatprep.subr.mxu0 0.0
        %2084 = vmatpush1.msra.mxu0 0.0
        %2085 = vmatprep.subr.mxu0 0.0
        %2086 = vmatpush1.msra.mxu0 0.0
        %2087 = vmatprep.subr.mxu0 0.0
        %2088 = vmatpush1.msra.mxu0 0.0
        %2089 = vmatprep.subr.mxu0 0.0
        %2090 = vmatpush1.msra.mxu0 0.0
        %2091 = vmatprep.subr.mxu0 0.0
        %2092 = vmatpush1.msra.mxu0 0.0
        %2093 = vmatprep.subr.mxu0 0.0
        %2094 = vmatpush1.msra.mxu0 0.0
        %2095 = vmatprep.subr.mxu0 0.0
        %2096 = vmatpush1.msra.mxu0 0.0
        %2097 = vmatprep.subr.mxu0 0.0
        %2098 = vmatpush1.msra.mxu0 0.0
        %2099 = vmatprep.subr.mxu0 0.0
        %2100 = vmatpush1.msra.mxu0 0.0
        %2101 = vmatprep.subr.mxu0 0.0
        %2102 = vmatpush1.msra.mxu0 0.0
        %2103 = vmatprep.subr.mxu0 0.0
        %2104 = vmatpush1.msra.mxu0 0.0
        %2105 = vmatprep.mubr.f32.mxu0 0.0
        %2106 = vmatmul.mubr.f32.gmra.mrb[0].mxu0 %v1968
        %v2107 = vpop.f32.mrb[0].mxu0
        %v2108 = vadd.f32 0.0, %v2107
        %v2109 = vpop.f32.mrb[0].mxu0
        %v2110 = vadd.f32 0.0, %v2109
        %2111 = vdwg.mxu0
        %2112 = vmatprep.subr.mxu0 0.0
        %2113 = vmatpush1.msra.mxu0 %v1922
        %2114 = vmatprep.subr.mxu0 0.0
        %2115 = vmatpush1.msra.mxu0 %v1927
        %2116 = vmatprep.subr.mxu0 0.0
        %2117 = vmatpush1.msra.mxu0 %v1932
        %2118 = vmatprep.subr.mxu0 0.0
        %2119 = vmatpush1.msra.mxu0 %v1937
        %2120 = vmatprep.subr.mxu0 0.0
        %2121 = vmatpush1.msra.mxu0 0.0
        %2122 = vmatprep.subr.mxu0 0.0
        %2123 = vmatpush1.msra.mxu0 0.0
        %2124 = vmatprep.subr.mxu0 0.0
        %2125 = vmatpush1.msra.mxu0 0.0
        %2126 = vmatprep.subr.mxu0 0.0
        %2127 = vmatpush1.msra.mxu0 0.0
        %2128 = vmatprep.subr.mxu0 0.0
        %2129 = vmatpush1.msra.mxu0 0.0
        %2130 = vmatprep.subr.mxu0 0.0
        %2131 = vmatpush1.msra.mxu0 0.0
        %2132 = vmatprep.subr.mxu0 0.0
        %2133 = vmatpush1.msra.mxu0 0.0
        %2134 = vmatprep.subr.mxu0 0.0
        %2135 = vmatpush1.msra.mxu0 0.0
        %2136 = vmatprep.subr.mxu0 0.0
        %2137 = vmatpush1.msra.mxu0 0.0
        %2138 = vmatprep.subr.mxu0 0.0
        %2139 = vmatpush1.msra.mxu0 0.0
        %2140 = vmatprep.subr.mxu0 0.0
        %2141 = vmatpush1.msra.mxu0 0.0
        %2142 = vmatprep.subr.mxu0 0.0
        %2143 = vmatpush1.msra.mxu0 0.0
        %2144 = vmatprep.subr.mxu0 0.0
        %2145 = vmatpush1.msra.mxu0 0.0
        %2146 = vmatprep.subr.mxu0 0.0
        %2147 = vmatpush1.msra.mxu0 0.0
        %2148 = vmatprep.subr.mxu0 0.0
        %2149 = vmatpush1.msra.mxu0 0.0
        %2150 = vmatprep.subr.mxu0 0.0
        %2151 = vmatpush1.msra.mxu0 0.0
        %2152 = vmatprep.subr.mxu0 0.0
        %2153 = vmatpush1.msra.mxu0 0.0
        %2154 = vmatprep.subr.mxu0 0.0
        %2155 = vmatpush1.msra.mxu0 0.0
        %2156 = vmatprep.subr.mxu0 0.0
        %2157 = vmatpush1.msra.mxu0 0.0
        %2158 = vmatprep.subr.mxu0 0.0
        %2159 = vmatpush1.msra.mxu0 0.0
        %2160 = vmatprep.subr.mxu0 0.0
        %2161 = vmatpush1.msra.mxu0 0.0
        %2162 = vmatprep.subr.mxu0 0.0
        %2163 = vmatpush1.msra.mxu0 0.0
        %2164 = vmatprep.subr.mxu0 0.0
        %2165 = vmatpush1.msra.mxu0 0.0
        %2166 = vmatprep.subr.mxu0 0.0
        %2167 = vmatpush1.msra.mxu0 0.0
        %2168 = vmatprep.subr.mxu0 0.0
        %2169 = vmatpush1.msra.mxu0 0.0
        %2170 = vmatprep.subr.mxu0 0.0
        %2171 = vmatpush1.msra.mxu0 0.0
        %2172 = vmatprep.subr.mxu0 0.0
        %2173 = vmatpush1.msra.mxu0 0.0
        %2174 = vmatprep.subr.mxu0 0.0
        %2175 = vmatpush1.msra.mxu0 0.0
        %2176 = vmatprep.mubr.f32.mxu0 0.0
        %2177 = vmatmul.mubr.f32.gmra.mrb[0].mxu0 %v1968
        %v2178 = vpop.f32.mrb[0].mxu0
        %v2179 = vadd.f32 0.0, %v2178
        %v2180 = vpop.f32.mrb[0].mxu0
        %2181 = vdwg.mxu0
        %v2182 = vmul.f32 %v2037, %v389
        %v2183 = vmul.f32 %v2039, %v390
        %v2184 = vmul.f32 %v2108, %v391
        %v2185 = vmul.f32 %v2110, %v392
        %2186 = vmatprep.subr.mxu0 0.0
        %2187 = vmatpush1.msra.mxu0 %v394
        %2188 = vmatprep.subr.mxu0 0.0
        %2189 = vmatpush1.msra.mxu0 %v395
        %2190 = vmatprep.subr.mxu0 0.0
        %2191 = vmatpush1.msra.mxu0 %v396
        %2192 = vmatprep.subr.mxu0 0.0
        %2193 = vmatpush1.msra.mxu0 %v397
        %2194 = vmatprep.subr.mxu0 0.0
        %2195 = vmatpush1.msra.mxu0 %v398
        %2196 = vmatprep.subr.mxu0 0.0
        %2197 = vmatpush1.msra.mxu0 %v399
        %2198 = vmatprep.subr.mxu0 0.0
        %2199 = vmatpush1.msra.mxu0 %v400
        %2200 = vmatprep.subr.mxu0 0.0
        %2201 = vmatpush1.msra.mxu0 %v401
        %2202 = vmatprep.subr.mxu0 0.0
        %2203 = vmatpush1.msra.mxu0 %v402
        %2204 = vmatprep.subr.mxu0 0.0
        %2205 = vmatpush1.msra.mxu0 %v403
        %2206 = vmatprep.subr.mxu0 0.0
        %2207 = vmatpush1.msra.mxu0 %v404
        %2208 = vmatprep.subr.mxu0 0.0
        %2209 = vmatpush1.msra.mxu0 %v405
        %2210 = vmatprep.subr.mxu0 0.0
        %2211 = vmatpush1.msra.mxu0 %v406
        %2212 = vmatprep.subr.mxu0 0.0
        %2213 = vmatpush1.msra.mxu0 %v407
        %2214 = vmatprep.subr.mxu0 0.0
        %2215 = vmatpush1.msra.mxu0 %v408
        %2216 = vmatprep.subr.mxu0 0.0
        %2217 = vmatpush1.msra.mxu0 %v409
        %2218 = vmatprep.subr.mxu0 0.0
        %2219 = vmatpush1.msra.mxu0 %v410
        %2220 = vmatprep.subr.mxu0 0.0
        %2221 = vmatpush1.msra.mxu0 %v411
        %2222 = vmatprep.subr.mxu0 0.0
        %2223 = vmatpush1.msra.mxu0 %v412
        %2224 = vmatprep.subr.mxu0 0.0
        %2225 = vmatpush1.msra.mxu0 %v413
        %2226 = vmatprep.subr.mxu0 0.0
        %2227 = vmatpush1.msra.mxu0 %v414
        %2228 = vmatprep.subr.mxu0 0.0
        %2229 = vmatpush1.msra.mxu0 %v415
        %2230 = vmatprep.subr.mxu0 0.0
        %2231 = vmatpush1.msra.mxu0 %v416
        %2232 = vmatprep.subr.mxu0 0.0
        %2233 = vmatpush1.msra.mxu0 %v417
        %2234 = vmatprep.subr.mxu0 0.0
        %2235 = vmatpush1.msra.mxu0 %v418
        %2236 = vmatprep.subr.mxu0 0.0
        %2237 = vmatpush1.msra.mxu0 %v419
        %2238 = vmatprep.subr.mxu0 0.0
        %2239 = vmatpush1.msra.mxu0 %v420
        %2240 = vmatprep.subr.mxu0 0.0
        %2241 = vmatpush1.msra.mxu0 %v421
        %2242 = vmatprep.subr.mxu0 0.0
        %2243 = vmatpush1.msra.mxu0 %v422
        %2244 = vmatprep.subr.mxu0 0.0
        %2245 = vmatpush1.msra.mxu0 %v423
        %2246 = vmatprep.subr.mxu0 0.0
        %2247 = vmatpush1.msra.mxu0 %v424
        %2248 = vmatprep.subr.mxu0 0.0
        %2249 = vmatpush1.msra.mxu0 %v425
        %2250 = vmatprep.mubr.f32.mxu0 %v2183
        %2251 = vmatmul.mubr.f32.gmra.mrb[0].mxu0 %v2182
        %v2252 = vpop.f32.mrb[0].mxu0
        %v2253 = vadd.f32 0.0, %v2252
        %v2254 = vpop.f32.mrb[0].mxu0
        %2255 = vdwg.mxu0
        %2256 = vmatprep.subr.mxu0 0.0
        %2257 = vmatpush1.msra.mxu0 %v426
        %2258 = vmatprep.subr.mxu0 0.0
        %2259 = vmatpush1.msra.mxu0 %v427
        %2260 = vmatprep.subr.mxu0 0.0
        %2261 = vmatpush1.msra.mxu0 %v428
        %2262 = vmatprep.subr.mxu0 0.0
        %2263 = vmatpush1.msra.mxu0 %v429
        %2264 = vmatprep.subr.mxu0 0.0
        %2265 = vmatpush1.msra.mxu0 %v430
        %2266 = vmatprep.subr.mxu0 0.0
        %2267 = vmatpush1.msra.mxu0 %v431
        %2268 = vmatprep.subr.mxu0 0.0
        %2269 = vmatpush1.msra.mxu0 %v432
        %2270 = vmatprep.subr.mxu0 0.0
        %2271 = vmatpush1.msra.mxu0 %v433
        %2272 = vmatprep.subr.mxu0 0.0
        %2273 = vmatpush1.msra.mxu0 %v434
        %2274 = vmatprep.subr.mxu0 0.0
        %2275 = vmatpush1.msra.mxu0 %v435
        %2276 = vmatprep.subr.mxu0 0.0
        %2277 = vmatpush1.msra.mxu0 %v436
        %2278 = vmatprep.subr.mxu0 0.0
        %2279 = vmatpush1.msra.mxu0 %v437
        %2280 = vmatprep.subr.mxu0 0.0
        %2281 = vmatpush1.msra.mxu0 %v438
        %2282 = vmatprep.subr.mxu0 0.0
        %2283 = vmatpush1.msra.mxu0 %v439
        %2284 = vmatprep.subr.mxu0 0.0
        %2285 = vmatpush1.msra.mxu0 %v440
        %2286 = vmatprep.subr.mxu0 0.0
        %2287 = vmatpush1.msra.mxu0 %v441
        %2288 = vmatprep.subr.mxu0 0.0
        %2289 = vmatpush1.msra.mxu0 %v442
        %2290 = vmatprep.subr.mxu0 0.0
        %2291 = vmatpush1.msra.mxu0 %v443
        %2292 = vmatprep.subr.mxu0 0.0
        %2293 = vmatpush1.msra.mxu0 %v444
        %2294 = vmatprep.subr.mxu0 0.0
        %2295 = vmatpush1.msra.mxu0 %v445
        %2296 = vmatprep.subr.mxu0 0.0
        %2297 = vmatpush1.msra.mxu0 %v446
        %2298 = vmatprep.subr.mxu0 0.0
        %2299 = vmatpush1.msra.mxu0 %v447
        %2300 = vmatprep.subr.mxu0 0.0
        %2301 = vmatpush1.msra.mxu0 %v448
        %2302 = vmatprep.subr.mxu0 0.0
        %2303 = vmatpush1.msra.mxu0 %v449
        %2304 = vmatprep.subr.mxu0 0.0
        %2305 = vmatpush1.msra.mxu0 %v450
        %2306 = vmatprep.subr.mxu0 0.0
        %2307 = vmatpush1.msra.mxu0 %v451
        %2308 = vmatprep.subr.mxu0 0.0
        %2309 = vmatpush1.msra.mxu0 %v452
        %2310 = vmatprep.subr.mxu0 0.0
        %2311 = vmatpush1.msra.mxu0 %v453
        %2312 = vmatprep.subr.mxu0 0.0
        %2313 = vmatpush1.msra.mxu0 %v454
        %2314 = vmatprep.subr.mxu0 0.0
        %2315 = vmatpush1.msra.mxu0 %v455
        %2316 = vmatprep.subr.mxu0 0.0
        %2317 = vmatpush1.msra.mxu0 %v456
        %2318 = vmatprep.subr.mxu0 0.0
        %2319 = vmatpush1.msra.mxu0 %v457
        %2320 = vmatprep.mubr.f32.mxu0 %v2185
        %2321 = vmatmul.mubr.f32.gmra.mrb[0].mxu0 %v2184
        %v2322 = vpop.f32.mrb[0].mxu0
        %v2323 = vadd.f32 %v2253, %v2322
        %v2324 = vpop.f32.mrb[0].mxu0
        %2325 = vdwg.mxu0
        %2327 = vrot.lane.b32.xlu0 %v2323, 96
        %v2328 = vpop.permute.xlu0 %2327
        %v2329 = vsel %vm459, %v2323, 0
        %v2331 = vsel %vm459, %v2328, 0
        %2333 = vmatprep.subr.mxu0 0.0
        %2334 = vmatpush1.xpose.msra.mxu0 %v2331
        %2335 = vmatprep.subr.mxu0 0.0
        %2336 = vmatpush1.xpose.msra.mxu0 0.0
        %2337 = vmatprep.subr.mxu0 0.0
        %2338 = vmatpush1.xpose.msra.mxu0 0.0
        %2339 = vmatprep.subr.mxu0 0.0
        %2340 = vmatpush1.xpose.msra.mxu0 0.0
        %2341 = vmatprep.subr.mxu0 0.0
        %2342 = vmatpush1.xpose.msra.mxu0 0.0
        %2343 = vmatprep.subr.mxu0 0.0
        %2344 = vmatpush1.xpose.msra.mxu0 0.0
        %2345 = vmatprep.subr.mxu0 0.0
        %2346 = vmatpush1.xpose.msra.mxu0 0.0
        %2347 = vmatprep.subr.mxu0 0.0
        %2348 = vmatpush1.xpose.msra.mxu0 0.0
        %2349 = vmatprep.subr.mxu0 0.0
        %2350 = vmatpush1.xpose.msra.mxu0 0.0
        %2351 = vmatprep.subr.mxu0 0.0
        %2352 = vmatpush1.xpose.msra.mxu0 0.0
        %2353 = vmatprep.subr.mxu0 0.0
        %2354 = vmatpush1.xpose.msra.mxu0 0.0
        %2355 = vmatprep.subr.mxu0 0.0
        %2356 = vmatpush1.xpose.msra.mxu0 0.0
        %2357 = vmatprep.subr.mxu0 0.0
        %2358 = vmatpush1.xpose.msra.mxu0 0.0
        %2359 = vmatprep.subr.mxu0 0.0
        %2360 = vmatpush1.xpose.msra.mxu0 0.0
        %2361 = vmatprep.subr.mxu0 0.0
        %2362 = vmatpush1.xpose.msra.mxu0 0.0
        %2363 = vmatprep.subr.mxu0 0.0
        %2364 = vmatpush1.xpose.msra.mxu0 0.0
        %2365 = vmatprep.subr.mxu0 0.0
        %2366 = vmatpush1.xpose.msra.mxu0 0.0
        %2367 = vmatprep.subr.mxu0 0.0
        %2368 = vmatpush1.xpose.msra.mxu0 0.0
        %2369 = vmatprep.subr.mxu0 0.0
        %2370 = vmatpush1.xpose.msra.mxu0 0.0
        %2371 = vmatprep.subr.mxu0 0.0
        %2372 = vmatpush1.xpose.msra.mxu0 0.0
        %2373 = vmatprep.subr.mxu0 0.0
        %2374 = vmatpush1.xpose.msra.mxu0 0.0
        %2375 = vmatprep.subr.mxu0 0.0
        %2376 = vmatpush1.xpose.msra.mxu0 0.0
        %2377 = vmatprep.subr.mxu0 0.0
        %2378 = vmatpush1.xpose.msra.mxu0 0.0
        %2379 = vmatprep.subr.mxu0 0.0
        %2380 = vmatpush1.xpose.msra.mxu0 0.0
        %2381 = vmatprep.subr.mxu0 0.0
        %2382 = vmatpush1.xpose.msra.mxu0 0.0
        %2383 = vmatprep.subr.mxu0 0.0
        %2384 = vmatpush1.xpose.msra.mxu0 0.0
        %2385 = vmatprep.subr.mxu0 0.0
        %2386 = vmatpush1.xpose.msra.mxu0 0.0
        %2387 = vmatprep.subr.mxu0 0.0
        %2388 = vmatpush1.xpose.msra.mxu0 0.0
        %2389 = vmatprep.subr.mxu0 0.0
        %2390 = vmatpush1.xpose.msra.mxu0 0.0
        %2391 = vmatprep.subr.mxu0 0.0
        %2392 = vmatpush1.xpose.msra.mxu0 0.0
        %2393 = vmatprep.subr.mxu0 0.0
        %2394 = vmatpush1.xpose.msra.mxu0 0.0
        %2395 = vmatprep.subr.mxu0 0.0
        %2396 = vmatpush1.xpose.msra.mxu0 0.0
        %2397 = vmatprep.mubr.f32.mxu0 0.0
        %2398 = vmatmul.mubr.f32.gmra.mrb[0].mxu0 %v2329
        %v2399 = vpop.f32.mrb[0].mxu0
        %v2400 = vadd.f32 0.0, %v2399
        %v2401 = vpop.f32.mrb[0].mxu0
        %2402 = vdwg.mxu0
        %v2403 = vmul.f32 %v2400, 0.35355338
        %v2404 = vadd.f32 %v2403, %v1037
        %v2405 = vsel %vm459, %v2404, -inf
        %2406 = vmax.xlane.f32.xlu0 %v2405
        %v2407 = vpop.xlane.xlu0 %2406
        %v2408 = vsub.f32 %v2404, %v2407
        %v2409 = vmul.f32 %v2408, 1.442695
        %v2410 = vpow.pop %v2409
        %v2411 = vsel %vm459, %v2410, 0.0
        %2412 = vadd.xlane.f32.xlu0 %v2411
        %v2413 = vpop.xlane.xlu0 %2412
        %v2414 = vrcp.pop %v2413
        %v2415 = vmul.f32 %v2410, %v2414
        %v2417 = vsel %vm459, %v2415, 0
        %2419 = vmatprep.subr.mxu0 0.0
        %2420 = vmatpush1.msra.mxu0 %v2179
        %2421 = vmatprep.subr.mxu0 0.0
        %2422 = vmatpush1.msra.mxu0 0.0
        %2423 = vmatprep.subr.mxu0 0.0
        %2424 = vmatpush1.msra.mxu0 0.0
        %2425 = vmatprep.subr.mxu0 0.0
        %2426 = vmatpush1.msra.mxu0 0.0
        %2427 = vmatprep.subr.mxu0 0.0
        %2428 = vmatpush1.msra.mxu0 0.0
        %2429 = vmatprep.subr.mxu0 0.0
        %2430 = vmatpush1.msra.mxu0 0.0
        %2431 = vmatprep.subr.mxu0 0.0
        %2432 = vmatpush1.msra.mxu0 0.0
        %2433 = vmatprep.subr.mxu0 0.0
        %2434 = vmatpush1.msra.mxu0 0.0
        %2435 = vmatprep.subr.mxu0 0.0
        %2436 = vmatpush1.msra.mxu0 0.0
        %2437 = vmatprep.subr.mxu0 0.0
        %2438 = vmatpush1.msra.mxu0 0.0
        %2439 = vmatprep.subr.mxu0 0.0
        %2440 = vmatpush1.msra.mxu0 0.0
        %2441 = vmatprep.subr.mxu0 0.0
        %2442 = vmatpush1.msra.mxu0 0.0
        %2443 = vmatprep.subr.mxu0 0.0
        %2444 = vmatpush1.msra.mxu0 0.0
        %2445 = vmatprep.subr.mxu0 0.0
        %2446 = vmatpush1.msra.mxu0 0.0
        %2447 = vmatprep.subr.mxu0 0.0
        %2448 = vmatpush1.msra.mxu0 0.0
        %2449 = vmatprep.subr.mxu0 0.0
        %2450 = vmatpush1.msra.mxu0 0.0
        %2451 = vmatprep.subr.mxu0 0.0
        %2452 = vmatpush1.msra.mxu0 0.0
        %2453 = vmatprep.subr.mxu0 0.0
        %2454 = vmatpush1.msra.mxu0 0.0
        %2455 = vmatprep.subr.mxu0 0.0
        %2456 = vmatpush1.msra.mxu0 0.0
        %2457 = vmatprep.subr.mxu0 0.0
        %2458 = vmatpush1.msra.mxu0 0.0
        %2459 = vmatprep.subr.mxu0 0.0
        %2460 = vmatpush1.msra.mxu0 0.0
        %2461 = vmatprep.subr.mxu0 0.0
        %2462 = vmatpush1.msra.mxu0 0.0
        %2463 = vmatprep.subr.mxu0 0.0
        %2464 = vmatpush1.msra.mxu0 0.0
        %2465 = vmatprep.subr.mxu0 0.0
        %2466 = vmatpush1.msra.mxu0 0.0
        %2467 = vmatprep.subr.mxu0 0.0
        %2468 = vmatpush1.msra.mxu0 0.0
        %2469 = vmatprep.subr.mxu0 0.0
        %2470 = vmatpush1.msra.mxu0 0.0
        %2471 = vmatprep.subr.mxu0 0.0
        %2472 = vmatpush1.msra.mxu0 0.0
        %2473 = vmatprep.subr.mxu0 0.0
        %2474 = vmatpush1.msra.mxu0 0.0
        %2475 = vmatprep.subr.mxu0 0.0
        %2476 = vmatpush1.msra.mxu0 0.0
        %2477 = vmatprep.subr.mxu0 0.0
        %2478 = vmatpush1.msra.mxu0 0.0
        %2479 = vmatprep.subr.mxu0 0.0
        %2480 = vmatpush1.msra.mxu0 0.0
        %2481 = vmatprep.subr.mxu0 0.0
        %2482 = vmatpush1.msra.mxu0 0.0
        %2483 = vmatprep.mubr.f32.mxu0 0.0
        %2484 = vmatmul.mubr.f32.gmra.mrb[0].mxu0 %v2417
        %v2485 = vpop.f32.mrb[0].mxu0
        %v2486 = vadd.f32 0.0, %v2485
        %v2487 = vpop.f32.mrb[0].mxu0
        %2488 = vdwg.mxu0
        %2489 = vrot.lane.b32.xlu0 %v2323, 120
        %v2490 = vpop.permute.xlu0 %2489
        %2491 = vrot.lane.b32.xlu0 %v2323, 88
        %v2492 = vpop.permute.xlu0 %2491
        %v2493 = vsel %vm459, %v2490, 0
        %v2495 = vsel %vm459, %v2492, 0
        %2497 = vmatprep.subr.mxu0 0.0
        %2498 = vmatpush1.xpose.msra.mxu0 %v2495
        %2499 = vmatprep.subr.mxu0 0.0
        %2500 = vmatpush1.xpose.msra.mxu0 0.0
        %2501 = vmatprep.subr.mxu0 0.0
        %2502 = vmatpush1.xpose.msra.mxu0 0.0
        %2503 = vmatprep.subr.mxu0 0.0
        %2504 = vmatpush1.xpose.msra.mxu0 0.0
        %2505 = vmatprep.subr.mxu0 0.0
        %2506 = vmatpush1.xpose.msra.mxu0 0.0
        %2507 = vmatprep.subr.mxu0 0.0
        %2508 = vmatpush1.xpose.msra.mxu0 0.0
        %2509 = vmatprep.subr.mxu0 0.0
        %2510 = vmatpush1.xpose.msra.mxu0 0.0
        %2511 = vmatprep.subr.mxu0 0.0
        %2512 = vmatpush1.xpose.msra.mxu0 0.0
        %2513 = vmatprep.subr.mxu0 0.0
        %2514 = vmatpush1.xpose.msra.mxu0 0.0
        %2515 = vmatprep.subr.mxu0 0.0
        %2516 = vmatpush1.xpose.msra.mxu0 0.0
        %2517 = vmatprep.subr.mxu0 0.0
        %2518 = vmatpush1.xpose.msra.mxu0 0.0
        %2519 = vmatprep.subr.mxu0 0.0
        %2520 = vmatpush1.xpose.msra.mxu0 0.0
        %2521 = vmatprep.subr.mxu0 0.0
        %2522 = vmatpush1.xpose.msra.mxu0 0.0
        %2523 = vmatprep.subr.mxu0 0.0
        %2524 = vmatpush1.xpose.msra.mxu0 0.0
        %2525 = vmatprep.subr.mxu0 0.0
        %2526 = vmatpush1.xpose.msra.mxu0 0.0
        %2527 = vmatprep.subr.mxu0 0.0
        %2528 = vmatpush1.xpose.msra.mxu0 0.0
        %2529 = vmatprep.subr.mxu0 0.0
        %2530 = vmatpush1.xpose.msra.mxu0 0.0
        %2531 = vmatprep.subr.mxu0 0.0
        %2532 = vmatpush1.xpose.msra.mxu0 0.0
        %2533 = vmatprep.subr.mxu0 0.0
        %2534 = vmatpush1.xpose.msra.mxu0 0.0
        %2535 = vmatprep.subr.mxu0 0.0
        %2536 = vmatpush1.xpose.msra.mxu0 0.0
        %2537 = vmatprep.subr.mxu0 0.0
        %2538 = vmatpush1.xpose.msra.mxu0 0.0
        %2539 = vmatprep.subr.mxu0 0.0
        %2540 = vmatpush1.xpose.msra.mxu0 0.0
        %2541 = vmatprep.subr.mxu0 0.0
        %2542 = vmatpush1.xpose.msra.mxu0 0.0
        %2543 = vmatprep.subr.mxu0 0.0
        %2544 = vmatpush1.xpose.msra.mxu0 0.0
        %2545 = vmatprep.subr.mxu0 0.0
        %2546 = vmatpush1.xpose.msra.mxu0 0.0
        %2547 = vmatprep.subr.mxu0 0.0
        %2548 = vmatpush1.xpose.msra.mxu0 0.0
        %2549 = vmatprep.subr.mxu0 0.0
        %2550 = vmatpush1.xpose.msra.mxu0 0.0
        %2551 = vmatprep.subr.mxu0 0.0
        %2552 = vmatpush1.xpose.msra.mxu0 0.0
        %2553 = vmatprep.subr.mxu0 0.0
        %2554 = vmatpush1.xpose.msra.mxu0 0.0
        %2555 = vmatprep.subr.mxu0 0.0
        %2556 = vmatpush1.xpose.msra.mxu0 0.0
        %2557 = vmatprep.subr.mxu0 0.0
        %2558 = vmatpush1.xpose.msra.mxu0 0.0
        %2559 = vmatprep.subr.mxu0 0.0
        %2560 = vmatpush1.xpose.msra.mxu0 0.0
        %2561 = vmatprep.mubr.f32.mxu0 0.0
        %2562 = vmatmul.mubr.f32.gmra.mrb[0].mxu0 %v2493
        %v2563 = vpop.f32.mrb[0].mxu0
        %v2564 = vadd.f32 0.0, %v2563
        %v2565 = vpop.f32.mrb[0].mxu0
        %2566 = vdwg.mxu0
        %v2567 = vmul.f32 %v2564, 0.35355338
        %v2568 = vadd.f32 %v2567, %v1037
        %v2569 = vsel %vm459, %v2568, -inf
        %2570 = vmax.xlane.f32.xlu0 %v2569
        %v2571 = vpop.xlane.xlu0 %2570
        %v2572 = vsub.f32 %v2568, %v2571
        %v2573 = vmul.f32 %v2572, 1.442695
        %v2574 = vpow.pop %v2573
        %v2575 = vsel %vm459, %v2574, 0.0
        %2576 = vadd.xlane.f32.xlu0 %v2575
        %v2577 = vpop.xlane.xlu0 %2576
        %v2578 = vrcp.pop %v2577
        %v2579 = vmul.f32 %v2574, %v2578
        %2581 = vrot.lane.b32.xlu0 %v2179, 120
        %v2582 = vpop.permute.xlu0 %2581
        %v2585 = vsel %vm459, %v2579, 0
        %2587 = vmatprep.subr.mxu0 0.0
        %2588 = vmatpush1.msra.mxu0 %v2582
        %2589 = vmatprep.subr.mxu0 0.0
        %2590 = vmatpush1.msra.mxu0 0.0
        %2591 = vmatprep.subr.mxu0 0.0
        %2592 = vmatpush1.msra.mxu0 0.0
        %2593 = vmatprep.subr.mxu0 0.0
        %2594 = vmatpush1.msra.mxu0 0.0
        %2595 = vmatprep.subr.mxu0 0.0
        %2596 = vmatpush1.msra.mxu0 0.0
        %2597 = vmatprep.subr.mxu0 0.0
        %2598 = vmatpush1.msra.mxu0 0.0
        %2599 = vmatprep.subr.mxu0 0.0
        %2600 = vmatpush1.msra.mxu0 0.0
        %2601 = vmatprep.subr.mxu0 0.0
        %2602 = vmatpush1.msra.mxu0 0.0
        %2603 = vmatprep.subr.mxu0 0.0
        %2604 = vmatpush1.msra.mxu0 0.0
        %2605 = vmatprep.subr.mxu0 0.0
        %2606 = vmatpush1.msra.mxu0 0.0
        %2607 = vmatprep.subr.mxu0 0.0
        %2608 = vmatpush1.msra.mxu0 0.0
        %2609 = vmatprep.subr.mxu0 0.0
        %2610 = vmatpush1.msra.mxu0 0.0
        %2611 = vmatprep.subr.mxu0 0.0
        %2612 = vmatpush1.msra.mxu0 0.0
        %2613 = vmatprep.subr.mxu0 0.0
        %2614 = vmatpush1.msra.mxu0 0.0
        %2615 = vmatprep.subr.mxu0 0.0
        %2616 = vmatpush1.msra.mxu0 0.0
        %2617 = vmatprep.subr.mxu0 0.0
        %2618 = vmatpush1.msra.mxu0 0.0
        %2619 = vmatprep.subr.mxu0 0.0
        %2620 = vmatpush1.msra.mxu0 0.0
        %2621 = vmatprep.subr.mxu0 0.0
        %2622 = vmatpush1.msra.mxu0 0.0
        %2623 = vmatprep.subr.mxu0 0.0
        %2624 = vmatpush1.msra.mxu0 0.0
        %2625 = vmatprep.subr.mxu0 0.0
        %2626 = vmatpush1.msra.mxu0 0.0
        %2627 = vmatprep.subr.mxu0 0.0
        %2628 = vmatpush1.msra.mxu0 0.0
        %2629 = vmatprep.subr.mxu0 0.0
        %2630 = vmatpush1.msra.mxu0 0.0
        %2631 = vmatprep.subr.mxu0 0.0
        %2632 = vmatpush1.msra.mxu0 0.0
        %2633 = vmatprep.subr.mxu0 0.0
        %2634 = vmatpush1.msra.mxu0 0.0
        %2635 = vmatprep.subr.mxu0 0.0
        %2636 = vmatpush1.msra.mxu0 0.0
        %2637 = vmatprep.subr.mxu0 0.0
        %2638 = vmatpush1.msra.mxu0 0.0
        %2639 = vmatprep.subr.mxu0 0.0
        %2640 = vmatpush1.msra.mxu0 0.0
        %2641 = vmatprep.subr.mxu0 0.0
        %2642 = vmatpush1.msra.mxu0 0.0
        %2643 = vmatprep.subr.mxu0 0.0
        %2644 = vmatpush1.msra.mxu0 0.0
        %2645 = vmatprep.subr.mxu0 0.0
        %2646 = vmatpush1.msra.mxu0 0.0
        %2647 = vmatprep.subr.mxu0 0.0
        %2648 = vmatpush1.msra.mxu0 0.0
        %2649 = vmatprep.subr.mxu0 0.0
        %2650 = vmatpush1.msra.mxu0 0.0
        %2651 = vmatprep.mubr.f32.mxu0 0.0
        %2652 = vmatmul.mubr.f32.gmra.mrb[0].mxu0 %v2585
        %v2653 = vpop.f32.mrb[0].mxu0
        %v2654 = vadd.f32 0.0, %v2653
        %v2655 = vpop.f32.mrb[0].mxu0
        %2656 = vdwg.mxu0
        %2657 = vrot.lane.b32.xlu0 %v2323, 112
        %v2658 = vpop.permute.xlu0 %2657
        %2659 = vrot.lane.b32.xlu0 %v2323, 80
        %v2660 = vpop.permute.xlu0 %2659
        %v2661 = vsel %vm459, %v2658, 0
        %v2663 = vsel %vm459, %v2660, 0
        %2665 = vmatprep.subr.mxu0 0.0
        %2666 = vmatpush1.xpose.msra.mxu0 %v2663
        %2667 = vmatprep.subr.mxu0 0.0
        %2668 = vmatpush1.xpose.msra.mxu0 0.0
        %2669 = vmatprep.subr.mxu0 0.0
        %2670 = vmatpush1.xpose.msra.mxu0 0.0
        %2671 = vmatprep.subr.mxu0 0.0
        %2672 = vmatpush1.xpose.msra.mxu0 0.0
        %2673 = vmatprep.subr.mxu0 0.0
        %2674 = vmatpush1.xpose.msra.mxu0 0.0
        %2675 = vmatprep.subr.mxu0 0.0
        %2676 = vmatpush1.xpose.msra.mxu0 0.0
        %2677 = vmatprep.subr.mxu0 0.0
        %2678 = vmatpush1.xpose.msra.mxu0 0.0
        %2679 = vmatprep.subr.mxu0 0.0
        %2680 = vmatpush1.xpose.msra.mxu0 0.0
        %2681 = vmatprep.subr.mxu0 0.0
        %2682 = vmatpush1.xpose.msra.mxu0 0.0
        %2683 = vmatprep.subr.mxu0 0.0
        %2684 = vmatpush1.xpose.msra.mxu0 0.0
        %2685 = vmatprep.subr.mxu0 0.0
        %2686 = vmatpush1.xpose.msra.mxu0 0.0
        %2687 = vmatprep.subr.mxu0 0.0
        %2688 = vmatpush1.xpose.msra.mxu0 0.0
        %2689 = vmatprep.subr.mxu0 0.0
        %2690 = vmatpush1.xpose.msra.mxu0 0.0
        %2691 = vmatprep.subr.mxu0 0.0
        %2692 = vmatpush1.xpose.msra.mxu0 0.0
        %2693 = vmatprep.subr.mxu0 0.0
        %2694 = vmatpush1.xpose.msra.mxu0 0.0
        %2695 = vmatprep.subr.mxu0 0.0
        %2696 = vmatpush1.xpose.msra.mxu0 0.0
        %2697 = vmatprep.subr.mxu0 0.0
        %2698 = vmatpush1.xpose.msra.mxu0 0.0
        %2699 = vmatprep.subr.mxu0 0.0
        %2700 = vmatpush1.xpose.msra.mxu0 0.0
        %2701 = vmatprep.subr.mxu0 0.0
        %2702 = vmatpush1.xpose.msra.mxu0 0.0
        %2703 = vmatprep.subr.mxu0 0.0
        %2704 = vmatpush1.xpose.msra.mxu0 0.0
        %2705 = vmatprep.subr.mxu0 0.0
        %2706 = vmatpush1.xpose.msra.mxu0 0.0
        %2707 = vmatprep.subr.mxu0 0.0
        %2708 = vmatpush1.xpose.msra.mxu0 0.0
        %2709 = vmatprep.subr.mxu0 0.0
        %2710 = vmatpush1.xpose.msra.mxu0 0.0
        %2711 = vmatprep.subr.mxu0 0.0
        %2712 = vmatpush1.xpose.msra.mxu0 0.0
        %2713 = vmatprep.subr.mxu0 0.0
        %2714 = vmatpush1.xpose.msra.mxu0 0.0
        %2715 = vmatprep.subr.mxu0 0.0
        %2716 = vmatpush1.xpose.msra.mxu0 0.0
        %2717 = vmatprep.subr.mxu0 0.0
        %2718 = vmatpush1.xpose.msra.mxu0 0.0
        %2719 = vmatprep.subr.mxu0 0.0
        %2720 = vmatpush1.xpose.msra.mxu0 0.0
        %2721 = vmatprep.subr.mxu0 0.0
        %2722 = vmatpush1.xpose.msra.mxu0 0.0
        %2723 = vmatprep.subr.mxu0 0.0
        %2724 = vmatpush1.xpose.msra.mxu0 0.0
        %2725 = vmatprep.subr.mxu0 0.0
        %2726 = vmatpush1.xpose.msra.mxu0 0.0
        %2727 = vmatprep.subr.mxu0 0.0
        %2728 = vmatpush1.xpose.msra.mxu0 0.0
        %2729 = vmatprep.mubr.f32.mxu0 0.0
        %2730 = vmatmul.mubr.f32.gmra.mrb[0].mxu0 %v2661
        %v2731 = vpop.f32.mrb[0].mxu0
        %v2732 = vadd.f32 0.0, %v2731
        %v2733 = vpop.f32.mrb[0].mxu0
        %2734 = vdwg.mxu0
        %v2735 = vmul.f32 %v2732, 0.35355338
        %v2736 = vadd.f32 %v2735, %v1037
        %v2737 = vsel %vm459, %v2736, -inf
        %2738 = vmax.xlane.f32.xlu0 %v2737
        %v2739 = vpop.xlane.xlu0 %2738
        %v2740 = vsub.f32 %v2736, %v2739
        %v2741 = vmul.f32 %v2740, 1.442695
        %v2742 = vpow.pop %v2741
        %v2743 = vsel %vm459, %v2742, 0.0
        %2744 = vadd.xlane.f32.xlu0 %v2743
        %v2745 = vpop.xlane.xlu0 %2744
        %v2746 = vrcp.pop %v2745
        %v2747 = vmul.f32 %v2742, %v2746
        %2748 = vrot.lane.b32.xlu0 %v2179, 112
        %v2749 = vpop.permute.xlu0 %2748
        %v2752 = vsel %vm459, %v2747, 0
        %2754 = vmatprep.subr.mxu0 0.0
        %2755 = vmatpush1.msra.mxu0 %v2749
        %2756 = vmatprep.subr.mxu0 0.0
        %2757 = vmatpush1.msra.mxu0 0.0
        %2758 = vmatprep.subr.mxu0 0.0
        %2759 = vmatpush1.msra.mxu0 0.0
        %2760 = vmatprep.subr.mxu0 0.0
        %2761 = vmatpush1.msra.mxu0 0.0
        %2762 = vmatprep.subr.mxu0 0.0
        %2763 = vmatpush1.msra.mxu0 0.0
        %2764 = vmatprep.subr.mxu0 0.0
        %2765 = vmatpush1.msra.mxu0 0.0
        %2766 = vmatprep.subr.mxu0 0.0
        %2767 = vmatpush1.msra.mxu0 0.0
        %2768 = vmatprep.subr.mxu0 0.0
        %2769 = vmatpush1.msra.mxu0 0.0
        %2770 = vmatprep.subr.mxu0 0.0
        %2771 = vmatpush1.msra.mxu0 0.0
        %2772 = vmatprep.subr.mxu0 0.0
        %2773 = vmatpush1.msra.mxu0 0.0
        %2774 = vmatprep.subr.mxu0 0.0
        %2775 = vmatpush1.msra.mxu0 0.0
        %2776 = vmatprep.subr.mxu0 0.0
        %2777 = vmatpush1.msra.mxu0 0.0
        %2778 = vmatprep.subr.mxu0 0.0
        %2779 = vmatpush1.msra.mxu0 0.0
        %2780 = vmatprep.subr.mxu0 0.0
        %2781 = vmatpush1.msra.mxu0 0.0
        %2782 = vmatprep.subr.mxu0 0.0
        %2783 = vmatpush1.msra.mxu0 0.0
        %2784 = vmatprep.subr.mxu0 0.0
        %2785 = vmatpush1.msra.mxu0 0.0
        %2786 = vmatprep.subr.mxu0 0.0
        %2787 = vmatpush1.msra.mxu0 0.0
        %2788 = vmatprep.subr.mxu0 0.0
        %2789 = vmatpush1.msra.mxu0 0.0
        %2790 = vmatprep.subr.mxu0 0.0
        %2791 = vmatpush1.msra.mxu0 0.0
        %2792 = vmatprep.subr.mxu0 0.0
        %2793 = vmatpush1.msra.mxu0 0.0
        %2794 = vmatprep.subr.mxu0 0.0
        %2795 = vmatpush1.msra.mxu0 0.0
        %2796 = vmatprep.subr.mxu0 0.0
        %2797 = vmatpush1.msra.mxu0 0.0
        %2798 = vmatprep.subr.mxu0 0.0
        %2799 = vmatpush1.msra.mxu0 0.0
        %2800 = vmatprep.subr.mxu0 0.0
        %2801 = vmatpush1.msra.mxu0 0.0
        %2802 = vmatprep.subr.mxu0 0.0
        %2803 = vmatpush1.msra.mxu0 0.0
        %2804 = vmatprep.subr.mxu0 0.0
        %2805 = vmatpush1.msra.mxu0 0.0
        %2806 = vmatprep.subr.mxu0 0.0
        %2807 = vmatpush1.msra.mxu0 0.0
        %2808 = vmatprep.subr.mxu0 0.0
        %2809 = vmatpush1.msra.mxu0 0.0
        %2810 = vmatprep.subr.mxu0 0.0
        %2811 = vmatpush1.msra.mxu0 0.0
        %2812 = vmatprep.subr.mxu0 0.0
        %2813 = vmatpush1.msra.mxu0 0.0
        %2814 = vmatprep.subr.mxu0 0.0
        %2815 = vmatpush1.msra.mxu0 0.0
        %2816 = vmatprep.subr.mxu0 0.0
        %2817 = vmatpush1.msra.mxu0 0.0
        %2818 = vmatprep.mubr.f32.mxu0 0.0
        %2819 = vmatmul.mubr.f32.gmra.mrb[0].mxu0 %v2752
        %v2820 = vpop.f32.mrb[0].mxu0
        %v2821 = vadd.f32 0.0, %v2820
        %v2822 = vpop.f32.mrb[0].mxu0
        %2823 = vdwg.mxu0
        %2824 = vrot.lane.b32.xlu0 %v2323, 104
        %v2825 = vpop.permute.xlu0 %2824
        %2826 = vrot.lane.b32.xlu0 %v2323, 72
        %v2827 = vpop.permute.xlu0 %2826
        %v2828 = vsel %vm459, %v2825, 0
        %v2830 = vsel %vm459, %v2827, 0
        %2832 = vmatprep.subr.mxu0 0.0
        %2833 = vmatpush1.xpose.msra.mxu0 %v2830
        %2834 = vmatprep.subr.mxu0 0.0
        %2835 = vmatpush1.xpose.msra.mxu0 0.0
        %2836 = vmatprep.subr.mxu0 0.0
        %2837 = vmatpush1.xpose.msra.mxu0 0.0
        %2838 = vmatprep.subr.mxu0 0.0
        %2839 = vmatpush1.xpose.msra.mxu0 0.0
        %2840 = vmatprep.subr.mxu0 0.0
        %2841 = vmatpush1.xpose.msra.mxu0 0.0
        %2842 = vmatprep.subr.mxu0 0.0
        %2843 = vmatpush1.xpose.msra.mxu0 0.0
        %2844 = vmatprep.subr.mxu0 0.0
        %2845 = vmatpush1.xpose.msra.mxu0 0.0
        %2846 = vmatprep.subr.mxu0 0.0
        %2847 = vmatpush1.xpose.msra.mxu0 0.0
        %2848 = vmatprep.subr.mxu0 0.0
        %2849 = vmatpush1.xpose.msra.mxu0 0.0
        %2850 = vmatprep.subr.mxu0 0.0
        %2851 = vmatpush1.xpose.msra.mxu0 0.0
        %2852 = vmatprep.subr.mxu0 0.0
        %2853 = vmatpush1.xpose.msra.mxu0 0.0
        %2854 = vmatprep.subr.mxu0 0.0
        %2855 = vmatpush1.xpose.msra.mxu0 0.0
        %2856 = vmatprep.subr.mxu0 0.0
        %2857 = vmatpush1.xpose.msra.mxu0 0.0
        %2858 = vmatprep.subr.mxu0 0.0
        %2859 = vmatpush1.xpose.msra.mxu0 0.0
        %2860 = vmatprep.subr.mxu0 0.0
        %2861 = vmatpush1.xpose.msra.mxu0 0.0
        %2862 = vmatprep.subr.mxu0 0.0
        %2863 = vmatpush1.xpose.msra.mxu0 0.0
        %2864 = vmatprep.subr.mxu0 0.0
        %2865 = vmatpush1.xpose.msra.mxu0 0.0
        %2866 = vmatprep.subr.mxu0 0.0
        %2867 = vmatpush1.xpose.msra.mxu0 0.0
        %2868 = vmatprep.subr.mxu0 0.0
        %2869 = vmatpush1.xpose.msra.mxu0 0.0
        %2870 = vmatprep.subr.mxu0 0.0
        %2871 = vmatpush1.xpose.msra.mxu0 0.0
        %2872 = vmatprep.subr.mxu0 0.0
        %2873 = vmatpush1.xpose.msra.mxu0 0.0
        %2874 = vmatprep.subr.mxu0 0.0
        %2875 = vmatpush1.xpose.msra.mxu0 0.0
        %2876 = vmatprep.subr.mxu0 0.0
        %2877 = vmatpush1.xpose.msra.mxu0 0.0
        %2878 = vmatprep.subr.mxu0 0.0
        %2879 = vmatpush1.xpose.msra.mxu0 0.0
        %2880 = vmatprep.subr.mxu0 0.0
        %2881 = vmatpush1.xpose.msra.mxu0 0.0
        %2882 = vmatprep.subr.mxu0 0.0
        %2883 = vmatpush1.xpose.msra.mxu0 0.0
        %2884 = vmatprep.subr.mxu0 0.0
        %2885 = vmatpush1.xpose.msra.mxu0 0.0
        %2886 = vmatprep.subr.mxu0 0.0
        %2887 = vmatpush1.xpose.msra.mxu0 0.0
        %2888 = vmatprep.subr.mxu0 0.0
        %2889 = vmatpush1.xpose.msra.mxu0 0.0
        %2890 = vmatprep.subr.mxu0 0.0
        %2891 = vmatpush1.xpose.msra.mxu0 0.0
        %2892 = vmatprep.subr.mxu0 0.0
        %2893 = vmatpush1.xpose.msra.mxu0 0.0
        %2894 = vmatprep.subr.mxu0 0.0
        %2895 = vmatpush1.xpose.msra.mxu0 0.0
        %2896 = vmatprep.mubr.f32.mxu0 0.0
        %2897 = vmatmul.mubr.f32.gmra.mrb[0].mxu0 %v2828
        %v2898 = vpop.f32.mrb[0].mxu0
        %v2899 = vadd.f32 0.0, %v2898
        %v2900 = vpop.f32.mrb[0].mxu0
        %2901 = vdwg.mxu0
        %v2902 = vmul.f32 %v2899, 0.35355338
        %v2903 = vadd.f32 %v2902, %v1037
        %v2904 = vsel %vm459, %v2903, -inf
        %2905 = vmax.xlane.f32.xlu0 %v2904
        %v2906 = vpop.xlane.xlu0 %2905
        %v2907 = vsub.f32 %v2903, %v2906
        %v2908 = vmul.f32 %v2907, 1.442695
        %v2909 = vpow.pop %v2908
        %v2910 = vsel %vm459, %v2909, 0.0
        %2911 = vadd.xlane.f32.xlu0 %v2910
        %v2912 = vpop.xlane.xlu0 %2911
        %v2913 = vrcp.pop %v2912
        %v2914 = vmul.f32 %v2909, %v2913
        %2915 = vrot.lane.b32.xlu0 %v2179, 104
        %v2916 = vpop.permute.xlu0 %2915
        %v2919 = vsel %vm459, %v2914, 0
        %2921 = vmatprep.subr.mxu0 0.0
        %2922 = vmatpush1.msra.mxu0 %v2916
        %2923 = vmatprep.subr.mxu0 0.0
        %2924 = vmatpush1.msra.mxu0 0.0
        %2925 = vmatprep.subr.mxu0 0.0
        %2926 = vmatpush1.msra.mxu0 0.0
        %2927 = vmatprep.subr.mxu0 0.0
        %2928 = vmatpush1.msra.mxu0 0.0
        %2929 = vmatprep.subr.mxu0 0.0
        %2930 = vmatpush1.msra.mxu0 0.0
        %2931 = vmatprep.subr.mxu0 0.0
        %2932 = vmatpush1.msra.mxu0 0.0
        %2933 = vmatprep.subr.mxu0 0.0
        %2934 = vmatpush1.msra.mxu0 0.0
        %2935 = vmatprep.subr.mxu0 0.0
        %2936 = vmatpush1.msra.mxu0 0.0
        %2937 = vmatprep.subr.mxu0 0.0
        %2938 = vmatpush1.msra.mxu0 0.0
        %2939 = vmatprep.subr.mxu0 0.0
        %2940 = vmatpush1.msra.mxu0 0.0
        %2941 = vmatprep.subr.mxu0 0.0
        %2942 = vmatpush1.msra.mxu0 0.0
        %2943 = vmatprep.subr.mxu0 0.0
        %2944 = vmatpush1.msra.mxu0 0.0
        %2945 = vmatprep.subr.mxu0 0.0
        %2946 = vmatpush1.msra.mxu0 0.0
        %2947 = vmatprep.subr.mxu0 0.0
        %2948 = vmatpush1.msra.mxu0 0.0
        %2949 = vmatprep.subr.mxu0 0.0
        %2950 = vmatpush1.msra.mxu0 0.0
        %2951 = vmatprep.subr.mxu0 0.0
        %2952 = vmatpush1.msra.mxu0 0.0
        %2953 = vmatprep.subr.mxu0 0.0
        %2954 = vmatpush1.msra.mxu0 0.0
        %2955 = vmatprep.subr.mxu0 0.0
        %2956 = vmatpush1.msra.mxu0 0.0
        %2957 = vmatprep.subr.mxu0 0.0
        %2958 = vmatpush1.msra.mxu0 0.0
        %2959 = vmatprep.subr.mxu0 0.0
        %2960 = vmatpush1.msra.mxu0 0.0
        %2961 = vmatprep.subr.mxu0 0.0
        %2962 = vmatpush1.msra.mxu0 0.0
        %2963 = vmatprep.subr.mxu0 0.0
        %2964 = vmatpush1.msra.mxu0 0.0
        %2965 = vmatprep.subr.mxu0 0.0
        %2966 = vmatpush1.msra.mxu0 0.0
        %2967 = vmatprep.subr.mxu0 0.0
        %2968 = vmatpush1.msra.mxu0 0.0
        %2969 = vmatprep.subr.mxu0 0.0
        %2970 = vmatpush1.msra.mxu0 0.0
        %2971 = vmatprep.subr.mxu0 0.0
        %2972 = vmatpush1.msra.mxu0 0.0
        %2973 = vmatprep.subr.mxu0 0.0
        %2974 = vmatpush1.msra.mxu0 0.0
        %2975 = vmatprep.subr.mxu0 0.0
        %2976 = vmatpush1.msra.mxu0 0.0
        %2977 = vmatprep.subr.mxu0 0.0
        %2978 = vmatpush1.msra.mxu0 0.0
        %2979 = vmatprep.subr.mxu0 0.0
        %2980 = vmatpush1.msra.mxu0 0.0
        %2981 = vmatprep.subr.mxu0 0.0
        %2982 = vmatpush1.msra.mxu0 0.0
        %2983 = vmatprep.subr.mxu0 0.0
        %2984 = vmatpush1.msra.mxu0 0.0
        %2985 = vmatprep.mubr.f32.mxu0 0.0
        %2986 = vmatmul.mubr.f32.gmra.mrb[0].mxu0 %v2919
        %v2987 = vpop.f32.mrb[0].mxu0
        %v2988 = vadd.f32 0.0, %v2987
        %v2989 = vpop.f32.mrb[0].mxu0
        %2990 = vdwg.mxu0
        %2992 = vrot.lane.b32.xlu0 %v2654, 8
        %v2993 = vpop.permute.xlu0 %2992
        %2996 = vrot.lane.b32.xlu0 %v2821, 16
        %v2997 = vpop.permute.xlu0 %2996
        %3000 = vrot.lane.b32.xlu0 %v2988, 24
        %v3001 = vpop.permute.xlu0 %3000
        %v3003 = vsel %vm459, %v2486, %v2993
        %v3004 = vsel %vm1639, %v3003, %v2997
        %v3005 = vsel %vm1641, %v3004, %v3001
        %v3007 = vsel %vm595, %v3005, 0
        %3009 = vmatprep.subr.mxu0 0.0
        %3010 = vmatpush1.msra.mxu0 %v1939
        %3011 = vmatprep.subr.mxu0 0.0
        %3012 = vmatpush1.msra.mxu0 %v1940
        %3013 = vmatprep.subr.mxu0 0.0
        %3014 = vmatpush1.msra.mxu0 %v1941
        %3015 = vmatprep.subr.mxu0 0.0
        %3016 = vmatpush1.msra.mxu0 %v1942
        %3017 = vmatprep.subr.mxu0 0.0
        %3018 = vmatpush1.msra.mxu0 0.0
        %3019 = vmatprep.subr.mxu0 0.0
        %3020 = vmatpush1.msra.mxu0 0.0
        %3021 = vmatprep.subr.mxu0 0.0
        %3022 = vmatpush1.msra.mxu0 0.0
        %3023 = vmatprep.subr.mxu0 0.0
        %3024 = vmatpush1.msra.mxu0 0.0
        %3025 = vmatprep.subr.mxu0 0.0
        %3026 = vmatpush1.msra.mxu0 0.0
        %3027 = vmatprep.subr.mxu0 0.0
        %3028 = vmatpush1.msra.mxu0 0.0
        %3029 = vmatprep.subr.mxu0 0.0
        %3030 = vmatpush1.msra.mxu0 0.0
        %3031 = vmatprep.subr.mxu0 0.0
        %3032 = vmatpush1.msra.mxu0 0.0
        %3033 = vmatprep.subr.mxu0 0.0
        %3034 = vmatpush1.msra.mxu0 0.0
        %3035 = vmatprep.subr.mxu0 0.0
        %3036 = vmatpush1.msra.mxu0 0.0
        %3037 = vmatprep.subr.mxu0 0.0
        %3038 = vmatpush1.msra.mxu0 0.0
        %3039 = vmatprep.subr.mxu0 0.0
        %3040 = vmatpush1.msra.mxu0 0.0
        %3041 = vmatprep.subr.mxu0 0.0
        %3042 = vmatpush1.msra.mxu0 0.0
        %3043 = vmatprep.subr.mxu0 0.0
        %3044 = vmatpush1.msra.mxu0 0.0
        %3045 = vmatprep.subr.mxu0 0.0
        %3046 = vmatpush1.msra.mxu0 0.0
        %3047 = vmatprep.subr.mxu0 0.0
        %3048 = vmatpush1.msra.mxu0 0.0
        %3049 = vmatprep.subr.mxu0 0.0
        %3050 = vmatpush1.msra.mxu0 0.0
        %3051 = vmatprep.subr.mxu0 0.0
        %3052 = vmatpush1.msra.mxu0 0.0
        %3053 = vmatprep.subr.mxu0 0.0
        %3054 = vmatpush1.msra.mxu0 0.0
        %3055 = vmatprep.subr.mxu0 0.0
        %3056 = vmatpush1.msra.mxu0 0.0
        %3057 = vmatprep.subr.mxu0 0.0
        %3058 = vmatpush1.msra.mxu0 0.0
        %3059 = vmatprep.subr.mxu0 0.0
        %3060 = vmatpush1.msra.mxu0 0.0
        %3061 = vmatprep.subr.mxu0 0.0
        %3062 = vmatpush1.msra.mxu0 0.0
        %3063 = vmatprep.subr.mxu0 0.0
        %3064 = vmatpush1.msra.mxu0 0.0
        %3065 = vmatprep.subr.mxu0 0.0
        %3066 = vmatpush1.msra.mxu0 0.0
        %3067 = vmatprep.subr.mxu0 0.0
        %3068 = vmatpush1.msra.mxu0 0.0
        %3069 = vmatprep.subr.mxu0 0.0
        %3070 = vmatpush1.msra.mxu0 0.0
        %3071 = vmatprep.subr.mxu0 0.0
        %3072 = vmatpush1.msra.mxu0 0.0
        %3073 = vmatprep.mubr.f32.mxu0 0.0
        %3074 = vmatmul.mubr.f32.gmra.mrb[0].mxu0 %v3007
        %v3075 = vpop.f32.mrb[0].mxu0
        %v3076 = vadd.f32 0.0, %v3075
        %v3077 = vpop.f32.mrb[0].mxu0
        %3078 = vdwg.mxu0
        %v3079 = vadd.f32 %v1916, %v3076
        %v3080 = vsel %vm595, %v3079, 0.0
        %3081 = vadd.xlane.f32.xlu0 %v3080
        %v3082 = vpop.xlane.xlu0 %3081
        %v3083 = vmul.f32 %v3082, %v1720
        %v3084 = vsub.f32 %v3079, %v3083
        %v3085 = vmul.f32 %v3084, %v3084
        %v3086 = vsel %vm595, %v3085, 0.0
        %3087 = vadd.xlane.f32.xlu0 %v3086
        %v3088 = vpop.xlane.xlu0 %3087
        %v3089 = vmul.f32 %v3088, %v1720
        %v3090 = vadd.f32 %v3089, 1e-05
        %v3091 = vrsqrt.pop %v3090
        %v3092 = vmul.f32 %v3084, %v3091
        %v3093 = vlaneseq
        %v3094 = vshrl.u32 %v3093, 7
        %v3095 = vsub.s32 0, %v3094
        %v3096 = vrot.slane %v1966, %v3095
        %v3097 = vmul.f32 %v3092, %v3096
        %v3098 = vlaneseq
        %v3099 = vshrl.u32 %v3098, 7
        %v3100 = vsub.s32 1, %v3099
        %v3101 = vrot.slane %v1966, %v3100
        %v3102 = vadd.f32 %v3097, %v3101
        %v3103 = vlaneseq
        %v3104 = vshrl.u32 %v3103, 7
        %v3105 = vsub.s32 2, %v3104
        %v3106 = vrot.slane %v1966, %v3105
        %v3108 = vsel %vm595, %v3102, 0
        %3110 = vmatprep.subr.mxu0 0.0
        %3111 = vmatpush1.msra.mxu0 %v1944
        %3112 = vmatprep.subr.mxu0 0.0
        %3113 = vmatpush1.msra.mxu0 %v1945
        %3114 = vmatprep.subr.mxu0 0.0
        %3115 = vmatpush1.msra.mxu0 %v1946
        %3116 = vmatprep.subr.mxu0 0.0
        %3117 = vmatpush1.msra.mxu0 %v1947
        %3118 = vmatprep.subr.mxu0 0.0
        %3119 = vmatpush1.msra.mxu0 0.0
        %3120 = vmatprep.subr.mxu0 0.0
        %3121 = vmatpush1.msra.mxu0 0.0
        %3122 = vmatprep.subr.mxu0 0.0
        %3123 = vmatpush1.msra.mxu0 0.0
        %3124 = vmatprep.subr.mxu0 0.0
        %3125 = vmatpush1.msra.mxu0 0.0
        %3126 = vmatprep.subr.mxu0 0.0
        %3127 = vmatpush1.msra.mxu0 0.0
        %3128 = vmatprep.subr.mxu0 0.0
        %3129 = vmatpush1.msra.mxu0 0.0
        %3130 = vmatprep.subr.mxu0 0.0
        %3131 = vmatpush1.msra.mxu0 0.0
        %3132 = vmatprep.subr.mxu0 0.0
        %3133 = vmatpush1.msra.mxu0 0.0
        %3134 = vmatprep.subr.mxu0 0.0
        %3135 = vmatpush1.msra.mxu0 0.0
        %3136 = vmatprep.subr.mxu0 0.0
        %3137 = vmatpush1.msra.mxu0 0.0
        %3138 = vmatprep.subr.mxu0 0.0
        %3139 = vmatpush1.msra.mxu0 0.0
        %3140 = vmatprep.subr.mxu0 0.0
        %3141 = vmatpush1.msra.mxu0 0.0
        %3142 = vmatprep.subr.mxu0 0.0
        %3143 = vmatpush1.msra.mxu0 0.0
        %3144 = vmatprep.subr.mxu0 0.0
        %3145 = vmatpush1.msra.mxu0 0.0
        %3146 = vmatprep.subr.mxu0 0.0
        %3147 = vmatpush1.msra.mxu0 0.0
        %3148 = vmatprep.subr.mxu0 0.0
        %3149 = vmatpush1.msra.mxu0 0.0
        %3150 = vmatprep.subr.mxu0 0.0
        %3151 = vmatpush1.msra.mxu0 0.0
        %3152 = vmatprep.subr.mxu0 0.0
        %3153 = vmatpush1.msra.mxu0 0.0
        %3154 = vmatprep.subr.mxu0 0.0
        %3155 = vmatpush1.msra.mxu0 0.0
        %3156 = vmatprep.subr.mxu0 0.0
        %3157 = vmatpush1.msra.mxu0 0.0
        %3158 = vmatprep.subr.mxu0 0.0
        %3159 = vmatpush1.msra.mxu0 0.0
        %3160 = vmatprep.subr.mxu0 0.0
        %3161 = vmatpush1.msra.mxu0 0.0
        %3162 = vmatprep.subr.mxu0 0.0
        %3163 = vmatpush1.msra.mxu0 0.0
        %3164 = vmatprep.subr.mxu0 0.0
        %3165 = vmatpush1.msra.mxu0 0.0
        %3166 = vmatprep.subr.mxu0 0.0
        %3167 = vmatpush1.msra.mxu0 0.0
        %3168 = vmatprep.subr.mxu0 0.0
        %3169 = vmatpush1.msra.mxu0 0.0
        %3170 = vmatprep.subr.mxu0 0.0
        %3171 = vmatpush1.msra.mxu0 0.0
        %3172 = vmatprep.subr.mxu0 0.0
        %3173 = vmatpush1.msra.mxu0 0.0
        %3174 = vmatprep.mubr.f32.mxu0 0.0
        %3175 = vmatmul.mubr.f32.gmra.mrb[0].mxu0 %v3108
        %v3176 = vpop.f32.mrb[0].mxu0
        %v3177 = vadd.f32 %v3106, %v3176
        %v3178 = vpop.f32.mrb[0].mxu0
        %3179 = vdwg.mxu0
        %v3180 = vmax.f32 %v3177, 0.0
        %v3181 = vlaneseq
        %v3182 = vshrl.u32 %v3181, 7
        %v3183 = vsub.s32 3, %v3182
        %v3184 = vrot.slane %v1966, %v3183
        %3185 = vmatprep.subr.mxu0 0.0
        %3186 = vmatpush1.msra.mxu0 %v1949
        %3187 = vmatprep.subr.mxu0 0.0
        %3188 = vmatpush1.msra.mxu0 %v1950
        %3189 = vmatprep.subr.mxu0 0.0
        %3190 = vmatpush1.msra.mxu0 %v1951
        %3191 = vmatprep.subr.mxu0 0.0
        %3192 = vmatpush1.msra.mxu0 %v1952
        %3193 = vmatprep.subr.mxu0 0.0
        %3194 = vmatpush1.msra.mxu0 %v1953
        %3195 = vmatprep.subr.mxu0 0.0
        %3196 = vmatpush1.msra.mxu0 %v1954
        %3197 = vmatprep.subr.mxu0 0.0
        %3198 = vmatpush1.msra.mxu0 %v1955
        %3199 = vmatprep.subr.mxu0 0.0
        %3200 = vmatpush1.msra.mxu0 %v1956
        %3201 = vmatprep.subr.mxu0 0.0
        %3202 = vmatpush1.msra.mxu0 %v1957
        %3203 = vmatprep.subr.mxu0 0.0
        %3204 = vmatpush1.msra.mxu0 %v1958
        %3205 = vmatprep.subr.mxu0 0.0
        %3206 = vmatpush1.msra.mxu0 %v1959
        %3207 = vmatprep.subr.mxu0 0.0
        %3208 = vmatpush1.msra.mxu0 %v1960
        %3209 = vmatprep.subr.mxu0 0.0
        %3210 = vmatpush1.msra.mxu0 %v1961
        %3211 = vmatprep.subr.mxu0 0.0
        %3212 = vmatpush1.msra.mxu0 %v1962
        %3213 = vmatprep.subr.mxu0 0.0
        %3214 = vmatpush1.msra.mxu0 %v1963
        %3215 = vmatprep.subr.mxu0 0.0
        %3216 = vmatpush1.msra.mxu0 %v1964
        %3217 = vmatprep.subr.mxu0 0.0
        %3218 = vmatpush1.msra.mxu0 0.0
        %3219 = vmatprep.subr.mxu0 0.0
        %3220 = vmatpush1.msra.mxu0 0.0
        %3221 = vmatprep.subr.mxu0 0.0
        %3222 = vmatpush1.msra.mxu0 0.0
        %3223 = vmatprep.subr.mxu0 0.0
        %3224 = vmatpush1.msra.mxu0 0.0
        %3225 = vmatprep.subr.mxu0 0.0
        %3226 = vmatpush1.msra.mxu0 0.0
        %3227 = vmatprep.subr.mxu0 0.0
        %3228 = vmatpush1.msra.mxu0 0.0
        %3229 = vmatprep.subr.mxu0 0.0
        %3230 = vmatpush1.msra.mxu0 0.0
        %3231 = vmatprep.subr.mxu0 0.0
        %3232 = vmatpush1.msra.mxu0 0.0
        %3233 = vmatprep.subr.mxu0 0.0
        %3234 = vmatpush1.msra.mxu0 0.0
        %3235 = vmatprep.subr.mxu0 0.0
        %3236 = vmatpush1.msra.mxu0 0.0
        %3237 = vmatprep.subr.mxu0 0.0
        %3238 = vmatpush1.msra.mxu0 0.0
        %3239 = vmatprep.subr.mxu0 0.0
        %3240 = vmatpush1.msra.mxu0 0.0
        %3241 = vmatprep.subr.mxu0 0.0
        %3242 = vmatpush1.msra.mxu0 0.0
        %3243 = vmatprep.subr.mxu0 0.0
        %3244 = vmatpush1.msra.mxu0 0.0
        %3245 = vmatprep.subr.mxu0 0.0
        %3246 = vmatpush1.msra.mxu0 0.0
        %3247 = vmatprep.subr.mxu0 0.0
        %3248 = vmatpush1.msra.mxu0 0.0
        %3249 = vmatprep.mubr.f32.mxu0 0.0
        %3250 = vmatmul.mubr.f32.gmra.mrb[0].mxu0 %v3180
        %v3251 = vpop.f32.mrb[0].mxu0
        %v3252 = vadd.f32 %v3184, %v3251
        %v3253 = vpop.f32.mrb[0].mxu0
        %3254 = vdwg.mxu0
        %v3255 = vadd.f32 %v3102, %v3252
        %v3256 = vsel %vm595, %v3255, 0.0
        %3257 = vadd.xlane.f32.xlu0 %v3256
        %v3258 = vpop.xlane.xlu0 %3257
        %v3259 = vmul.f32 %v3258, %v1720
        %v3260 = vsub.f32 %v3255, %v3259
        %v3261 = vmul.f32 %v3260, %v3260
        %v3262 = vsel %vm595, %v3261, 0.0
        %3263 = vadd.xlane.f32.xlu0 %v3262
        %v3264 = vpop.xlane.xlu0 %3263
        %v3265 = vmul.f32 %v3264, %v1720
        %v3266 = vadd.f32 %v3265, 1e-05
        %v3267 = vrsqrt.pop %v3266
        %v3268 = vmul.f32 %v3260, %v3267
        %v3269 = vlaneseq
        %v3270 = vshrl.u32 %v3269, 7
        %v3271 = vsub.s32 4, %v3270
        %v3272 = vrot.slane %v1966, %v3271
        %v3273 = vmul.f32 %v3268, %v3272
        %v3274 = vlaneseq
        %v3275 = vshrl.u32 %v3274, 7
        %v3276 = vsub.s32 5, %v3275
        %v3277 = vrot.slane %v1966, %v3276
        %v3278 = vadd.f32 %v3273, %v3277
        %vm3279 = vcmask 253952
        %3280 = vst.msk [vmem:[%s375] sm:$0x1] %vm3279, %v3278
        %s3281 = sand.u32 %s257, 1
        %s3282 = scalar_lea.sflag [#allocation3], %s3281
        %s3283 = sand.u32 %s257, 1
        %s3284 = scalar_lea.vmem [#allocation2], %s3283
        // Predicated region
        $region61: #{tpu_custom_call.1} parent=59 // pred_check
          %p3285 = pneg %p267
        $region62: #{tpu_custom_call.1} parent=59 // pred_check_branch
          %3287 = sbr.rel (%p3285) target = $region64
        $region63: #{tpu_custom_call.1} parent=59 // pred_region
          %s3289 = ssub.s32 16, 16
          %3290 = vsyncadd %s3282, %s3289
          %s3291 = smul.addr %s24, 16
          %s3292 = scalar_lea.hbm %s10, %s3291
          %s3294 = sshll.u32 %s3284, 4
          %s3295 = int_to_ptr.vmem [resolvable:$true] %s3294
          %3297 = dma.vmem_to_hbm [thread:$0]  %s3295, 16, %s3292, %s3282
        $region64: #{tpu_custom_call.1} parent=59 // pred_fallthru
          _
      $region60: #{tpu_custom_call.1} parent=5 // pred_fallthru
        _
      %p3298 = scmp.le.s32.totalorder 2, %s19
      // Predicated region
      $region65: #{tpu_custom_call.1} parent=5 // pred_check
        %p3299 = pneg %p3298
      $region66: #{tpu_custom_call.1} parent=5 // pred_check_branch
        %3301 = sbr.rel (%p3299) target = $region68
      $region67: #{tpu_custom_call.1} parent=5 // pred_region
        %s3302 = ssub.s32 %s19, 2
        // Predicated region
        $region69: #{tpu_custom_call.1} parent=67 // pred_check
          %p3303 = pneg %p273
        $region70: #{tpu_custom_call.1} parent=67 // pred_check_branch
          %3305 = sbr.rel (%p3303) target = $region72
        $region71: #{tpu_custom_call.1} parent=67 // pred_region
          %s3306 = sand.u32 %s258, 1
          %s3307 = scalar_lea.sflag [#allocation3], %s3306
          %s3308 = sand.u32 %s258, 1
          %s3309 = scalar_lea.vmem [#allocation2], %s3308
          %3310 = dma.done %s3307, 16
        $region72: #{tpu_custom_call.1} parent=67 // pred_fallthru
          _
      $region68: #{tpu_custom_call.1} parent=5 // pred_fallthru
        _
    $region6: #{tpu_custom_call.1} parent=1 // loop_footer
      %s23 = sadd.s32 1, %s19
    $region7: #{tpu_custom_call.1} parent=1 // loop_footer_branch
      %18 = sbr.rel target = $region3
    $region8: #{tpu_custom_call.1} parent=1 // loop_exit
      _
    %3311 = vsyncpa [#allocation3], 1
    %s3312 = scalar_lea.sflag [#allocation3], 1
    %3313 = vsyncpa %s3312, 1

</llo_original>
